<compile_context>
chip_gen: v5e
topology: v5e:2x2
jax: 0.10.0
libtpu: 0.0.40
codegen_flags: <defaults>
</compile_context>

<pallas_src>
import functools

import jax
import jax.numpy as jnp
from jax import lax
from jax.experimental import pallas as pl
from jax.experimental.pallas import tpu as pltpu


# ----------------------------------------------------------------------------
# Single fused kernel: all LSTM layers + head.
# ----------------------------------------------------------------------------
def _birnn_max_fused_kernel(*args, T, B, H, num_layers, unroll):
    H4, H8 = 4 * H, 8 * H
    n_in = 1 + 3 + 4 * (num_layers - 1) + 9
    in_refs = args[:n_in]
    out_ref = args[n_in]
    gx_sc, seq_f, seq_b = args[n_in + 1:]

    x_ref = in_refs[0]
    layer_refs = [tuple(in_refs[1:4])]                 # (wih0, whh0, b0)
    idx = 4
    for _ in range(num_layers - 1):
        layer_refs.append(tuple(in_refs[idx:idx + 4])) # (wih_f, wih_b, whh, b)
        idx += 4
    (w1f_ref, w1b_ref, b1_ref, gam_ref, bet_ref, mu_ref, var_ref,
     w2_ref, b2_ref) = in_refs[idx:idx + 9]

    # Constant row mask selecting fwd (top B rows) vs bwd (bottom B rows)
    # quadrant of the stacked recurrent-dot result.  Hoisted out of all loops.
    top = lax.broadcasted_iota(jnp.int32, (2 * B, H4), 0) < B

    def run_layer(whh_ref, is_last):
        whh = whh_ref[...]                             # (H, 8H) bf16, loaded once

        def body(s, carry):
            h, c = carry[0], carry[1]                  # h: (2B,H) bf16, c: f32
            r = T - 1 - s
            sf = pl.multiple_of(s * B, B)              # B is a multiple of 8
            rf = pl.multiple_of(r * B, B)
            # One stacked (2B,H)x(H,8H) dot serves both directions.
            rec = jnp.dot(h, whh, preferred_element_type=jnp.float32)  # (2B,8H)
            gx_f = gx_sc[pl.ds(sf, B), 0:H4]           # fwd pre-acts, time s
            gx_b = gx_sc[pl.ds(rf, B), H4:H8]          # bwd pre-acts, time T-1-s
            gates = (jnp.concatenate([gx_f, gx_b], axis=0)
                     + jnp.where(top, rec[:, 0:H4], rec[:, H4:H8]))   # (2B,4H)
            sg = jax.nn.sigmoid(gates)                 # full-width pass
            th = jnp.tanh(gates)                       # full-width pass
            i = sg[:, 0:H]                             # PyTorch gate order i,f,g,o
            f = sg[:, H:2 * H]
            g = th[:, 2 * H:3 * H]
            o = sg[:, 3 * H:H4]
            c = f * c + i * g
            h_f32 = o * jnp.tanh(c)
            h = h_f32.astype(jnp.bfloat16)             # bf16 carry for the MXU
            if is_last:
                m = jnp.maximum(carry[2], h_f32)       # running max over time
                return (h, c, m)
            seq_f[pl.ds(sf, B), :] = h_f32[:B, :]      # fwd output, time s
            seq_b[pl.ds(rf, B), :] = h_f32[B:, :]      # bwd output, time T-1-s
            return (h, c)

        h0 = jnp.zeros((2 * B, H), jnp.bfloat16)
        c0 = jnp.zeros((2 * B, H), jnp.float32)
        if is_last:
            init = (h0, c0, jnp.full((2 * B, H), -jnp.inf, jnp.float32))
        else:
            init = (h0, c0)
        res = lax.fori_loop(0, T, body, init, unroll=unroll)
        return res[2] if is_last else None

    # ---- layer 0: hoisted input projection for BOTH directions --------------
    wih0, whh0, b0 = layer_refs[0]
    gx_sc[...] = jnp.dot(x_ref[...], wih0[...],
                         preferred_element_type=jnp.float32) + b0[...]
    m = run_layer(whh0, num_layers == 1)

    # ---- layers 1 .. L-1 -----------------------------------------------------
    for l in range(1, num_layers):
        wih_f, wih_b, whh, b = layer_refs[l]
        xf = seq_f[...].astype(jnp.bfloat16)           # read previous layer's seq
        xb = seq_b[...].astype(jnp.bfloat16)           # before it is overwritten
        gx_sc[...] = (jnp.dot(xf, wih_f[...], preferred_element_type=jnp.float32)
                      + jnp.dot(xb, wih_b[...], preferred_element_type=jnp.float32)
                      + b[...])
        m = run_layer(whh, l == num_layers - 1)

    # ---- head: max-over-time -> fc1 -> BN(eval) -> ReLU -> fc2 -> log_softmax
    mf = m[:B, :].astype(jnp.bfloat16)                 # fwd-half features
    mb = m[B:, :].astype(jnp.bfloat16)                 # bwd-half features
    z = (jnp.dot(mf, w1f_ref[...], preferred_element_type=jnp.float32)
         + jnp.dot(mb, w1b_ref[...], preferred_element_type=jnp.float32)
         + b1_ref[...])
    z = (z - mu_ref[...]) * lax.rsqrt(var_ref[...] + 1e-5)
    z = z * gam_ref[...] + bet_ref[...]
    z = jnp.maximum(z, 0.0)
    logits = jnp.dot(z.astype(jnp.bfloat16), w2_ref[...],
                     preferred_element_type=jnp.float32) + b2_ref[...]
    mx = jnp.max(logits, axis=-1, keepdims=True)
    sh = logits - mx
    lse = jnp.log(jnp.sum(jnp.exp(sh), axis=-1, keepdims=True))
    out_ref[...] = (sh - lse).astype(out_ref.dtype)


# ----------------------------------------------------------------------------
# Full model wrapper (single pallas_call).
# ----------------------------------------------------------------------------
def birnn_max_forward(x, params):
    """x: (B, T, input_size) batch-first, like the PyTorch module."""
    B, T, D = x.shape
    layers = params["lstm"]
    num_layers = len(layers)
    H = layers[0]["whh"].shape[0]
    C = params["fc2_w"].shape[1]
    Bp = ((B + 7) // 8) * 8                    # pad batch -> all row offsets 8-aligned

    x_tm = jnp.transpose(x, (1, 0, 2)).astype(jnp.bfloat16)        # (T, B, D)
    if Bp != B:
        x_tm = jnp.pad(x_tm, ((0, 0), (0, Bp - B), (0, 0)))
    x_flat = x_tm.reshape(T * Bp, D)                               # time-major rows

    inputs = [x_flat, layers[0]["wih"], layers[0]["whh"], layers[0]["b"]]
    for l in layers[1:]:
        inputs += [l["wih_f"], l["wih_b"], l["whh"], l["b"]]
    inputs += [params["fc1_wf"], params["fc1_wb"], params["fc1_b"],
               params["bn_gamma"], params["bn_beta"], params["bn_mean"],
               params["bn_var"], params["fc2_w"], params["fc2_b"]]

    scratch = [pltpu.VMEM((T * Bp, 8 * H), jnp.float32),   # gx (both directions)
               pltpu.VMEM((T * Bp, H), jnp.float32),       # fwd output sequence
               pltpu.VMEM((T * Bp, H), jnp.float32)]       # bwd output sequence

    est = sum(int(a.size) * a.dtype.itemsize for a in inputs)
    est += (T * Bp * 8 * H + 2 * T * Bp * H + Bp * C) * 4
    vmem_limit = int(min(64 * 2**20, max(16 * 2**20, 2 * est)))

    kern = functools.partial(_birnn_max_fused_kernel, T=T, B=Bp, H=H,
                             num_layers=num_layers, unroll=max(1, min(T, 8)))
    out = pl.pallas_call(
        kern,
        out_shape=jax.ShapeDtypeStruct((Bp, C), jnp.float32),
        in_specs=[pl.BlockSpec(memory_space=pltpu.MemorySpace.VMEM)] * len(inputs),
        out_specs=pl.BlockSpec(memory_space=pltpu.MemorySpace.VMEM),
        scratch_shapes=scratch,
        compiler_params=pltpu.CompilerParams(vmem_limit_bytes=vmem_limit),
    )(*inputs)
    return out[:B]


# ----------------------------------------------------------------------------
# Parameter init (mirrors the PyTorch module's __init__).
# ----------------------------------------------------------------------------
def init_params(key, input_size, hidden_size, num_layers, num_classes):
    H = hidden_size
    bound = 1.0 / (H ** 0.5)
    params = {"lstm": []}
    for l in range(num_layers):
        d_in = input_size if l == 0 else 2 * H
        ws = {}
        for d in ("fwd", "bwd"):
            key, k1, k2, k3, k4 = jax.random.split(key, 5)
            w_ih = jax.random.uniform(k1, (d_in, 4 * H), jnp.float32, -bound, bound)
            w_hh = jax.random.uniform(k2, (H, 4 * H), jnp.float32, -bound, bound)
            b_ih = jax.random.uniform(k3, (4 * H,), jnp.float32, -bound, bound)
            b_hh = jax.random.uniform(k4, (4 * H,), jnp.float32, -bound, bound)
            ws[d] = (w_ih, w_hh, b_ih + b_hh)
        # Pack both directions' columns: fwd -> [:4H], bwd -> [4H:8H].
        wih = jnp.concatenate([ws["fwd"][0], ws["bwd"][0]], axis=1)   # (d_in, 8H)
        whh = jnp.concatenate([ws["fwd"][1], ws["bwd"][1]], axis=1)   # (H, 8H)
        b = jnp.concatenate([ws["fwd"][2], ws["bwd"][2]]).reshape(1, 8 * H)
        layer = {"whh": whh.astype(jnp.bfloat16), "b": b.astype(jnp.float32)}
        if l == 0:
            layer["wih"] = wih.astype(jnp.bfloat16)
        else:
            # Split by input-feature rows: fwd-half / bwd-half of the 2H input.
            layer["wih_f"] = wih[:H].astype(jnp.bfloat16)
            layer["wih_b"] = wih[H:].astype(jnp.bfloat16)
        params["lstm"].append(layer)

    key, k1, k2, k3, k4 = jax.random.split(key, 5)
    # fc1: normal(0.1, 0.5); fc2: normal(0.1, 0.3)  (as in the torch __init__).
    fc1_w = 0.1 + 0.5 * jax.random.normal(k1, (2 * H, H))             # (in, out)
    params["fc1_wf"] = fc1_w[:H].astype(jnp.bfloat16)
    params["fc1_wb"] = fc1_w[H:].astype(jnp.bfloat16)
    params["fc1_b"] = (0.1 + 0.5 * jax.random.normal(k2, (1, H))).astype(jnp.float32)
    params["fc2_w"] = (0.1 + 0.3 * jax.random.normal(k3, (H, num_classes))
                       ).astype(jnp.bfloat16)
    params["fc2_b"] = (0.1 + 0.3 * jax.random.normal(k4, (1, num_classes))
                       ).astype(jnp.float32)
    # BatchNorm1d eval-mode parameters / running stats (PyTorch defaults).
    params["bn_gamma"] = jnp.ones((1, H), jnp.float32)
    params["bn_beta"] = jnp.zeros((1, H), jnp.float32)
    params["bn_mean"] = jnp.zeros((1, H), jnp.float32)
    params["bn_var"] = jnp.ones((1, H), jnp.float32)
    return params


if __name__ == "__main__":
    INPUT_SIZE = 16
    HIDDEN_SIZE = 32
    NUM_LAYERS = 2
    NUM_CLASSES = 8
    BATCH = 4
    SEQ = 8

    key = jax.random.PRNGKey(0)
    key, kx, kp = jax.random.split(key, 3)
    x = jax.random.normal(kx, (BATCH, SEQ, INPUT_SIZE), jnp.float32)
    params = init_params(kp, INPUT_SIZE, HIDDEN_SIZE, NUM_LAYERS, NUM_CLASSES)

    fwd = jax.jit(birnn_max_forward)
    out = fwd(x, params)
    jax.block_until_ready(out)
    assert out.shape == (BATCH, NUM_CLASSES), out.shape
    print("KERNEL_OK")
</pallas_src>

<mosaic_0001>
module attributes {stable_mosaic.version = 11 : i64} {
  func.func @_birnn_max_fused_kernel(%arg0: memref<64x16xbf16, #tpu.memory_space<vmem>>, %arg1: memref<16x256xbf16, #tpu.memory_space<vmem>>, %arg2: memref<32x256xbf16, #tpu.memory_space<vmem>>, %arg3: memref<1x256xf32, #tpu.memory_space<vmem>>, %arg4: memref<32x256xbf16, #tpu.memory_space<vmem>>, %arg5: memref<32x256xbf16, #tpu.memory_space<vmem>>, %arg6: memref<32x256xbf16, #tpu.memory_space<vmem>>, %arg7: memref<1x256xf32, #tpu.memory_space<vmem>>, %arg8: memref<32x32xbf16, #tpu.memory_space<vmem>>, %arg9: memref<32x32xbf16, #tpu.memory_space<vmem>>, %arg10: memref<1x32xf32, #tpu.memory_space<vmem>>, %arg11: memref<1x32xf32, #tpu.memory_space<vmem>>, %arg12: memref<1x32xf32, #tpu.memory_space<vmem>>, %arg13: memref<1x32xf32, #tpu.memory_space<vmem>>, %arg14: memref<1x32xf32, #tpu.memory_space<vmem>>, %arg15: memref<32x8xbf16, #tpu.memory_space<vmem>>, %arg16: memref<1x8xf32, #tpu.memory_space<vmem>>, %arg17: memref<8x8xf32, #tpu.memory_space<vmem>>, %arg18: memref<64x256xf32, #tpu.memory_space<vmem>>, %arg19: memref<64x32xf32, #tpu.memory_space<vmem>>, %arg20: memref<64x32xf32, #tpu.memory_space<vmem>>) attributes {dimension_semantics = [], scalar_prefetch = 0 : i64, scratch_operands = 3 : i64, tpu.core_type = #tpu.core_type<tc>} {
    %0 = tpu.iota {dimensions = array<i32: 0>} : vector<16x128xi32>
    %c8_i32 = arith.constant 8 : i32
    %1 = vector.broadcast %c8_i32 : i32 to vector<16x128xi32>
    %2 = arith.cmpi slt, %0, %1 : vector<16x128xi32>
    %c0 = arith.constant 0 : index
    %c0_0 = arith.constant 0 : index
    %3 = vector.load %arg0[%c0, %c0_0] : memref<64x16xbf16, #tpu.memory_space<vmem>>, vector<64x16xbf16>
    %c0_1 = arith.constant 0 : index
    %c0_2 = arith.constant 0 : index
    %4 = vector.load %arg1[%c0_1, %c0_2] : memref<16x256xbf16, #tpu.memory_space<vmem>>, vector<16x256xbf16>
    %cst = arith.constant dense<0.000000e+00> : vector<64x256xf32>
    %5 = tpu.matmul %3, %4, %cst {dimension_numbers = #tpu.dot_dimension_numbers<[1], [0], [0], [1], [0, 0, 1, 1], [], []>} : vector<64x16xbf16>, vector<16x256xbf16>, vector<64x256xf32> -> vector<64x256xf32>
    %c0_3 = arith.constant 0 : index
    %c0_4 = arith.constant 0 : index
    %6 = vector.load %arg3[%c0_3, %c0_4] : memref<1x256xf32, #tpu.memory_space<vmem>>, vector<1x256xf32>
    %7 = vector.broadcast %6 : vector<1x256xf32> to vector<64x256xf32>
    %8 = arith.addf %5, %7 : vector<64x256xf32>
    %c0_5 = arith.constant 0 : index
    %c0_6 = arith.constant 0 : index
    %9 = vector.load %arg18[%c0_5, %c0_6] : memref<64x256xf32, #tpu.memory_space<vmem>>, vector<64x256xf32>
    tpu.vector_store %arg18[%c0_5, %c0_6], %8 {strides = array<i32>} : memref<64x256xf32, #tpu.memory_space<vmem>>, vector<64x256xf32>,
    %c0_7 = arith.constant 0 : index
    %c0_8 = arith.constant 0 : index
    %10 = vector.load %arg2[%c0_7, %c0_8] : memref<32x256xbf16, #tpu.memory_space<vmem>>, vector<32x256xbf16>
    %cst_9 = arith.constant 0.000000e+00 : bf16
    %11 = vector.broadcast %cst_9 : bf16 to vector<16x32xbf16>
    %cst_10 = arith.constant 0.000000e+00 : f32
    %12 = vector.broadcast %cst_10 : f32 to vector<16x32xf32>
    %c0_i32 = arith.constant 0 : i32
    %c7_i32 = arith.constant 7 : i32
    %13 = arith.subi %c7_i32, %c0_i32 : i32
    %c8_i32_11 = arith.constant 8 : i32
    %14 = arith.muli %c0_i32, %c8_i32_11 : i32
    %15 = tpu.assume_multiple %14, 8 : i32
    %c8_i32_12 = arith.constant 8 : i32
    %16 = arith.muli %13, %c8_i32_12 : i32
    %17 = tpu.assume_multiple %16, 8 : i32
    %cst_13 = arith.constant dense<0.000000e+00> : vector<16x256xf32>
    %18 = tpu.matmul %11, %10, %cst_13 {dimension_numbers = #tpu.dot_dimension_numbers<[1], [0], [0], [1], [0, 0, 1, 1], [], []>} : vector<16x32xbf16>, vector<32x256xbf16>, vector<16x256xf32> -> vector<16x256xf32>
    %19 = arith.index_cast %15 : i32 to index
    %c0_14 = arith.constant 0 : index
    %20 = vector.load %arg18[%19, %c0_14] : memref<64x256xf32, #tpu.memory_space<vmem>>, vector<8x128xf32>
    %21 = arith.index_cast %17 : i32 to index
    %c128 = arith.constant 128 : index
    %22 = vector.load %arg18[%21, %c128] : memref<64x256xf32, #tpu.memory_space<vmem>>, vector<8x128xf32>
    %23 = tpu.concatenate %20, %22 in 0 : vector<8x128xf32>, vector<8x128xf32> -> vector<16x128xf32>
    %24 = vector.extract_strided_slice %18 {offsets = [0, 0], sizes = [16, 128], strides = [1, 1]} : vector<16x256xf32> to vector<16x128xf32>
    %25 = vector.extract_strided_slice %18 {offsets = [0, 128], sizes = [16, 128], strides = [1, 1]} : vector<16x256xf32> to vector<16x128xf32>
    %26 = arith.select %2, %24, %25 : vector<16x128xi1>, vector<16x128xf32>
    %27 = arith.addf %23, %26 : vector<16x128xf32>
    %28 = arith.negf %27 : vector<16x128xf32>
    %29 = math.exp %28 : vector<16x128xf32>
    %cst_15 = arith.constant 1.000000e+00 : f32
    %30 = vector.broadcast %cst_15 : f32 to vector<16x128xf32>
    %31 = arith.addf %30, %29 : vector<16x128xf32>
    %32 = arith.divf %30, %31 : vector<16x128xf32>
    %33 = math.tanh %27 : vector<16x128xf32>
    %34 = vector.extract_strided_slice %32 {offsets = [0, 0], sizes = [16, 32], strides = [1, 1]} : vector<16x128xf32> to vector<16x32xf32>
    %35 = vector.extract_strided_slice %32 {offsets = [0, 32], sizes = [16, 32], strides = [1, 1]} : vector<16x128xf32> to vector<16x32xf32>
    %36 = vector.extract_strided_slice %33 {offsets = [0, 64], sizes = [16, 32], strides = [1, 1]} : vector<16x128xf32> to vector<16x32xf32>
    %37 = vector.extract_strided_slice %32 {offsets = [0, 96], sizes = [16, 32], strides = [1, 1]} : vector<16x128xf32> to vector<16x32xf32>
    %38 = arith.mulf %35, %12 : vector<16x32xf32>
    %39 = arith.mulf %34, %36 : vector<16x32xf32>
    %40 = arith.addf %38, %39 : vector<16x32xf32>
    %41 = math.tanh %40 : vector<16x32xf32>
    %42 = arith.mulf %37, %41 : vector<16x32xf32>
    %43 = arith.truncf %42 : vector<16x32xf32> to vector<16x32xbf16>
    %44 = vector.extract_strided_slice %42 {offsets = [0, 0], sizes = [8, 32], strides = [1, 1]} : vector<16x32xf32> to vector<8x32xf32>
    %45 = arith.index_cast %15 : i32 to index
    %c0_16 = arith.constant 0 : index
    %46 = vector.load %arg19[%45, %c0_16] : memref<64x32xf32, #tpu.memory_space<vmem>>, vector<8x32xf32>
    tpu.vector_store %arg19[%45, %c0_16], %44 {strides = array<i32>} : memref<64x32xf32, #tpu.memory_space<vmem>>, vector<8x32xf32>,
    %47 = vector.extract_strided_slice %42 {offsets = [8, 0], sizes = [8, 32], strides = [1, 1]} : vector<16x32xf32> to vector<8x32xf32>
    %48 = arith.index_cast %17 : i32 to index
    %c0_17 = arith.constant 0 : index
    %49 = vector.load %arg20[%48, %c0_17] : memref<64x32xf32, #tpu.memory_space<vmem>>, vector<8x32xf32>
    tpu.vector_store %arg20[%48, %c0_17], %47 {strides = array<i32>} : memref<64x32xf32, #tpu.memory_space<vmem>>, vector<8x32xf32>,
    %c1_i32 = arith.constant 1 : i32
    %c7_i32_18 = arith.constant 7 : i32
    %50 = arith.subi %c7_i32_18, %c1_i32 : i32
    %c8_i32_19 = arith.constant 8 : i32
    %51 = arith.muli %c1_i32, %c8_i32_19 : i32
    %52 = tpu.assume_multiple %51, 8 : i32
    %c8_i32_20 = arith.constant 8 : i32
    %53 = arith.muli %50, %c8_i32_20 : i32
    %54 = tpu.assume_multiple %53, 8 : i32
    %cst_21 = arith.constant dense<0.000000e+00> : vector<16x256xf32>
    %55 = tpu.matmul %43, %10, %cst_21 {dimension_numbers = #tpu.dot_dimension_numbers<[1], [0], [0], [1], [0, 0, 1, 1], [], []>} : vector<16x32xbf16>, vector<32x256xbf16>, vector<16x256xf32> -> vector<16x256xf32>
    %56 = arith.index_cast %52 : i32 to index
    %c0_22 = arith.constant 0 : index
    %57 = vector.load %arg18[%56, %c0_22] : memref<64x256xf32, #tpu.memory_space<vmem>>, vector<8x128xf32>
    %58 = arith.index_cast %54 : i32 to index
    %c128_23 = arith.constant 128 : index
    %59 = vector.load %arg18[%58, %c128_23] : memref<64x256xf32, #tpu.memory_space<vmem>>, vector<8x128xf32>
    %60 = tpu.concatenate %57, %59 in 0 : vector<8x128xf32>, vector<8x128xf32> -> vector<16x128xf32>
    %61 = vector.extract_strided_slice %55 {offsets = [0, 0], sizes = [16, 128], strides = [1, 1]} : vector<16x256xf32> to vector<16x128xf32>
    %62 = vector.extract_strided_slice %55 {offsets = [0, 128], sizes = [16, 128], strides = [1, 1]} : vector<16x256xf32> to vector<16x128xf32>
    %63 = arith.select %2, %61, %62 : vector<16x128xi1>, vector<16x128xf32>
    %64 = arith.addf %60, %63 : vector<16x128xf32>
    %65 = arith.negf %64 : vector<16x128xf32>
    %66 = math.exp %65 : vector<16x128xf32>
    %cst_24 = arith.constant 1.000000e+00 : f32
    %67 = vector.broadcast %cst_24 : f32 to vector<16x128xf32>
    %68 = arith.addf %67, %66 : vector<16x128xf32>
    %69 = arith.divf %67, %68 : vector<16x128xf32>
    %70 = math.tanh %64 : vector<16x128xf32>
    %71 = vector.extract_strided_slice %69 {offsets = [0, 0], sizes = [16, 32], strides = [1, 1]} : vector<16x128xf32> to vector<16x32xf32>
    %72 = vector.extract_strided_slice %69 {offsets = [0, 32], sizes = [16, 32], strides = [1, 1]} : vector<16x128xf32> to vector<16x32xf32>
    %73 = vector.extract_strided_slice %70 {offsets = [0, 64], sizes = [16, 32], strides = [1, 1]} : vector<16x128xf32> to vector<16x32xf32>
    %74 = vector.extract_strided_slice %69 {offsets = [0, 96], sizes = [16, 32], strides = [1, 1]} : vector<16x128xf32> to vector<16x32xf32>
    %75 = arith.mulf %72, %40 : vector<16x32xf32>
    %76 = arith.mulf %71, %73 : vector<16x32xf32>
    %77 = arith.addf %75, %76 : vector<16x32xf32>
    %78 = math.tanh %77 : vector<16x32xf32>
    %79 = arith.mulf %74, %78 : vector<16x32xf32>
    %80 = arith.truncf %79 : vector<16x32xf32> to vector<16x32xbf16>
    %81 = vector.extract_strided_slice %79 {offsets = [0, 0], sizes = [8, 32], strides = [1, 1]} : vector<16x32xf32> to vector<8x32xf32>
    %82 = arith.index_cast %52 : i32 to index
    %c0_25 = arith.constant 0 : index
    %83 = vector.load %arg19[%82, %c0_25] : memref<64x32xf32, #tpu.memory_space<vmem>>, vector<8x32xf32>
    tpu.vector_store %arg19[%82, %c0_25], %81 {strides = array<i32>} : memref<64x32xf32, #tpu.memory_space<vmem>>, vector<8x32xf32>,
    %84 = vector.extract_strided_slice %79 {offsets = [8, 0], sizes = [8, 32], strides = [1, 1]} : vector<16x32xf32> to vector<8x32xf32>
    %85 = arith.index_cast %54 : i32 to index
    %c0_26 = arith.constant 0 : index
    %86 = vector.load %arg20[%85, %c0_26] : memref<64x32xf32, #tpu.memory_space<vmem>>, vector<8x32xf32>
    tpu.vector_store %arg20[%85, %c0_26], %84 {strides = array<i32>} : memref<64x32xf32, #tpu.memory_space<vmem>>, vector<8x32xf32>,
    %c2_i32 = arith.constant 2 : i32
    %c7_i32_27 = arith.constant 7 : i32
    %87 = arith.subi %c7_i32_27, %c2_i32 : i32
    %c8_i32_28 = arith.constant 8 : i32
    %88 = arith.muli %c2_i32, %c8_i32_28 : i32
    %89 = tpu.assume_multiple %88, 8 : i32
    %c8_i32_29 = arith.constant 8 : i32
    %90 = arith.muli %87, %c8_i32_29 : i32
    %91 = tpu.assume_multiple %90, 8 : i32
    %cst_30 = arith.constant dense<0.000000e+00> : vector<16x256xf32>
    %92 = tpu.matmul %80, %10, %cst_30 {dimension_numbers = #tpu.dot_dimension_numbers<[1], [0], [0], [1], [0, 0, 1, 1], [], []>} : vector<16x32xbf16>, vector<32x256xbf16>, vector<16x256xf32> -> vector<16x256xf32>
    %93 = arith.index_cast %89 : i32 to index
    %c0_31 = arith.constant 0 : index
    %94 = vector.load %arg18[%93, %c0_31] : memref<64x256xf32, #tpu.memory_space<vmem>>, vector<8x128xf32>
    %95 = arith.index_cast %91 : i32 to index
    %c128_32 = arith.constant 128 : index
    %96 = vector.load %arg18[%95, %c128_32] : memref<64x256xf32, #tpu.memory_space<vmem>>, vector<8x128xf32>
    %97 = tpu.concatenate %94, %96 in 0 : vector<8x128xf32>, vector<8x128xf32> -> vector<16x128xf32>
    %98 = vector.extract_strided_slice %92 {offsets = [0, 0], sizes = [16, 128], strides = [1, 1]} : vector<16x256xf32> to vector<16x128xf32>
    %99 = vector.extract_strided_slice %92 {offsets = [0, 128], sizes = [16, 128], strides = [1, 1]} : vector<16x256xf32> to vector<16x128xf32>
    %100 = arith.select %2, %98, %99 : vector<16x128xi1>, vector<16x128xf32>
    %101 = arith.addf %97, %100 : vector<16x128xf32>
    %102 = arith.negf %101 : vector<16x128xf32>
    %103 = math.exp %102 : vector<16x128xf32>
    %cst_33 = arith.constant 1.000000e+00 : f32
    %104 = vector.broadcast %cst_33 : f32 to vector<16x128xf32>
    %105 = arith.addf %104, %103 : vector<16x128xf32>
    %106 = arith.divf %104, %105 : vector<16x128xf32>
    %107 = math.tanh %101 : vector<16x128xf32>
    %108 = vector.extract_strided_slice %106 {offsets = [0, 0], sizes = [16, 32], strides = [1, 1]} : vector<16x128xf32> to vector<16x32xf32>
    %109 = vector.extract_strided_slice %106 {offsets = [0, 32], sizes = [16, 32], strides = [1, 1]} : vector<16x128xf32> to vector<16x32xf32>
    %110 = vector.extract_strided_slice %107 {offsets = [0, 64], sizes = [16, 32], strides = [1, 1]} : vector<16x128xf32> to vector<16x32xf32>
    %111 = vector.extract_strided_slice %106 {offsets = [0, 96], sizes = [16, 32], strides = [1, 1]} : vector<16x128xf32> to vector<16x32xf32>
    %112 = arith.mulf %109, %77 : vector<16x32xf32>
    %113 = arith.mulf %108, %110 : vector<16x32xf32>
    %114 = arith.addf %112, %113 : vector<16x32xf32>
    %115 = math.tanh %114 : vector<16x32xf32>
    %116 = arith.mulf %111, %115 : vector<16x32xf32>
    %117 = arith.truncf %116 : vector<16x32xf32> to vector<16x32xbf16>
    %118 = vector.extract_strided_slice %116 {offsets = [0, 0], sizes = [8, 32], strides = [1, 1]} : vector<16x32xf32> to vector<8x32xf32>
    %119 = arith.index_cast %89 : i32 to index
    %c0_34 = arith.constant 0 : index
    %120 = vector.load %arg19[%119, %c0_34] : memref<64x32xf32, #tpu.memory_space<vmem>>, vector<8x32xf32>
    tpu.vector_store %arg19[%119, %c0_34], %118 {strides = array<i32>} : memref<64x32xf32, #tpu.memory_space<vmem>>, vector<8x32xf32>,
    %121 = vector.extract_strided_slice %116 {offsets = [8, 0], sizes = [8, 32], strides = [1, 1]} : vector<16x32xf32> to vector<8x32xf32>
    %122 = arith.index_cast %91 : i32 to index
    %c0_35 = arith.constant 0 : index
    %123 = vector.load %arg20[%122, %c0_35] : memref<64x32xf32, #tpu.memory_space<vmem>>, vector<8x32xf32>
    tpu.vector_store %arg20[%122, %c0_35], %121 {strides = array<i32>} : memref<64x32xf32, #tpu.memory_space<vmem>>, vector<8x32xf32>,
    %c3_i32 = arith.constant 3 : i32
    %c7_i32_36 = arith.constant 7 : i32
    %124 = arith.subi %c7_i32_36, %c3_i32 : i32
    %c8_i32_37 = arith.constant 8 : i32
    %125 = arith.muli %c3_i32, %c8_i32_37 : i32
    %126 = tpu.assume_multiple %125, 8 : i32
    %c8_i32_38 = arith.constant 8 : i32
    %127 = arith.muli %124, %c8_i32_38 : i32
    %128 = tpu.assume_multiple %127, 8 : i32
    %cst_39 = arith.constant dense<0.000000e+00> : vector<16x256xf32>
    %129 = tpu.matmul %117, %10, %cst_39 {dimension_numbers = #tpu.dot_dimension_numbers<[1], [0], [0], [1], [0, 0, 1, 1], [], []>} : vector<16x32xbf16>, vector<32x256xbf16>, vector<16x256xf32> -> vector<16x256xf32>
    %130 = arith.index_cast %126 : i32 to index
    %c0_40 = arith.constant 0 : index
    %131 = vector.load %arg18[%130, %c0_40] : memref<64x256xf32, #tpu.memory_space<vmem>>, vector<8x128xf32>
    %132 = arith.index_cast %128 : i32 to index
    %c128_41 = arith.constant 128 : index
    %133 = vector.load %arg18[%132, %c128_41] : memref<64x256xf32, #tpu.memory_space<vmem>>, vector<8x128xf32>
    %134 = tpu.concatenate %131, %133 in 0 : vector<8x128xf32>, vector<8x128xf32> -> vector<16x128xf32>
    %135 = vector.extract_strided_slice %129 {offsets = [0, 0], sizes = [16, 128], strides = [1, 1]} : vector<16x256xf32> to vector<16x128xf32>
    %136 = vector.extract_strided_slice %129 {offsets = [0, 128], sizes = [16, 128], strides = [1, 1]} : vector<16x256xf32> to vector<16x128xf32>
    %137 = arith.select %2, %135, %136 : vector<16x128xi1>, vector<16x128xf32>
    %138 = arith.addf %134, %137 : vector<16x128xf32>
    %139 = arith.negf %138 : vector<16x128xf32>
    %140 = math.exp %139 : vector<16x128xf32>
    %cst_42 = arith.constant 1.000000e+00 : f32
    %141 = vector.broadcast %cst_42 : f32 to vector<16x128xf32>
    %142 = arith.addf %141, %140 : vector<16x128xf32>
    %143 = arith.divf %141, %142 : vector<16x128xf32>
    %144 = math.tanh %138 : vector<16x128xf32>
    %145 = vector.extract_strided_slice %143 {offsets = [0, 0], sizes = [16, 32], strides = [1, 1]} : vector<16x128xf32> to vector<16x32xf32>
    %146 = vector.extract_strided_slice %143 {offsets = [0, 32], sizes = [16, 32], strides = [1, 1]} : vector<16x128xf32> to vector<16x32xf32>
    %147 = vector.extract_strided_slice %144 {offsets = [0, 64], sizes = [16, 32], strides = [1, 1]} : vector<16x128xf32> to vector<16x32xf32>
    %148 = vector.extract_strided_slice %143 {offsets = [0, 96], sizes = [16, 32], strides = [1, 1]} : vector<16x128xf32> to vector<16x32xf32>
    %149 = arith.mulf %146, %114 : vector<16x32xf32>
    %150 = arith.mulf %145, %147 : vector<16x32xf32>
    %151 = arith.addf %149, %150 : vector<16x32xf32>
    %152 = math.tanh %151 : vector<16x32xf32>
    %153 = arith.mulf %148, %152 : vector<16x32xf32>
    %154 = arith.truncf %153 : vector<16x32xf32> to vector<16x32xbf16>
    %155 = vector.extract_strided_slice %153 {offsets = [0, 0], sizes = [8, 32], strides = [1, 1]} : vector<16x32xf32> to vector<8x32xf32>
    %156 = arith.index_cast %126 : i32 to index
    %c0_43 = arith.constant 0 : index
    %157 = vector.load %arg19[%156, %c0_43] : memref<64x32xf32, #tpu.memory_space<vmem>>, vector<8x32xf32>
    tpu.vector_store %arg19[%156, %c0_43], %155 {strides = array<i32>} : memref<64x32xf32, #tpu.memory_space<vmem>>, vector<8x32xf32>,
    %158 = vector.extract_strided_slice %153 {offsets = [8, 0], sizes = [8, 32], strides = [1, 1]} : vector<16x32xf32> to vector<8x32xf32>
    %159 = arith.index_cast %128 : i32 to index
    %c0_44 = arith.constant 0 : index
    %160 = vector.load %arg20[%159, %c0_44] : memref<64x32xf32, #tpu.memory_space<vmem>>, vector<8x32xf32>
    tpu.vector_store %arg20[%159, %c0_44], %158 {strides = array<i32>} : memref<64x32xf32, #tpu.memory_space<vmem>>, vector<8x32xf32>,
    %c4_i32 = arith.constant 4 : i32
    %c7_i32_45 = arith.constant 7 : i32
    %161 = arith.subi %c7_i32_45, %c4_i32 : i32
    %c8_i32_46 = arith.constant 8 : i32
    %162 = arith.muli %c4_i32, %c8_i32_46 : i32
    %163 = tpu.assume_multiple %162, 8 : i32
    %c8_i32_47 = arith.constant 8 : i32
    %164 = arith.muli %161, %c8_i32_47 : i32
    %165 = tpu.assume_multiple %164, 8 : i32
    %cst_48 = arith.constant dense<0.000000e+00> : vector<16x256xf32>
    %166 = tpu.matmul %154, %10, %cst_48 {dimension_numbers = #tpu.dot_dimension_numbers<[1], [0], [0], [1], [0, 0, 1, 1], [], []>} : vector<16x32xbf16>, vector<32x256xbf16>, vector<16x256xf32> -> vector<16x256xf32>
    %167 = arith.index_cast %163 : i32 to index
    %c0_49 = arith.constant 0 : index
    %168 = vector.load %arg18[%167, %c0_49] : memref<64x256xf32, #tpu.memory_space<vmem>>, vector<8x128xf32>
    %169 = arith.index_cast %165 : i32 to index
    %c128_50 = arith.constant 128 : index
    %170 = vector.load %arg18[%169, %c128_50] : memref<64x256xf32, #tpu.memory_space<vmem>>, vector<8x128xf32>
    %171 = tpu.concatenate %168, %170 in 0 : vector<8x128xf32>, vector<8x128xf32> -> vector<16x128xf32>
    %172 = vector.extract_strided_slice %166 {offsets = [0, 0], sizes = [16, 128], strides = [1, 1]} : vector<16x256xf32> to vector<16x128xf32>
    %173 = vector.extract_strided_slice %166 {offsets = [0, 128], sizes = [16, 128], strides = [1, 1]} : vector<16x256xf32> to vector<16x128xf32>
    %174 = arith.select %2, %172, %173 : vector<16x128xi1>, vector<16x128xf32>
    %175 = arith.addf %171, %174 : vector<16x128xf32>
    %176 = arith.negf %175 : vector<16x128xf32>
    %177 = math.exp %176 : vector<16x128xf32>
    %cst_51 = arith.constant 1.000000e+00 : f32
    %178 = vector.broadcast %cst_51 : f32 to vector<16x128xf32>
    %179 = arith.addf %178, %177 : vector<16x128xf32>
    %180 = arith.divf %178, %179 : vector<16x128xf32>
    %181 = math.tanh %175 : vector<16x128xf32>
    %182 = vector.extract_strided_slice %180 {offsets = [0, 0], sizes = [16, 32], strides = [1, 1]} : vector<16x128xf32> to vector<16x32xf32>
    %183 = vector.extract_strided_slice %180 {offsets = [0, 32], sizes = [16, 32], strides = [1, 1]} : vector<16x128xf32> to vector<16x32xf32>
    %184 = vector.extract_strided_slice %181 {offsets = [0, 64], sizes = [16, 32], strides = [1, 1]} : vector<16x128xf32> to vector<16x32xf32>
    %185 = vector.extract_strided_slice %180 {offsets = [0, 96], sizes = [16, 32], strides = [1, 1]} : vector<16x128xf32> to vector<16x32xf32>
    %186 = arith.mulf %183, %151 : vector<16x32xf32>
    %187 = arith.mulf %182, %184 : vector<16x32xf32>
    %188 = arith.addf %186, %187 : vector<16x32xf32>
    %189 = math.tanh %188 : vector<16x32xf32>
    %190 = arith.mulf %185, %189 : vector<16x32xf32>
    %191 = arith.truncf %190 : vector<16x32xf32> to vector<16x32xbf16>
    %192 = vector.extract_strided_slice %190 {offsets = [0, 0], sizes = [8, 32], strides = [1, 1]} : vector<16x32xf32> to vector<8x32xf32>
    %193 = arith.index_cast %163 : i32 to index
    %c0_52 = arith.constant 0 : index
    %194 = vector.load %arg19[%193, %c0_52] : memref<64x32xf32, #tpu.memory_space<vmem>>, vector<8x32xf32>
    tpu.vector_store %arg19[%193, %c0_52], %192 {strides = array<i32>} : memref<64x32xf32, #tpu.memory_space<vmem>>, vector<8x32xf32>,
    %195 = vector.extract_strided_slice %190 {offsets = [8, 0], sizes = [8, 32], strides = [1, 1]} : vector<16x32xf32> to vector<8x32xf32>
    %196 = arith.index_cast %165 : i32 to index
    %c0_53 = arith.constant 0 : index
    %197 = vector.load %arg20[%196, %c0_53] : memref<64x32xf32, #tpu.memory_space<vmem>>, vector<8x32xf32>
    tpu.vector_store %arg20[%196, %c0_53], %195 {strides = array<i32>} : memref<64x32xf32, #tpu.memory_space<vmem>>, vector<8x32xf32>,
    %c5_i32 = arith.constant 5 : i32
    %c7_i32_54 = arith.constant 7 : i32
    %198 = arith.subi %c7_i32_54, %c5_i32 : i32
    %c8_i32_55 = arith.constant 8 : i32
    %199 = arith.muli %c5_i32, %c8_i32_55 : i32
    %200 = tpu.assume_multiple %199, 8 : i32
    %c8_i32_56 = arith.constant 8 : i32
    %201 = arith.muli %198, %c8_i32_56 : i32
    %202 = tpu.assume_multiple %201, 8 : i32
    %cst_57 = arith.constant dense<0.000000e+00> : vector<16x256xf32>
    %203 = tpu.matmul %191, %10, %cst_57 {dimension_numbers = #tpu.dot_dimension_numbers<[1], [0], [0], [1], [0, 0, 1, 1], [], []>} : vector<16x32xbf16>, vector<32x256xbf16>, vector<16x256xf32> -> vector<16x256xf32>
    %204 = arith.index_cast %200 : i32 to index
    %c0_58 = arith.constant 0 : index
    %205 = vector.load %arg18[%204, %c0_58] : memref<64x256xf32, #tpu.memory_space<vmem>>, vector<8x128xf32>
    %206 = arith.index_cast %202 : i32 to index
    %c128_59 = arith.constant 128 : index
    %207 = vector.load %arg18[%206, %c128_59] : memref<64x256xf32, #tpu.memory_space<vmem>>, vector<8x128xf32>
    %208 = tpu.concatenate %205, %207 in 0 : vector<8x128xf32>, vector<8x128xf32> -> vector<16x128xf32>
    %209 = vector.extract_strided_slice %203 {offsets = [0, 0], sizes = [16, 128], strides = [1, 1]} : vector<16x256xf32> to vector<16x128xf32>
    %210 = vector.extract_strided_slice %203 {offsets = [0, 128], sizes = [16, 128], strides = [1, 1]} : vector<16x256xf32> to vector<16x128xf32>
    %211 = arith.select %2, %209, %210 : vector<16x128xi1>, vector<16x128xf32>
    %212 = arith.addf %208, %211 : vector<16x128xf32>
    %213 = arith.negf %212 : vector<16x128xf32>
    %214 = math.exp %213 : vector<16x128xf32>
    %cst_60 = arith.constant 1.000000e+00 : f32
    %215 = vector.broadcast %cst_60 : f32 to vector<16x128xf32>
    %216 = arith.addf %215, %214 : vector<16x128xf32>
    %217 = arith.divf %215, %216 : vector<16x128xf32>
    %218 = math.tanh %212 : vector<16x128xf32>
    %219 = vector.extract_strided_slice %217 {offsets = [0, 0], sizes = [16, 32], strides = [1, 1]} : vector<16x128xf32> to vector<16x32xf32>
    %220 = vector.extract_strided_slice %217 {offsets = [0, 32], sizes = [16, 32], strides = [1, 1]} : vector<16x128xf32> to vector<16x32xf32>
    %221 = vector.extract_strided_slice %218 {offsets = [0, 64], sizes = [16, 32], strides = [1, 1]} : vector<16x128xf32> to vector<16x32xf32>
    %222 = vector.extract_strided_slice %217 {offsets = [0, 96], sizes = [16, 32], strides = [1, 1]} : vector<16x128xf32> to vector<16x32xf32>
    %223 = arith.mulf %220, %188 : vector<16x32xf32>
    %224 = arith.mulf %219, %221 : vector<16x32xf32>
    %225 = arith.addf %223, %224 : vector<16x32xf32>
    %226 = math.tanh %225 : vector<16x32xf32>
    %227 = arith.mulf %222, %226 : vector<16x32xf32>
    %228 = arith.truncf %227 : vector<16x32xf32> to vector<16x32xbf16>
    %229 = vector.extract_strided_slice %227 {offsets = [0, 0], sizes = [8, 32], strides = [1, 1]} : vector<16x32xf32> to vector<8x32xf32>
    %230 = arith.index_cast %200 : i32 to index
    %c0_61 = arith.constant 0 : index
    %231 = vector.load %arg19[%230, %c0_61] : memref<64x32xf32, #tpu.memory_space<vmem>>, vector<8x32xf32>
    tpu.vector_store %arg19[%230, %c0_61], %229 {strides = array<i32>} : memref<64x32xf32, #tpu.memory_space<vmem>>, vector<8x32xf32>,
    %232 = vector.extract_strided_slice %227 {offsets = [8, 0], sizes = [8, 32], strides = [1, 1]} : vector<16x32xf32> to vector<8x32xf32>
    %233 = arith.index_cast %202 : i32 to index
    %c0_62 = arith.constant 0 : index
    %234 = vector.load %arg20[%233, %c0_62] : memref<64x32xf32, #tpu.memory_space<vmem>>, vector<8x32xf32>
    tpu.vector_store %arg20[%233, %c0_62], %232 {strides = array<i32>} : memref<64x32xf32, #tpu.memory_space<vmem>>, vector<8x32xf32>,
    %c6_i32 = arith.constant 6 : i32
    %c7_i32_63 = arith.constant 7 : i32
    %235 = arith.subi %c7_i32_63, %c6_i32 : i32
    %c8_i32_64 = arith.constant 8 : i32
    %236 = arith.muli %c6_i32, %c8_i32_64 : i32
    %237 = tpu.assume_multiple %236, 8 : i32
    %c8_i32_65 = arith.constant 8 : i32
    %238 = arith.muli %235, %c8_i32_65 : i32
    %239 = tpu.assume_multiple %238, 8 : i32
    %cst_66 = arith.constant dense<0.000000e+00> : vector<16x256xf32>
    %240 = tpu.matmul %228, %10, %cst_66 {dimension_numbers = #tpu.dot_dimension_numbers<[1], [0], [0], [1], [0, 0, 1, 1], [], []>} : vector<16x32xbf16>, vector<32x256xbf16>, vector<16x256xf32> -> vector<16x256xf32>
    %241 = arith.index_cast %237 : i32 to index
    %c0_67 = arith.constant 0 : index
    %242 = vector.load %arg18[%241, %c0_67] : memref<64x256xf32, #tpu.memory_space<vmem>>, vector<8x128xf32>
    %243 = arith.index_cast %239 : i32 to index
    %c128_68 = arith.constant 128 : index
    %244 = vector.load %arg18[%243, %c128_68] : memref<64x256xf32, #tpu.memory_space<vmem>>, vector<8x128xf32>
    %245 = tpu.concatenate %242, %244 in 0 : vector<8x128xf32>, vector<8x128xf32> -> vector<16x128xf32>
    %246 = vector.extract_strided_slice %240 {offsets = [0, 0], sizes = [16, 128], strides = [1, 1]} : vector<16x256xf32> to vector<16x128xf32>
    %247 = vector.extract_strided_slice %240 {offsets = [0, 128], sizes = [16, 128], strides = [1, 1]} : vector<16x256xf32> to vector<16x128xf32>
    %248 = arith.select %2, %246, %247 : vector<16x128xi1>, vector<16x128xf32>
    %249 = arith.addf %245, %248 : vector<16x128xf32>
    %250 = arith.negf %249 : vector<16x128xf32>
    %251 = math.exp %250 : vector<16x128xf32>
    %cst_69 = arith.constant 1.000000e+00 : f32
    %252 = vector.broadcast %cst_69 : f32 to vector<16x128xf32>
    %253 = arith.addf %252, %251 : vector<16x128xf32>
    %254 = arith.divf %252, %253 : vector<16x128xf32>
    %255 = math.tanh %249 : vector<16x128xf32>
    %256 = vector.extract_strided_slice %254 {offsets = [0, 0], sizes = [16, 32], strides = [1, 1]} : vector<16x128xf32> to vector<16x32xf32>
    %257 = vector.extract_strided_slice %254 {offsets = [0, 32], sizes = [16, 32], strides = [1, 1]} : vector<16x128xf32> to vector<16x32xf32>
    %258 = vector.extract_strided_slice %255 {offsets = [0, 64], sizes = [16, 32], strides = [1, 1]} : vector<16x128xf32> to vector<16x32xf32>
    %259 = vector.extract_strided_slice %254 {offsets = [0, 96], sizes = [16, 32], strides = [1, 1]} : vector<16x128xf32> to vector<16x32xf32>
    %260 = arith.mulf %257, %225 : vector<16x32xf32>
    %261 = arith.mulf %256, %258 : vector<16x32xf32>
    %262 = arith.addf %260, %261 : vector<16x32xf32>
    %263 = math.tanh %262 : vector<16x32xf32>
    %264 = arith.mulf %259, %263 : vector<16x32xf32>
    %265 = arith.truncf %264 : vector<16x32xf32> to vector<16x32xbf16>
    %266 = vector.extract_strided_slice %264 {offsets = [0, 0], sizes = [8, 32], strides = [1, 1]} : vector<16x32xf32> to vector<8x32xf32>
    %267 = arith.index_cast %237 : i32 to index
    %c0_70 = arith.constant 0 : index
    %268 = vector.load %arg19[%267, %c0_70] : memref<64x32xf32, #tpu.memory_space<vmem>>, vector<8x32xf32>
    tpu.vector_store %arg19[%267, %c0_70], %266 {strides = array<i32>} : memref<64x32xf32, #tpu.memory_space<vmem>>, vector<8x32xf32>,
    %269 = vector.extract_strided_slice %264 {offsets = [8, 0], sizes = [8, 32], strides = [1, 1]} : vector<16x32xf32> to vector<8x32xf32>
    %270 = arith.index_cast %239 : i32 to index
    %c0_71 = arith.constant 0 : index
    %271 = vector.load %arg20[%270, %c0_71] : memref<64x32xf32, #tpu.memory_space<vmem>>, vector<8x32xf32>
    tpu.vector_store %arg20[%270, %c0_71], %269 {strides = array<i32>} : memref<64x32xf32, #tpu.memory_space<vmem>>, vector<8x32xf32>,
    %c7_i32_72 = arith.constant 7 : i32
    %c7_i32_73 = arith.constant 7 : i32
    %272 = arith.subi %c7_i32_73, %c7_i32_72 : i32
    %c8_i32_74 = arith.constant 8 : i32
    %273 = arith.muli %c7_i32_72, %c8_i32_74 : i32
    %274 = tpu.assume_multiple %273, 8 : i32
    %c8_i32_75 = arith.constant 8 : i32
    %275 = arith.muli %272, %c8_i32_75 : i32
    %276 = tpu.assume_multiple %275, 8 : i32
    %cst_76 = arith.constant dense<0.000000e+00> : vector<16x256xf32>
    %277 = tpu.matmul %265, %10, %cst_76 {dimension_numbers = #tpu.dot_dimension_numbers<[1], [0], [0], [1], [0, 0, 1, 1], [], []>} : vector<16x32xbf16>, vector<32x256xbf16>, vector<16x256xf32> -> vector<16x256xf32>
    %278 = arith.index_cast %274 : i32 to index
    %c0_77 = arith.constant 0 : index
    %279 = vector.load %arg18[%278, %c0_77] : memref<64x256xf32, #tpu.memory_space<vmem>>, vector<8x128xf32>
    %280 = arith.index_cast %276 : i32 to index
    %c128_78 = arith.constant 128 : index
    %281 = vector.load %arg18[%280, %c128_78] : memref<64x256xf32, #tpu.memory_space<vmem>>, vector<8x128xf32>
    %282 = tpu.concatenate %279, %281 in 0 : vector<8x128xf32>, vector<8x128xf32> -> vector<16x128xf32>
    %283 = vector.extract_strided_slice %277 {offsets = [0, 0], sizes = [16, 128], strides = [1, 1]} : vector<16x256xf32> to vector<16x128xf32>
    %284 = vector.extract_strided_slice %277 {offsets = [0, 128], sizes = [16, 128], strides = [1, 1]} : vector<16x256xf32> to vector<16x128xf32>
    %285 = arith.select %2, %283, %284 : vector<16x128xi1>, vector<16x128xf32>
    %286 = arith.addf %282, %285 : vector<16x128xf32>
    %287 = arith.negf %286 : vector<16x128xf32>
    %288 = math.exp %287 : vector<16x128xf32>
    %cst_79 = arith.constant 1.000000e+00 : f32
    %289 = vector.broadcast %cst_79 : f32 to vector<16x128xf32>
    %290 = arith.addf %289, %288 : vector<16x128xf32>
    %291 = arith.divf %289, %290 : vector<16x128xf32>
    %292 = math.tanh %286 : vector<16x128xf32>
    %293 = vector.extract_strided_slice %291 {offsets = [0, 0], sizes = [16, 32], strides = [1, 1]} : vector<16x128xf32> to vector<16x32xf32>
    %294 = vector.extract_strided_slice %291 {offsets = [0, 32], sizes = [16, 32], strides = [1, 1]} : vector<16x128xf32> to vector<16x32xf32>
    %295 = vector.extract_strided_slice %292 {offsets = [0, 64], sizes = [16, 32], strides = [1, 1]} : vector<16x128xf32> to vector<16x32xf32>
    %296 = vector.extract_strided_slice %291 {offsets = [0, 96], sizes = [16, 32], strides = [1, 1]} : vector<16x128xf32> to vector<16x32xf32>
    %297 = arith.mulf %294, %262 : vector<16x32xf32>
    %298 = arith.mulf %293, %295 : vector<16x32xf32>
    %299 = arith.addf %297, %298 : vector<16x32xf32>
    %300 = math.tanh %299 : vector<16x32xf32>
    %301 = arith.mulf %296, %300 : vector<16x32xf32>
    %302 = arith.truncf %301 : vector<16x32xf32> to vector<16x32xbf16>
    %303 = vector.extract_strided_slice %301 {offsets = [0, 0], sizes = [8, 32], strides = [1, 1]} : vector<16x32xf32> to vector<8x32xf32>
    %304 = arith.index_cast %274 : i32 to index
    %c0_80 = arith.constant 0 : index
    %305 = vector.load %arg19[%304, %c0_80] : memref<64x32xf32, #tpu.memory_space<vmem>>, vector<8x32xf32>
    tpu.vector_store %arg19[%304, %c0_80], %303 {strides = array<i32>} : memref<64x32xf32, #tpu.memory_space<vmem>>, vector<8x32xf32>,
    %306 = vector.extract_strided_slice %301 {offsets = [8, 0], sizes = [8, 32], strides = [1, 1]} : vector<16x32xf32> to vector<8x32xf32>
    %307 = arith.index_cast %276 : i32 to index
    %c0_81 = arith.constant 0 : index
    %308 = vector.load %arg20[%307, %c0_81] : memref<64x32xf32, #tpu.memory_space<vmem>>, vector<8x32xf32>
    tpu.vector_store %arg20[%307, %c0_81], %306 {strides = array<i32>} : memref<64x32xf32, #tpu.memory_space<vmem>>, vector<8x32xf32>,
    %c8_i32_82 = arith.constant 8 : i32
    %c0_83 = arith.constant 0 : index
    %c0_84 = arith.constant 0 : index
    %309 = vector.load %arg19[%c0_83, %c0_84] : memref<64x32xf32, #tpu.memory_space<vmem>>, vector<64x32xf32>
    %310 = arith.truncf %309 : vector<64x32xf32> to vector<64x32xbf16>
    %c0_85 = arith.constant 0 : index
    %c0_86 = arith.constant 0 : index
    %311 = vector.load %arg20[%c0_85, %c0_86] : memref<64x32xf32, #tpu.memory_space<vmem>>, vector<64x32xf32>
    %312 = arith.truncf %311 : vector<64x32xf32> to vector<64x32xbf16>
    %c0_87 = arith.constant 0 : index
    %c0_88 = arith.constant 0 : index
    %313 = vector.load %arg4[%c0_87, %c0_88] : memref<32x256xbf16, #tpu.memory_space<vmem>>, vector<32x256xbf16>
    %cst_89 = arith.constant dense<0.000000e+00> : vector<64x256xf32>
    %314 = tpu.matmul %310, %313, %cst_89 {dimension_numbers = #tpu.dot_dimension_numbers<[1], [0], [0], [1], [0, 0, 1, 1], [], []>} : vector<64x32xbf16>, vector<32x256xbf16>, vector<64x256xf32> -> vector<64x256xf32>
    %c0_90 = arith.constant 0 : index
    %c0_91 = arith.constant 0 : index
    %315 = vector.load %arg5[%c0_90, %c0_91] : memref<32x256xbf16, #tpu.memory_space<vmem>>, vector<32x256xbf16>
    %cst_92 = arith.constant dense<0.000000e+00> : vector<64x256xf32>
    %316 = tpu.matmul %312, %315, %cst_92 {dimension_numbers = #tpu.dot_dimension_numbers<[1], [0], [0], [1], [0, 0, 1, 1], [], []>} : vector<64x32xbf16>, vector<32x256xbf16>, vector<64x256xf32> -> vector<64x256xf32>
    %317 = arith.addf %314, %316 : vector<64x256xf32>
    %c0_93 = arith.constant 0 : index
    %c0_94 = arith.constant 0 : index
    %318 = vector.load %arg7[%c0_93, %c0_94] : memref<1x256xf32, #tpu.memory_space<vmem>>, vector<1x256xf32>
    %319 = vector.broadcast %318 : vector<1x256xf32> to vector<64x256xf32>
    %320 = arith.addf %317, %319 : vector<64x256xf32>
    %c0_95 = arith.constant 0 : index
    %c0_96 = arith.constant 0 : index
    %321 = vector.load %arg18[%c0_95, %c0_96] : memref<64x256xf32, #tpu.memory_space<vmem>>, vector<64x256xf32>
    tpu.vector_store %arg18[%c0_95, %c0_96], %320 {strides = array<i32>} : memref<64x256xf32, #tpu.memory_space<vmem>>, vector<64x256xf32>,
    %c0_97 = arith.constant 0 : index
    %c0_98 = arith.constant 0 : index
    %322 = vector.load %arg6[%c0_97, %c0_98] : memref<32x256xbf16, #tpu.memory_space<vmem>>, vector<32x256xbf16>
    %cst_99 = arith.constant 0.000000e+00 : bf16
    %323 = vector.broadcast %cst_99 : bf16 to vector<16x32xbf16>
    %cst_100 = arith.constant 0.000000e+00 : f32
    %324 = vector.broadcast %cst_100 : f32 to vector<16x32xf32>
    %cst_101 = arith.constant 0xFF800000 : f32
    %325 = vector.broadcast %cst_101 : f32 to vector<16x32xf32>
    %c0_i32_102 = arith.constant 0 : i32
    %c7_i32_103 = arith.constant 7 : i32
    %326 = arith.subi %c7_i32_103, %c0_i32_102 : i32
    %c8_i32_104 = arith.constant 8 : i32
    %327 = arith.muli %c0_i32_102, %c8_i32_104 : i32
    %328 = tpu.assume_multiple %327, 8 : i32
    %c8_i32_105 = arith.constant 8 : i32
    %329 = arith.muli %326, %c8_i32_105 : i32
    %330 = tpu.assume_multiple %329, 8 : i32
    %cst_106 = arith.constant dense<0.000000e+00> : vector<16x256xf32>
    %331 = tpu.matmul %323, %322, %cst_106 {dimension_numbers = #tpu.dot_dimension_numbers<[1], [0], [0], [1], [0, 0, 1, 1], [], []>} : vector<16x32xbf16>, vector<32x256xbf16>, vector<16x256xf32> -> vector<16x256xf32>
    %332 = arith.index_cast %328 : i32 to index
    %c0_107 = arith.constant 0 : index
    %333 = vector.load %arg18[%332, %c0_107] : memref<64x256xf32, #tpu.memory_space<vmem>>, vector<8x128xf32>
    %334 = arith.index_cast %330 : i32 to index
    %c128_108 = arith.constant 128 : index
    %335 = vector.load %arg18[%334, %c128_108] : memref<64x256xf32, #tpu.memory_space<vmem>>, vector<8x128xf32>
    %336 = tpu.concatenate %333, %335 in 0 : vector<8x128xf32>, vector<8x128xf32> -> vector<16x128xf32>
    %337 = vector.extract_strided_slice %331 {offsets = [0, 0], sizes = [16, 128], strides = [1, 1]} : vector<16x256xf32> to vector<16x128xf32>
    %338 = vector.extract_strided_slice %331 {offsets = [0, 128], sizes = [16, 128], strides = [1, 1]} : vector<16x256xf32> to vector<16x128xf32>
    %339 = arith.select %2, %337, %338 : vector<16x128xi1>, vector<16x128xf32>
    %340 = arith.addf %336, %339 : vector<16x128xf32>
    %341 = arith.negf %340 : vector<16x128xf32>
    %342 = math.exp %341 : vector<16x128xf32>
    %cst_109 = arith.constant 1.000000e+00 : f32
    %343 = vector.broadcast %cst_109 : f32 to vector<16x128xf32>
    %344 = arith.addf %343, %342 : vector<16x128xf32>
    %345 = arith.divf %343, %344 : vector<16x128xf32>
    %346 = math.tanh %340 : vector<16x128xf32>
    %347 = vector.extract_strided_slice %345 {offsets = [0, 0], sizes = [16, 32], strides = [1, 1]} : vector<16x128xf32> to vector<16x32xf32>
    %348 = vector.extract_strided_slice %345 {offsets = [0, 32], sizes = [16, 32], strides = [1, 1]} : vector<16x128xf32> to vector<16x32xf32>
    %349 = vector.extract_strided_slice %346 {offsets = [0, 64], sizes = [16, 32], strides = [1, 1]} : vector<16x128xf32> to vector<16x32xf32>
    %350 = vector.extract_strided_slice %345 {offsets = [0, 96], sizes = [16, 32], strides = [1, 1]} : vector<16x128xf32> to vector<16x32xf32>
    %351 = arith.mulf %348, %324 : vector<16x32xf32>
    %352 = arith.mulf %347, %349 : vector<16x32xf32>
    %353 = arith.addf %351, %352 : vector<16x32xf32>
    %354 = math.tanh %353 : vector<16x32xf32>
    %355 = arith.mulf %350, %354 : vector<16x32xf32>
    %356 = arith.truncf %355 : vector<16x32xf32> to vector<16x32xbf16>
    %357 = arith.maximumf %325, %355 : vector<16x32xf32>
    %c1_i32_110 = arith.constant 1 : i32
    %c7_i32_111 = arith.constant 7 : i32
    %358 = arith.subi %c7_i32_111, %c1_i32_110 : i32
    %c8_i32_112 = arith.constant 8 : i32
    %359 = arith.muli %c1_i32_110, %c8_i32_112 : i32
    %360 = tpu.assume_multiple %359, 8 : i32
    %c8_i32_113 = arith.constant 8 : i32
    %361 = arith.muli %358, %c8_i32_113 : i32
    %362 = tpu.assume_multiple %361, 8 : i32
    %cst_114 = arith.constant dense<0.000000e+00> : vector<16x256xf32>
    %363 = tpu.matmul %356, %322, %cst_114 {dimension_numbers = #tpu.dot_dimension_numbers<[1], [0], [0], [1], [0, 0, 1, 1], [], []>} : vector<16x32xbf16>, vector<32x256xbf16>, vector<16x256xf32> -> vector<16x256xf32>
    %364 = arith.index_cast %360 : i32 to index
    %c0_115 = arith.constant 0 : index
    %365 = vector.load %arg18[%364, %c0_115] : memref<64x256xf32, #tpu.memory_space<vmem>>, vector<8x128xf32>
    %366 = arith.index_cast %362 : i32 to index
    %c128_116 = arith.constant 128 : index
    %367 = vector.load %arg18[%366, %c128_116] : memref<64x256xf32, #tpu.memory_space<vmem>>, vector<8x128xf32>
    %368 = tpu.concatenate %365, %367 in 0 : vector<8x128xf32>, vector<8x128xf32> -> vector<16x128xf32>
    %369 = vector.extract_strided_slice %363 {offsets = [0, 0], sizes = [16, 128], strides = [1, 1]} : vector<16x256xf32> to vector<16x128xf32>
    %370 = vector.extract_strided_slice %363 {offsets = [0, 128], sizes = [16, 128], strides = [1, 1]} : vector<16x256xf32> to vector<16x128xf32>
    %371 = arith.select %2, %369, %370 : vector<16x128xi1>, vector<16x128xf32>
    %372 = arith.addf %368, %371 : vector<16x128xf32>
    %373 = arith.negf %372 : vector<16x128xf32>
    %374 = math.exp %373 : vector<16x128xf32>
    %cst_117 = arith.constant 1.000000e+00 : f32
    %375 = vector.broadcast %cst_117 : f32 to vector<16x128xf32>
    %376 = arith.addf %375, %374 : vector<16x128xf32>
    %377 = arith.divf %375, %376 : vector<16x128xf32>
    %378 = math.tanh %372 : vector<16x128xf32>
    %379 = vector.extract_strided_slice %377 {offsets = [0, 0], sizes = [16, 32], strides = [1, 1]} : vector<16x128xf32> to vector<16x32xf32>
    %380 = vector.extract_strided_slice %377 {offsets = [0, 32], sizes = [16, 32], strides = [1, 1]} : vector<16x128xf32> to vector<16x32xf32>
    %381 = vector.extract_strided_slice %378 {offsets = [0, 64], sizes = [16, 32], strides = [1, 1]} : vector<16x128xf32> to vector<16x32xf32>
    %382 = vector.extract_strided_slice %377 {offsets = [0, 96], sizes = [16, 32], strides = [1, 1]} : vector<16x128xf32> to vector<16x32xf32>
    %383 = arith.mulf %380, %353 : vector<16x32xf32>
    %384 = arith.mulf %379, %381 : vector<16x32xf32>
    %385 = arith.addf %383, %384 : vector<16x32xf32>
    %386 = math.tanh %385 : vector<16x32xf32>
    %387 = arith.mulf %382, %386 : vector<16x32xf32>
    %388 = arith.truncf %387 : vector<16x32xf32> to vector<16x32xbf16>
    %389 = arith.maximumf %357, %387 : vector<16x32xf32>
    %c2_i32_118 = arith.constant 2 : i32
    %c7_i32_119 = arith.constant 7 : i32
    %390 = arith.subi %c7_i32_119, %c2_i32_118 : i32
    %c8_i32_120 = arith.constant 8 : i32
    %391 = arith.muli %c2_i32_118, %c8_i32_120 : i32
    %392 = tpu.assume_multiple %391, 8 : i32
    %c8_i32_121 = arith.constant 8 : i32
    %393 = arith.muli %390, %c8_i32_121 : i32
    %394 = tpu.assume_multiple %393, 8 : i32
    %cst_122 = arith.constant dense<0.000000e+00> : vector<16x256xf32>
    %395 = tpu.matmul %388, %322, %cst_122 {dimension_numbers = #tpu.dot_dimension_numbers<[1], [0], [0], [1], [0, 0, 1, 1], [], []>} : vector<16x32xbf16>, vector<32x256xbf16>, vector<16x256xf32> -> vector<16x256xf32>
    %396 = arith.index_cast %392 : i32 to index
    %c0_123 = arith.constant 0 : index
    %397 = vector.load %arg18[%396, %c0_123] : memref<64x256xf32, #tpu.memory_space<vmem>>, vector<8x128xf32>
    %398 = arith.index_cast %394 : i32 to index
    %c128_124 = arith.constant 128 : index
    %399 = vector.load %arg18[%398, %c128_124] : memref<64x256xf32, #tpu.memory_space<vmem>>, vector<8x128xf32>
    %400 = tpu.concatenate %397, %399 in 0 : vector<8x128xf32>, vector<8x128xf32> -> vector<16x128xf32>
    %401 = vector.extract_strided_slice %395 {offsets = [0, 0], sizes = [16, 128], strides = [1, 1]} : vector<16x256xf32> to vector<16x128xf32>
    %402 = vector.extract_strided_slice %395 {offsets = [0, 128], sizes = [16, 128], strides = [1, 1]} : vector<16x256xf32> to vector<16x128xf32>
    %403 = arith.select %2, %401, %402 : vector<16x128xi1>, vector<16x128xf32>
    %404 = arith.addf %400, %403 : vector<16x128xf32>
    %405 = arith.negf %404 : vector<16x128xf32>
    %406 = math.exp %405 : vector<16x128xf32>
    %cst_125 = arith.constant 1.000000e+00 : f32
    %407 = vector.broadcast %cst_125 : f32 to vector<16x128xf32>
    %408 = arith.addf %407, %406 : vector<16x128xf32>
    %409 = arith.divf %407, %408 : vector<16x128xf32>
    %410 = math.tanh %404 : vector<16x128xf32>
    %411 = vector.extract_strided_slice %409 {offsets = [0, 0], sizes = [16, 32], strides = [1, 1]} : vector<16x128xf32> to vector<16x32xf32>
    %412 = vector.extract_strided_slice %409 {offsets = [0, 32], sizes = [16, 32], strides = [1, 1]} : vector<16x128xf32> to vector<16x32xf32>
    %413 = vector.extract_strided_slice %410 {offsets = [0, 64], sizes = [16, 32], strides = [1, 1]} : vector<16x128xf32> to vector<16x32xf32>
    %414 = vector.extract_strided_slice %409 {offsets = [0, 96], sizes = [16, 32], strides = [1, 1]} : vector<16x128xf32> to vector<16x32xf32>
    %415 = arith.mulf %412, %385 : vector<16x32xf32>
    %416 = arith.mulf %411, %413 : vector<16x32xf32>
    %417 = arith.addf %415, %416 : vector<16x32xf32>
    %418 = math.tanh %417 : vector<16x32xf32>
    %419 = arith.mulf %414, %418 : vector<16x32xf32>
    %420 = arith.truncf %419 : vector<16x32xf32> to vector<16x32xbf16>
    %421 = arith.maximumf %389, %419 : vector<16x32xf32>
    %c3_i32_126 = arith.constant 3 : i32
    %c7_i32_127 = arith.constant 7 : i32
    %422 = arith.subi %c7_i32_127, %c3_i32_126 : i32
    %c8_i32_128 = arith.constant 8 : i32
    %423 = arith.muli %c3_i32_126, %c8_i32_128 : i32
    %424 = tpu.assume_multiple %423, 8 : i32
    %c8_i32_129 = arith.constant 8 : i32
    %425 = arith.muli %422, %c8_i32_129 : i32
    %426 = tpu.assume_multiple %425, 8 : i32
    %cst_130 = arith.constant dense<0.000000e+00> : vector<16x256xf32>
    %427 = tpu.matmul %420, %322, %cst_130 {dimension_numbers = #tpu.dot_dimension_numbers<[1], [0], [0], [1], [0, 0, 1, 1], [], []>} : vector<16x32xbf16>, vector<32x256xbf16>, vector<16x256xf32> -> vector<16x256xf32>
    %428 = arith.index_cast %424 : i32 to index
    %c0_131 = arith.constant 0 : index
    %429 = vector.load %arg18[%428, %c0_131] : memref<64x256xf32, #tpu.memory_space<vmem>>, vector<8x128xf32>
    %430 = arith.index_cast %426 : i32 to index
    %c128_132 = arith.constant 128 : index
    %431 = vector.load %arg18[%430, %c128_132] : memref<64x256xf32, #tpu.memory_space<vmem>>, vector<8x128xf32>
    %432 = tpu.concatenate %429, %431 in 0 : vector<8x128xf32>, vector<8x128xf32> -> vector<16x128xf32>
    %433 = vector.extract_strided_slice %427 {offsets = [0, 0], sizes = [16, 128], strides = [1, 1]} : vector<16x256xf32> to vector<16x128xf32>
    %434 = vector.extract_strided_slice %427 {offsets = [0, 128], sizes = [16, 128], strides = [1, 1]} : vector<16x256xf32> to vector<16x128xf32>
    %435 = arith.select %2, %433, %434 : vector<16x128xi1>, vector<16x128xf32>
    %436 = arith.addf %432, %435 : vector<16x128xf32>
    %437 = arith.negf %436 : vector<16x128xf32>
    %438 = math.exp %437 : vector<16x128xf32>
    %cst_133 = arith.constant 1.000000e+00 : f32
    %439 = vector.broadcast %cst_133 : f32 to vector<16x128xf32>
    %440 = arith.addf %439, %438 : vector<16x128xf32>
    %441 = arith.divf %439, %440 : vector<16x128xf32>
    %442 = math.tanh %436 : vector<16x128xf32>
    %443 = vector.extract_strided_slice %441 {offsets = [0, 0], sizes = [16, 32], strides = [1, 1]} : vector<16x128xf32> to vector<16x32xf32>
    %444 = vector.extract_strided_slice %441 {offsets = [0, 32], sizes = [16, 32], strides = [1, 1]} : vector<16x128xf32> to vector<16x32xf32>
    %445 = vector.extract_strided_slice %442 {offsets = [0, 64], sizes = [16, 32], strides = [1, 1]} : vector<16x128xf32> to vector<16x32xf32>
    %446 = vector.extract_strided_slice %441 {offsets = [0, 96], sizes = [16, 32], strides = [1, 1]} : vector<16x128xf32> to vector<16x32xf32>
    %447 = arith.mulf %444, %417 : vector<16x32xf32>
    %448 = arith.mulf %443, %445 : vector<16x32xf32>
    %449 = arith.addf %447, %448 : vector<16x32xf32>
    %450 = math.tanh %449 : vector<16x32xf32>
    %451 = arith.mulf %446, %450 : vector<16x32xf32>
    %452 = arith.truncf %451 : vector<16x32xf32> to vector<16x32xbf16>
    %453 = arith.maximumf %421, %451 : vector<16x32xf32>
    %c4_i32_134 = arith.constant 4 : i32
    %c7_i32_135 = arith.constant 7 : i32
    %454 = arith.subi %c7_i32_135, %c4_i32_134 : i32
    %c8_i32_136 = arith.constant 8 : i32
    %455 = arith.muli %c4_i32_134, %c8_i32_136 : i32
    %456 = tpu.assume_multiple %455, 8 : i32
    %c8_i32_137 = arith.constant 8 : i32
    %457 = arith.muli %454, %c8_i32_137 : i32
    %458 = tpu.assume_multiple %457, 8 : i32
    %cst_138 = arith.constant dense<0.000000e+00> : vector<16x256xf32>
    %459 = tpu.matmul %452, %322, %cst_138 {dimension_numbers = #tpu.dot_dimension_numbers<[1], [0], [0], [1], [0, 0, 1, 1], [], []>} : vector<16x32xbf16>, vector<32x256xbf16>, vector<16x256xf32> -> vector<16x256xf32>
    %460 = arith.index_cast %456 : i32 to index
    %c0_139 = arith.constant 0 : index
    %461 = vector.load %arg18[%460, %c0_139] : memref<64x256xf32, #tpu.memory_space<vmem>>, vector<8x128xf32>
    %462 = arith.index_cast %458 : i32 to index
    %c128_140 = arith.constant 128 : index
    %463 = vector.load %arg18[%462, %c128_140] : memref<64x256xf32, #tpu.memory_space<vmem>>, vector<8x128xf32>
    %464 = tpu.concatenate %461, %463 in 0 : vector<8x128xf32>, vector<8x128xf32> -> vector<16x128xf32>
    %465 = vector.extract_strided_slice %459 {offsets = [0, 0], sizes = [16, 128], strides = [1, 1]} : vector<16x256xf32> to vector<16x128xf32>
    %466 = vector.extract_strided_slice %459 {offsets = [0, 128], sizes = [16, 128], strides = [1, 1]} : vector<16x256xf32> to vector<16x128xf32>
    %467 = arith.select %2, %465, %466 : vector<16x128xi1>, vector<16x128xf32>
    %468 = arith.addf %464, %467 : vector<16x128xf32>
    %469 = arith.negf %468 : vector<16x128xf32>
    %470 = math.exp %469 : vector<16x128xf32>
    %cst_141 = arith.constant 1.000000e+00 : f32
    %471 = vector.broadcast %cst_141 : f32 to vector<16x128xf32>
    %472 = arith.addf %471, %470 : vector<16x128xf32>
    %473 = arith.divf %471, %472 : vector<16x128xf32>
    %474 = math.tanh %468 : vector<16x128xf32>
    %475 = vector.extract_strided_slice %473 {offsets = [0, 0], sizes = [16, 32], strides = [1, 1]} : vector<16x128xf32> to vector<16x32xf32>
    %476 = vector.extract_strided_slice %473 {offsets = [0, 32], sizes = [16, 32], strides = [1, 1]} : vector<16x128xf32> to vector<16x32xf32>
    %477 = vector.extract_strided_slice %474 {offsets = [0, 64], sizes = [16, 32], strides = [1, 1]} : vector<16x128xf32> to vector<16x32xf32>
    %478 = vector.extract_strided_slice %473 {offsets = [0, 96], sizes = [16, 32], strides = [1, 1]} : vector<16x128xf32> to vector<16x32xf32>
    %479 = arith.mulf %476, %449 : vector<16x32xf32>
    %480 = arith.mulf %475, %477 : vector<16x32xf32>
    %481 = arith.addf %479, %480 : vector<16x32xf32>
    %482 = math.tanh %481 : vector<16x32xf32>
    %483 = arith.mulf %478, %482 : vector<16x32xf32>
    %484 = arith.truncf %483 : vector<16x32xf32> to vector<16x32xbf16>
    %485 = arith.maximumf %453, %483 : vector<16x32xf32>
    %c5_i32_142 = arith.constant 5 : i32
    %c7_i32_143 = arith.constant 7 : i32
    %486 = arith.subi %c7_i32_143, %c5_i32_142 : i32
    %c8_i32_144 = arith.constant 8 : i32
    %487 = arith.muli %c5_i32_142, %c8_i32_144 : i32
    %488 = tpu.assume_multiple %487, 8 : i32
    %c8_i32_145 = arith.constant 8 : i32
    %489 = arith.muli %486, %c8_i32_145 : i32
    %490 = tpu.assume_multiple %489, 8 : i32
    %cst_146 = arith.constant dense<0.000000e+00> : vector<16x256xf32>
    %491 = tpu.matmul %484, %322, %cst_146 {dimension_numbers = #tpu.dot_dimension_numbers<[1], [0], [0], [1], [0, 0, 1, 1], [], []>} : vector<16x32xbf16>, vector<32x256xbf16>, vector<16x256xf32> -> vector<16x256xf32>
    %492 = arith.index_cast %488 : i32 to index
    %c0_147 = arith.constant 0 : index
    %493 = vector.load %arg18[%492, %c0_147] : memref<64x256xf32, #tpu.memory_space<vmem>>, vector<8x128xf32>
    %494 = arith.index_cast %490 : i32 to index
    %c128_148 = arith.constant 128 : index
    %495 = vector.load %arg18[%494, %c128_148] : memref<64x256xf32, #tpu.memory_space<vmem>>, vector<8x128xf32>
    %496 = tpu.concatenate %493, %495 in 0 : vector<8x128xf32>, vector<8x128xf32> -> vector<16x128xf32>
    %497 = vector.extract_strided_slice %491 {offsets = [0, 0], sizes = [16, 128], strides = [1, 1]} : vector<16x256xf32> to vector<16x128xf32>
    %498 = vector.extract_strided_slice %491 {offsets = [0, 128], sizes = [16, 128], strides = [1, 1]} : vector<16x256xf32> to vector<16x128xf32>
    %499 = arith.select %2, %497, %498 : vector<16x128xi1>, vector<16x128xf32>
    %500 = arith.addf %496, %499 : vector<16x128xf32>
    %501 = arith.negf %500 : vector<16x128xf32>
    %502 = math.exp %501 : vector<16x128xf32>
    %cst_149 = arith.constant 1.000000e+00 : f32
    %503 = vector.broadcast %cst_149 : f32 to vector<16x128xf32>
    %504 = arith.addf %503, %502 : vector<16x128xf32>
    %505 = arith.divf %503, %504 : vector<16x128xf32>
    %506 = math.tanh %500 : vector<16x128xf32>
    %507 = vector.extract_strided_slice %505 {offsets = [0, 0], sizes = [16, 32], strides = [1, 1]} : vector<16x128xf32> to vector<16x32xf32>
    %508 = vector.extract_strided_slice %505 {offsets = [0, 32], sizes = [16, 32], strides = [1, 1]} : vector<16x128xf32> to vector<16x32xf32>
    %509 = vector.extract_strided_slice %506 {offsets = [0, 64], sizes = [16, 32], strides = [1, 1]} : vector<16x128xf32> to vector<16x32xf32>
    %510 = vector.extract_strided_slice %505 {offsets = [0, 96], sizes = [16, 32], strides = [1, 1]} : vector<16x128xf32> to vector<16x32xf32>
    %511 = arith.mulf %508, %481 : vector<16x32xf32>
    %512 = arith.mulf %507, %509 : vector<16x32xf32>
    %513 = arith.addf %511, %512 : vector<16x32xf32>
    %514 = math.tanh %513 : vector<16x32xf32>
    %515 = arith.mulf %510, %514 : vector<16x32xf32>
    %516 = arith.truncf %515 : vector<16x32xf32> to vector<16x32xbf16>
    %517 = arith.maximumf %485, %515 : vector<16x32xf32>
    %c6_i32_150 = arith.constant 6 : i32
    %c7_i32_151 = arith.constant 7 : i32
    %518 = arith.subi %c7_i32_151, %c6_i32_150 : i32
    %c8_i32_152 = arith.constant 8 : i32
    %519 = arith.muli %c6_i32_150, %c8_i32_152 : i32
    %520 = tpu.assume_multiple %519, 8 : i32
    %c8_i32_153 = arith.constant 8 : i32
    %521 = arith.muli %518, %c8_i32_153 : i32
    %522 = tpu.assume_multiple %521, 8 : i32
    %cst_154 = arith.constant dense<0.000000e+00> : vector<16x256xf32>
    %523 = tpu.matmul %516, %322, %cst_154 {dimension_numbers = #tpu.dot_dimension_numbers<[1], [0], [0], [1], [0, 0, 1, 1], [], []>} : vector<16x32xbf16>, vector<32x256xbf16>, vector<16x256xf32> -> vector<16x256xf32>
    %524 = arith.index_cast %520 : i32 to index
    %c0_155 = arith.constant 0 : index
    %525 = vector.load %arg18[%524, %c0_155] : memref<64x256xf32, #tpu.memory_space<vmem>>, vector<8x128xf32>
    %526 = arith.index_cast %522 : i32 to index
    %c128_156 = arith.constant 128 : index
    %527 = vector.load %arg18[%526, %c128_156] : memref<64x256xf32, #tpu.memory_space<vmem>>, vector<8x128xf32>
    %528 = tpu.concatenate %525, %527 in 0 : vector<8x128xf32>, vector<8x128xf32> -> vector<16x128xf32>
    %529 = vector.extract_strided_slice %523 {offsets = [0, 0], sizes = [16, 128], strides = [1, 1]} : vector<16x256xf32> to vector<16x128xf32>
    %530 = vector.extract_strided_slice %523 {offsets = [0, 128], sizes = [16, 128], strides = [1, 1]} : vector<16x256xf32> to vector<16x128xf32>
    %531 = arith.select %2, %529, %530 : vector<16x128xi1>, vector<16x128xf32>
    %532 = arith.addf %528, %531 : vector<16x128xf32>
    %533 = arith.negf %532 : vector<16x128xf32>
    %534 = math.exp %533 : vector<16x128xf32>
    %cst_157 = arith.constant 1.000000e+00 : f32
    %535 = vector.broadcast %cst_157 : f32 to vector<16x128xf32>
    %536 = arith.addf %535, %534 : vector<16x128xf32>
    %537 = arith.divf %535, %536 : vector<16x128xf32>
    %538 = math.tanh %532 : vector<16x128xf32>
    %539 = vector.extract_strided_slice %537 {offsets = [0, 0], sizes = [16, 32], strides = [1, 1]} : vector<16x128xf32> to vector<16x32xf32>
    %540 = vector.extract_strided_slice %537 {offsets = [0, 32], sizes = [16, 32], strides = [1, 1]} : vector<16x128xf32> to vector<16x32xf32>
    %541 = vector.extract_strided_slice %538 {offsets = [0, 64], sizes = [16, 32], strides = [1, 1]} : vector<16x128xf32> to vector<16x32xf32>
    %542 = vector.extract_strided_slice %537 {offsets = [0, 96], sizes = [16, 32], strides = [1, 1]} : vector<16x128xf32> to vector<16x32xf32>
    %543 = arith.mulf %540, %513 : vector<16x32xf32>
    %544 = arith.mulf %539, %541 : vector<16x32xf32>
    %545 = arith.addf %543, %544 : vector<16x32xf32>
    %546 = math.tanh %545 : vector<16x32xf32>
    %547 = arith.mulf %542, %546 : vector<16x32xf32>
    %548 = arith.truncf %547 : vector<16x32xf32> to vector<16x32xbf16>
    %549 = arith.maximumf %517, %547 : vector<16x32xf32>
    %c7_i32_158 = arith.constant 7 : i32
    %c7_i32_159 = arith.constant 7 : i32
    %550 = arith.subi %c7_i32_159, %c7_i32_158 : i32
    %c8_i32_160 = arith.constant 8 : i32
    %551 = arith.muli %c7_i32_158, %c8_i32_160 : i32
    %552 = tpu.assume_multiple %551, 8 : i32
    %c8_i32_161 = arith.constant 8 : i32
    %553 = arith.muli %550, %c8_i32_161 : i32
    %554 = tpu.assume_multiple %553, 8 : i32
    %cst_162 = arith.constant dense<0.000000e+00> : vector<16x256xf32>
    %555 = tpu.matmul %548, %322, %cst_162 {dimension_numbers = #tpu.dot_dimension_numbers<[1], [0], [0], [1], [0, 0, 1, 1], [], []>} : vector<16x32xbf16>, vector<32x256xbf16>, vector<16x256xf32> -> vector<16x256xf32>
    %556 = arith.index_cast %552 : i32 to index
    %c0_163 = arith.constant 0 : index
    %557 = vector.load %arg18[%556, %c0_163] : memref<64x256xf32, #tpu.memory_space<vmem>>, vector<8x128xf32>
    %558 = arith.index_cast %554 : i32 to index
    %c128_164 = arith.constant 128 : index
    %559 = vector.load %arg18[%558, %c128_164] : memref<64x256xf32, #tpu.memory_space<vmem>>, vector<8x128xf32>
    %560 = tpu.concatenate %557, %559 in 0 : vector<8x128xf32>, vector<8x128xf32> -> vector<16x128xf32>
    %561 = vector.extract_strided_slice %555 {offsets = [0, 0], sizes = [16, 128], strides = [1, 1]} : vector<16x256xf32> to vector<16x128xf32>
    %562 = vector.extract_strided_slice %555 {offsets = [0, 128], sizes = [16, 128], strides = [1, 1]} : vector<16x256xf32> to vector<16x128xf32>
    %563 = arith.select %2, %561, %562 : vector<16x128xi1>, vector<16x128xf32>
    %564 = arith.addf %560, %563 : vector<16x128xf32>
    %565 = arith.negf %564 : vector<16x128xf32>
    %566 = math.exp %565 : vector<16x128xf32>
    %cst_165 = arith.constant 1.000000e+00 : f32
    %567 = vector.broadcast %cst_165 : f32 to vector<16x128xf32>
    %568 = arith.addf %567, %566 : vector<16x128xf32>
    %569 = arith.divf %567, %568 : vector<16x128xf32>
    %570 = math.tanh %564 : vector<16x128xf32>
    %571 = vector.extract_strided_slice %569 {offsets = [0, 0], sizes = [16, 32], strides = [1, 1]} : vector<16x128xf32> to vector<16x32xf32>
    %572 = vector.extract_strided_slice %569 {offsets = [0, 32], sizes = [16, 32], strides = [1, 1]} : vector<16x128xf32> to vector<16x32xf32>
    %573 = vector.extract_strided_slice %570 {offsets = [0, 64], sizes = [16, 32], strides = [1, 1]} : vector<16x128xf32> to vector<16x32xf32>
    %574 = vector.extract_strided_slice %569 {offsets = [0, 96], sizes = [16, 32], strides = [1, 1]} : vector<16x128xf32> to vector<16x32xf32>
    %575 = arith.mulf %572, %545 : vector<16x32xf32>
    %576 = arith.mulf %571, %573 : vector<16x32xf32>
    %577 = arith.addf %575, %576 : vector<16x32xf32>
    %578 = math.tanh %577 : vector<16x32xf32>
    %579 = arith.mulf %574, %578 : vector<16x32xf32>
    %580 = arith.truncf %579 : vector<16x32xf32> to vector<16x32xbf16>
    %581 = arith.maximumf %549, %579 : vector<16x32xf32>
    %c8_i32_166 = arith.constant 8 : i32
    %582 = vector.extract_strided_slice %581 {offsets = [0, 0], sizes = [8, 32], strides = [1, 1]} : vector<16x32xf32> to vector<8x32xf32>
    %583 = arith.truncf %582 : vector<8x32xf32> to vector<8x32xbf16>
    %584 = vector.extract_strided_slice %581 {offsets = [8, 0], sizes = [8, 32], strides = [1, 1]} : vector<16x32xf32> to vector<8x32xf32>
    %585 = arith.truncf %584 : vector<8x32xf32> to vector<8x32xbf16>
    %c0_167 = arith.constant 0 : index
    %c0_168 = arith.constant 0 : index
    %586 = vector.load %arg8[%c0_167, %c0_168] : memref<32x32xbf16, #tpu.memory_space<vmem>>, vector<32x32xbf16>
    %cst_169 = arith.constant dense<0.000000e+00> : vector<8x32xf32>
    %587 = tpu.matmul %583, %586, %cst_169 {dimension_numbers = #tpu.dot_dimension_numbers<[1], [0], [0], [1], [0, 0, 1, 1], [], []>} : vector<8x32xbf16>, vector<32x32xbf16>, vector<8x32xf32> -> vector<8x32xf32>
    %c0_170 = arith.constant 0 : index
    %c0_171 = arith.constant 0 : index
    %588 = vector.load %arg9[%c0_170, %c0_171] : memref<32x32xbf16, #tpu.memory_space<vmem>>, vector<32x32xbf16>
    %cst_172 = arith.constant dense<0.000000e+00> : vector<8x32xf32>
    %589 = tpu.matmul %585, %588, %cst_172 {dimension_numbers = #tpu.dot_dimension_numbers<[1], [0], [0], [1], [0, 0, 1, 1], [], []>} : vector<8x32xbf16>, vector<32x32xbf16>, vector<8x32xf32> -> vector<8x32xf32>
    %590 = arith.addf %587, %589 : vector<8x32xf32>
    %c0_173 = arith.constant 0 : index
    %c0_174 = arith.constant 0 : index
    %591 = vector.load %arg10[%c0_173, %c0_174] : memref<1x32xf32, #tpu.memory_space<vmem>>, vector<1x32xf32>
    %592 = vector.broadcast %591 : vector<1x32xf32> to vector<8x32xf32>
    %593 = arith.addf %590, %592 : vector<8x32xf32>
    %c0_175 = arith.constant 0 : index
    %c0_176 = arith.constant 0 : index
    %594 = vector.load %arg13[%c0_175, %c0_176] : memref<1x32xf32, #tpu.memory_space<vmem>>, vector<1x32xf32>
    %595 = vector.broadcast %594 : vector<1x32xf32> to vector<8x32xf32>
    %596 = arith.subf %593, %595 : vector<8x32xf32>
    %c0_177 = arith.constant 0 : index
    %c0_178 = arith.constant 0 : index
    %597 = vector.load %arg14[%c0_177, %c0_178] : memref<1x32xf32, #tpu.memory_space<vmem>>, vector<1x32xf32>
    %cst_179 = arith.constant 9.99999974E-6 : f32
    %598 = vector.broadcast %cst_179 : f32 to vector<1x32xf32>
    %599 = arith.addf %597, %598 : vector<1x32xf32>
    %600 = math.rsqrt %599 : vector<1x32xf32>
    %601 = vector.broadcast %600 : vector<1x32xf32> to vector<8x32xf32>
    %602 = arith.mulf %596, %601 : vector<8x32xf32>
    %c0_180 = arith.constant 0 : index
    %c0_181 = arith.constant 0 : index
    %603 = vector.load %arg11[%c0_180, %c0_181] : memref<1x32xf32, #tpu.memory_space<vmem>>, vector<1x32xf32>
    %604 = vector.broadcast %603 : vector<1x32xf32> to vector<8x32xf32>
    %605 = arith.mulf %602, %604 : vector<8x32xf32>
    %c0_182 = arith.constant 0 : index
    %c0_183 = arith.constant 0 : index
    %606 = vector.load %arg12[%c0_182, %c0_183] : memref<1x32xf32, #tpu.memory_space<vmem>>, vector<1x32xf32>
    %607 = vector.broadcast %606 : vector<1x32xf32> to vector<8x32xf32>
    %608 = arith.addf %605, %607 : vector<8x32xf32>
    %cst_184 = arith.constant 0.000000e+00 : f32
    %609 = vector.broadcast %cst_184 : f32 to vector<8x32xf32>
    %610 = arith.maximumf %608, %609 : vector<8x32xf32>
    %611 = arith.truncf %610 : vector<8x32xf32> to vector<8x32xbf16>
    %c0_185 = arith.constant 0 : index
    %c0_186 = arith.constant 0 : index
    %612 = vector.load %arg15[%c0_185, %c0_186] : memref<32x8xbf16, #tpu.memory_space<vmem>>, vector<32x8xbf16>
    %cst_187 = arith.constant dense<0.000000e+00> : vector<8x8xf32>
    %613 = tpu.matmul %611, %612, %cst_187 {dimension_numbers = #tpu.dot_dimension_numbers<[1], [0], [0], [1], [0, 0, 1, 1], [], []>} : vector<8x32xbf16>, vector<32x8xbf16>, vector<8x8xf32> -> vector<8x8xf32>
    %c0_188 = arith.constant 0 : index
    %c0_189 = arith.constant 0 : index
    %614 = vector.load %arg16[%c0_188, %c0_189] : memref<1x8xf32, #tpu.memory_space<vmem>>, vector<1x8xf32>
    %615 = vector.broadcast %614 : vector<1x8xf32> to vector<8x8xf32>
    %616 = arith.addf %613, %615 : vector<8x8xf32>
    %cst_190 = arith.constant dense<0xFF800000> : vector<8xf32>
    %617 = vector.multi_reduction <maximumf>, %616, %cst_190 [1] : vector<8x8xf32> to vector<8xf32>
    %618 = vector.shape_cast %617 : vector<8xf32> to vector<8x1xf32>
    %619 = vector.broadcast %618 : vector<8x1xf32> to vector<8x8xf32>
    %620 = arith.subf %616, %619 : vector<8x8xf32>
    %621 = math.exp %620 : vector<8x8xf32>
    %cst_191 = arith.constant dense<0.000000e+00> : vector<8xf32>
    %622 = vector.multi_reduction <add>, %621, %cst_191 [1] : vector<8x8xf32> to vector<8xf32>
    %623 = vector.shape_cast %622 : vector<8xf32> to vector<8x1xf32>
    %624 = math.log %623 : vector<8x1xf32>
    %625 = vector.broadcast %624 : vector<8x1xf32> to vector<8x8xf32>
    %626 = arith.subf %620, %625 : vector<8x8xf32>
    %c0_192 = arith.constant 0 : index
    %c0_193 = arith.constant 0 : index
    %627 = vector.load %arg17[%c0_192, %c0_193] : memref<8x8xf32, #tpu.memory_space<vmem>>, vector<8x8xf32>
    tpu.vector_store %arg17[%c0_192, %c0_193], %626 {strides = array<i32>} : memref<8x8xf32, #tpu.memory_space<vmem>>, vector<8x8xf32>,
    return
  }
}

</mosaic_0001>

<llo_original>
// kernel: birnn_max_forward.1
$region0: #{birnn_max_forward.1}
  #allocation0 [shape = 'u32[]', space=smem, size = 0x4, offset = 0x4, fixed_abs, tag = 'smem constant byte address 0x4 - core index']
  #allocation1 [shape = 'u32[72,128]{1,0:T(1,128)}', space=vmem, size = 0x9000, scoped, tag = 'internal scratch']
  #allocation2 [shape = 'f32[64,256]{1,0:T(8,128)}', space=vmem, size = 0x10000, scoped, tag = 'scratch operand']
  #allocation3 [shape = 'f32[64,32]{1,0:T(8,128)}', space=vmem, size = 0x8000, scoped, tag = 'scratch operand']
  #allocation4 [shape = 'f32[64,32]{1,0:T(8,128)}', space=vmem, size = 0x8000, scoped, tag = 'scratch operand']
  %s0 = inlined_call_operand.vmem [shape: bf16[64,16], index: 0, kind: input, shape index: {}]
  %s1 = inlined_call_operand.vmem [shape: bf16[16,256], index: 1, kind: input, shape index: {}]
  %s2 = inlined_call_operand.vmem [shape: bf16[32,256], index: 2, kind: input, shape index: {}]
  %s3 = inlined_call_operand.vmem [shape: f32[1,256], index: 3, kind: input, shape index: {}]
  %s4 = inlined_call_operand.vmem [shape: bf16[32,256], index: 4, kind: input, shape index: {}]
  %s5 = inlined_call_operand.vmem [shape: bf16[32,256], index: 5, kind: input, shape index: {}]
  %s6 = inlined_call_operand.vmem [shape: bf16[32,256], index: 6, kind: input, shape index: {}]
  %s7 = inlined_call_operand.vmem [shape: f32[1,256], index: 7, kind: input, shape index: {}]
  %s8 = inlined_call_operand.hbm [shape: bf16[32,32], index: 8, kind: input, shape index: {}]
  %s9 = inlined_call_operand.hbm [shape: bf16[32,32], index: 9, kind: input, shape index: {}]
  %s10 = inlined_call_operand.vmem [shape: f32[1,32], index: 10, kind: input, shape index: {}]
  %s11 = inlined_call_operand.hbm [shape: f32[1,32], index: 11, kind: input, shape index: {}]
  %s12 = inlined_call_operand.hbm [shape: f32[1,32], index: 12, kind: input, shape index: {}]
  %s13 = inlined_call_operand.hbm [shape: f32[1,32], index: 13, kind: input, shape index: {}]
  %s14 = inlined_call_operand.hbm [shape: f32[1,32], index: 14, kind: input, shape index: {}]
  %s15 = inlined_call_operand.vmem [shape: bf16[32,8], index: 15, kind: input, shape index: {}]
  %s16 = inlined_call_operand.vmem [shape: f32[1,8], index: 16, kind: input, shape index: {}]
  %s17 = inlined_call_operand.vmem [shape: f32[8,8], index: 17, kind: output, shape index: {}]
  %s18 = sld [smem:[#allocation0]]
  $region102: #{birnn_max_forward.1} parent=0
    _
  %s20 = ssub.s32 1, %s18
  %s21 = scalar_select 0, %s20, %s18
  $region1: #{birnn_max_forward.1} parent=0
    #allocation5 [shape = 'u8[8192]{0}', space=vmem, size = 0x2000, scoped, tag = 'input window, operand 8, single buffered']
    #allocation6 [shape = 's32[1]{0}', space=sflag, size = 0x4, scoped, tag = 'scoped memory for birnn_max_forward.1']
    #allocation7 [shape = 'u8[8192]{0}', space=vmem, size = 0x2000, scoped, tag = 'input window, operand 9, single buffered']
    #allocation8 [shape = 's32[1]{0}', space=sflag, size = 0x4, scoped, tag = 'scoped memory for birnn_max_forward.1']
    #allocation9 [shape = 'u8[512]{0}', space=vmem, size = 0x400, scoped, tag = 'input window, operand 11, single buffered']
    #allocation10 [shape = 'u8[512]{0}', space=vmem, size = 0x400, scoped, tag = 'input window, operand 12, single buffered']
    #allocation11 [shape = 's32[1]{0}', space=sflag, size = 0x4, scoped, tag = 'scoped memory for birnn_max_forward.1']
    #allocation12 [shape = 'u8[512]{0}', space=vmem, size = 0x400, scoped, tag = 'input window, operand 13, single buffered']
    #allocation13 [shape = 'u8[512]{0}', space=vmem, size = 0x400, scoped, tag = 'input window, operand 14, single buffered']
    #allocation14 [shape = 's32[1]{0}', space=sflag, size = 0x4, scoped, tag = 'scoped memory for birnn_max_forward.1']
    %22 = vsyncpa [#allocation6], 0
    %23 = vsyncpa [#allocation8], 0
    %24 = vsyncpa [#allocation11], 0
    %25 = vsyncpa [#allocation14], 0
    // Predicated region
    $region2: #{birnn_max_forward.1} parent=1 // pred_check
      _
    $region3: #{birnn_max_forward.1} parent=1 // pred_check_branch
      %27 = sbr.rel (0) target = $region5
    $region4: #{birnn_max_forward.1} parent=1 // pred_region
      _
    $region5: #{birnn_max_forward.1} parent=1 // pred_fallthru
      _
    // Predicated region
    $region6: #{birnn_max_forward.1} parent=1 // pred_check
      _
    $region7: #{birnn_max_forward.1} parent=1 // pred_check_branch
      %29 = sbr.rel (0) target = $region9
    $region8: #{birnn_max_forward.1} parent=1 // pred_region
      _
    $region9: #{birnn_max_forward.1} parent=1 // pred_fallthru
      _
    // Predicated region
    $region10: #{birnn_max_forward.1} parent=1 // pred_check
      _
    $region11: #{birnn_max_forward.1} parent=1 // pred_check_branch
      %31 = sbr.rel (0) target = $region13
    $region12: #{birnn_max_forward.1} parent=1 // pred_region
      _
    $region13: #{birnn_max_forward.1} parent=1 // pred_fallthru
      _
    // Predicated region
    $region14: #{birnn_max_forward.1} parent=1 // pred_check
      _
    $region15: #{birnn_max_forward.1} parent=1 // pred_check_branch
      %33 = sbr.rel (0) target = $region17
    $region16: #{birnn_max_forward.1} parent=1 // pred_region
      _
    $region17: #{birnn_max_forward.1} parent=1 // pred_fallthru
      _
    // Predicated region
    $region18: #{birnn_max_forward.1} parent=1 // pred_check
      _
    $region19: #{birnn_max_forward.1} parent=1 // pred_check_branch
      %35 = sbr.rel (0) target = $region21
    $region20: #{birnn_max_forward.1} parent=1 // pred_region
      _
    $region21: #{birnn_max_forward.1} parent=1 // pred_fallthru
      _
    // Predicated region
    $region22: #{birnn_max_forward.1} parent=1 // pred_check
      _
    $region23: #{birnn_max_forward.1} parent=1 // pred_check_branch
      %37 = sbr.rel (0) target = $region25
    $region24: #{birnn_max_forward.1} parent=1 // pred_region
      _
    $region25: #{birnn_max_forward.1} parent=1 // pred_fallthru
      _
    // Predicated region
    $region26: #{birnn_max_forward.1} parent=1 // pred_check
      _
    $region27: #{birnn_max_forward.1} parent=1 // pred_check_branch
      %39 = sbr.rel (0) target = $region29
    $region28: #{birnn_max_forward.1} parent=1 // pred_region
      _
    $region29: #{birnn_max_forward.1} parent=1 // pred_fallthru
      _
    // Predicated region
    $region30: #{birnn_max_forward.1} parent=1 // pred_check
      _
    $region31: #{birnn_max_forward.1} parent=1 // pred_check_branch
      %41 = sbr.rel (0) target = $region33
    $region32: #{birnn_max_forward.1} parent=1 // pred_region
      _
    $region33: #{birnn_max_forward.1} parent=1 // pred_fallthru
      _
    // Predicated region
    $region34: #{birnn_max_forward.1} parent=1 // pred_check
      _
    $region35: #{birnn_max_forward.1} parent=1 // pred_check_branch
      %43 = sbr.rel (0) target = $region37
    $region36: #{birnn_max_forward.1} parent=1 // pred_region
      %45 = vsyncadd [#allocation6], 0
      %s46 = sshll.u32 %s8, 4
      %s47 = int_to_ptr.hbm [resolvable:$true] %s46
      %s48 = sshll.u32 [#allocation5], 4
      %s49 = int_to_ptr.vmem [resolvable:$true] %s48
      %54 = dma.hbm_to_vmem [thread:$0]  %s47, 256, %s49, [#allocation6], 64, 64, 4
    $region37: #{birnn_max_forward.1} parent=1 // pred_fallthru
      _
    // Predicated region
    $region38: #{birnn_max_forward.1} parent=1 // pred_check
      _
    $region39: #{birnn_max_forward.1} parent=1 // pred_check_branch
      %56 = sbr.rel (0) target = $region41
    $region40: #{birnn_max_forward.1} parent=1 // pred_region
      %58 = vsyncadd [#allocation8], 0
      %s59 = sshll.u32 %s9, 4
      %s60 = int_to_ptr.hbm [resolvable:$true] %s59
      %s61 = sshll.u32 [#allocation7], 4
      %s62 = int_to_ptr.vmem [resolvable:$true] %s61
      %67 = dma.hbm_to_vmem [thread:$0]  %s60, 256, %s62, [#allocation8], 64, 64, 4
    $region41: #{birnn_max_forward.1} parent=1 // pred_fallthru
      _
    // Predicated region
    $region42: #{birnn_max_forward.1} parent=1 // pred_check
      _
    $region43: #{birnn_max_forward.1} parent=1 // pred_check_branch
      %69 = sbr.rel (0) target = $region45
    $region44: #{birnn_max_forward.1} parent=1 // pred_region
      _
    $region45: #{birnn_max_forward.1} parent=1 // pred_fallthru
      _
    // Predicated region
    $region46: #{birnn_max_forward.1} parent=1 // pred_check
      _
    $region47: #{birnn_max_forward.1} parent=1 // pred_check_branch
      %71 = sbr.rel (0) target = $region49
    $region48: #{birnn_max_forward.1} parent=1 // pred_region
      %73 = vsyncadd [#allocation8], 0
      %s75 = sshll.u32 %s11, 4
      %s76 = int_to_ptr.hbm [resolvable:$true] %s75
      %s77 = sshll.u32 [#allocation9], 4
      %s78 = int_to_ptr.vmem [resolvable:$true] %s77
      %80 = dma.hbm_to_vmem [thread:$0]  %s76, 16, %s78, [#allocation8]
    $region49: #{birnn_max_forward.1} parent=1 // pred_fallthru
      _
    // Predicated region
    $region50: #{birnn_max_forward.1} parent=1 // pred_check
      _
    $region51: #{birnn_max_forward.1} parent=1 // pred_check_branch
      %82 = sbr.rel (0) target = $region53
    $region52: #{birnn_max_forward.1} parent=1 // pred_region
      %84 = vsyncadd [#allocation11], 0
      %s86 = sshll.u32 %s12, 4
      %s87 = int_to_ptr.hbm [resolvable:$true] %s86
      %s88 = sshll.u32 [#allocation10], 4
      %s89 = int_to_ptr.vmem [resolvable:$true] %s88
      %91 = dma.hbm_to_vmem [thread:$0]  %s87, 16, %s89, [#allocation11]
    $region53: #{birnn_max_forward.1} parent=1 // pred_fallthru
      _
    // Predicated region
    $region54: #{birnn_max_forward.1} parent=1 // pred_check
      _
    $region55: #{birnn_max_forward.1} parent=1 // pred_check_branch
      %93 = sbr.rel (0) target = $region57
    $region56: #{birnn_max_forward.1} parent=1 // pred_region
      %95 = vsyncadd [#allocation11], 0
      %s97 = sshll.u32 %s13, 4
      %s98 = int_to_ptr.hbm [resolvable:$true] %s97
      %s99 = sshll.u32 [#allocation12], 4
      %s100 = int_to_ptr.vmem [resolvable:$true] %s99
      %102 = dma.hbm_to_vmem [thread:$0]  %s98, 16, %s100, [#allocation11]
    $region57: #{birnn_max_forward.1} parent=1 // pred_fallthru
      _
    // Predicated region
    $region58: #{birnn_max_forward.1} parent=1 // pred_check
      _
    $region59: #{birnn_max_forward.1} parent=1 // pred_check_branch
      %104 = sbr.rel (0) target = $region61
    $region60: #{birnn_max_forward.1} parent=1 // pred_region
      %106 = vsyncadd [#allocation14], 0
      %s108 = sshll.u32 %s14, 4
      %s109 = int_to_ptr.hbm [resolvable:$true] %s108
      %s110 = sshll.u32 [#allocation13], 4
      %s111 = int_to_ptr.vmem [resolvable:$true] %s110
      %113 = dma.hbm_to_vmem [thread:$0]  %s109, 16, %s111, [#allocation14]
    $region61: #{birnn_max_forward.1} parent=1 // pred_fallthru
      _
    // Predicated region
    $region62: #{birnn_max_forward.1} parent=1 // pred_check
      _
    $region63: #{birnn_max_forward.1} parent=1 // pred_check_branch
      %115 = sbr.rel (0) target = $region65
    $region64: #{birnn_max_forward.1} parent=1 // pred_region
      _
    $region65: #{birnn_max_forward.1} parent=1 // pred_fallthru
      _
    // Predicated region
    $region66: #{birnn_max_forward.1} parent=1 // pred_check
      _
    $region67: #{birnn_max_forward.1} parent=1 // pred_check_branch
      %117 = sbr.rel (0) target = $region69
    $region68: #{birnn_max_forward.1} parent=1 // pred_region
      _
    $region69: #{birnn_max_forward.1} parent=1 // pred_fallthru
      _
    // Predicated region
    $region70: #{birnn_max_forward.1} parent=1 // pred_check
      _
    $region71: #{birnn_max_forward.1} parent=1 // pred_check_branch
      %119 = sbr.rel (0) target = $region73
    $region72: #{birnn_max_forward.1} parent=1 // pred_region
      %121 = dma.done [#allocation6], 256
    $region73: #{birnn_max_forward.1} parent=1 // pred_fallthru
      _
    // Predicated region
    $region74: #{birnn_max_forward.1} parent=1 // pred_check
      _
    $region75: #{birnn_max_forward.1} parent=1 // pred_check_branch
      %123 = sbr.rel (0) target = $region77
    $region76: #{birnn_max_forward.1} parent=1 // pred_region
      %125 = dma.done [#allocation8], 256
    $region77: #{birnn_max_forward.1} parent=1 // pred_fallthru
      _
    // Predicated region
    $region78: #{birnn_max_forward.1} parent=1 // pred_check
      _
    $region79: #{birnn_max_forward.1} parent=1 // pred_check_branch
      %127 = sbr.rel (0) target = $region81
    $region80: #{birnn_max_forward.1} parent=1 // pred_region
      %129 = dma.done [#allocation8], 16
    $region81: #{birnn_max_forward.1} parent=1 // pred_fallthru
      _
    // Predicated region
    $region82: #{birnn_max_forward.1} parent=1 // pred_check
      _
    $region83: #{birnn_max_forward.1} parent=1 // pred_check_branch
      %131 = sbr.rel (0) target = $region85
    $region84: #{birnn_max_forward.1} parent=1 // pred_region
      %133 = dma.done [#allocation11], 16
    $region85: #{birnn_max_forward.1} parent=1 // pred_fallthru
      _
    // Predicated region
    $region86: #{birnn_max_forward.1} parent=1 // pred_check
      _
    $region87: #{birnn_max_forward.1} parent=1 // pred_check_branch
      %135 = sbr.rel (0) target = $region89
    $region88: #{birnn_max_forward.1} parent=1 // pred_region
      %137 = dma.done [#allocation11], 16
    $region89: #{birnn_max_forward.1} parent=1 // pred_fallthru
      _
    // Predicated region
    $region90: #{birnn_max_forward.1} parent=1 // pred_check
      _
    $region91: #{birnn_max_forward.1} parent=1 // pred_check_branch
      %139 = sbr.rel (0) target = $region93
    $region92: #{birnn_max_forward.1} parent=1 // pred_region
      %141 = dma.done [#allocation14], 16
    $region93: #{birnn_max_forward.1} parent=1 // pred_fallthru
      _
    %v143 = vlaneseq
    %v144 = vshrl.u32 %v143, 7
    %v145 = vadd.s32 %v144, 8
    %vm146 = vcmp.lt.s32.totalorder %v144, 8
    %vm147 = vcmp.lt.s32.totalorder %v145, 8
    %v148 = vld [vmem:[%s0] sm:$0xf]
    %v149 = vld [vmem:[%s0 + $0x4] sm:$0xf]
    %v150 = vld [vmem:[%s0 + $0x8] sm:$0xf]
    %v151 = vld [vmem:[%s0 + $0xc] sm:$0xf]
    %v152 = vld [vmem:[%s0 + $0x10] sm:$0xf]
    %v153 = vld [vmem:[%s0 + $0x14] sm:$0xf]
    %v154 = vld [vmem:[%s0 + $0x18] sm:$0xf]
    %v155 = vld [vmem:[%s0 + $0x1c] sm:$0xf]
    %v156 = vld [vmem:[%s1] sm:$0xff]
    %v157 = vld [vmem:[%s1 + $0x8] sm:$0xff]
    %v158 = vld [vmem:[%s3] sm:$0x3]
    %v160 = vperm.slane %v158, 0
    %v161 = vperm.slane %v158, 1
    %v172 = vunpack.c.l.b16 %v148
    %v173 = vunpack.c.l.b16 %v149
    %v174 = vunpack.c.l.b16 %v150
    %v175 = vunpack.c.l.b16 %v151
    %v176 = vunpack.c.l.b16 %v152
    %v177 = vunpack.c.l.b16 %v153
    %v178 = vunpack.c.l.b16 %v154
    %v179 = vunpack.c.l.b16 %v155
    %v180 = vpack.c.b16 %v173, %v172
    %v181 = vpack.c.b16 %v175, %v174
    %v182 = vpack.c.b16 %v177, %v176
    %v183 = vpack.c.b16 %v179, %v178
    %v186 = vunpack.c.l.b16 %v156
    %v187 = vunpack.c.h.b16 %v156
    %v188 = vunpack.c.l.b16 %v157
    %v189 = vunpack.c.h.b16 %v157
    %v190 = vpack.c.b16 %v188, %v186
    %v191 = vpack.c.b16 %v189, %v187
    %vm194 = vcmask 130048
    %v196 = vsel %vm194, %v180, 0
    %v199 = vsel %vm194, %v181, 0
    %v202 = vsel %vm194, %v182, 0
    %v205 = vsel %vm194, %v183, 0
    %207 = vmatpush.bf16.msra.mxu0 0
    %208 = vmatpush.bf16.msra.mxu0 0
    %209 = vmatpush.bf16.msra.mxu0 0
    %210 = vmatpush.bf16.msra.mxu0 0
    %211 = vmatpush.bf16.msra.mxu0 0
    %212 = vmatpush.bf16.msra.mxu0 0
    %213 = vmatpush.bf16.msra.mxu0 0
    %214 = vmatpush.bf16.msra.mxu0 %v190
    %215 = vmatmul.bf16.gmra.mxu0 %v196
    %v216 = vpop.f32.mrf.mxu0
    %v217 = vadd.f32 %v160, %v216
    %v218 = vpop.f32.mrf.mxu0
    %v219 = vadd.f32 %v160, %v218
    %220 = vmatmul.bf16.gmra.mxu0 %v199
    %v221 = vpop.f32.mrf.mxu0
    %v222 = vadd.f32 %v160, %v221
    %v223 = vpop.f32.mrf.mxu0
    %v224 = vadd.f32 %v160, %v223
    %225 = vmatmul.bf16.gmra.mxu0 %v202
    %v226 = vpop.f32.mrf.mxu0
    %v227 = vadd.f32 %v160, %v226
    %v228 = vpop.f32.mrf.mxu0
    %v229 = vadd.f32 %v160, %v228
    %230 = vmatmul.bf16.gmra.mxu0 %v205
    %v231 = vpop.f32.mrf.mxu0
    %v232 = vadd.f32 %v160, %v231
    %v233 = vpop.f32.mrf.mxu0
    %v234 = vadd.f32 %v160, %v233
    %235 = vdwg.mxu0
    %236 = vmatpush.bf16.msra.mxu0 0
    %237 = vmatpush.bf16.msra.mxu0 0
    %238 = vmatpush.bf16.msra.mxu0 0
    %239 = vmatpush.bf16.msra.mxu0 0
    %240 = vmatpush.bf16.msra.mxu0 0
    %241 = vmatpush.bf16.msra.mxu0 0
    %242 = vmatpush.bf16.msra.mxu0 0
    %243 = vmatpush.bf16.msra.mxu0 %v191
    %244 = vmatmul.bf16.gmra.mxu0 %v196
    %v245 = vpop.f32.mrf.mxu0
    %v246 = vadd.f32 %v161, %v245
    %v247 = vpop.f32.mrf.mxu0
    %v248 = vadd.f32 %v161, %v247
    %249 = vmatmul.bf16.gmra.mxu0 %v199
    %v250 = vpop.f32.mrf.mxu0
    %v251 = vadd.f32 %v161, %v250
    %v252 = vpop.f32.mrf.mxu0
    %v253 = vadd.f32 %v161, %v252
    %254 = vmatmul.bf16.gmra.mxu0 %v202
    %v255 = vpop.f32.mrf.mxu0
    %v256 = vadd.f32 %v161, %v255
    %v257 = vpop.f32.mrf.mxu0
    %v258 = vadd.f32 %v161, %v257
    %259 = vmatmul.bf16.gmra.mxu0 %v205
    %v260 = vpop.f32.mrf.mxu0
    %v261 = vadd.f32 %v161, %v260
    %v262 = vpop.f32.mrf.mxu0
    %v263 = vadd.f32 %v161, %v262
    %264 = vdwg.mxu0
    %265 = vst [vmem:[#allocation2] sm:$0xff] %v217
    %266 = vst [vmem:[#allocation2 + $0x8] sm:$0xff] %v246
    %267 = vst [vmem:[#allocation2 + $0x10] sm:$0xff] %v219
    %268 = vst [vmem:[#allocation2 + $0x18] sm:$0xff] %v248
    %269 = vst [vmem:[#allocation2 + $0x20] sm:$0xff] %v222
    %270 = vst [vmem:[#allocation2 + $0x28] sm:$0xff] %v251
    %271 = vst [vmem:[#allocation2 + $0x30] sm:$0xff] %v224
    %272 = vst [vmem:[#allocation2 + $0x38] sm:$0xff] %v253
    %273 = vst [vmem:[#allocation2 + $0x40] sm:$0xff] %v227
    %274 = vst [vmem:[#allocation2 + $0x48] sm:$0xff] %v256
    %275 = vst [vmem:[#allocation2 + $0x50] sm:$0xff] %v229
    %276 = vst [vmem:[#allocation2 + $0x58] sm:$0xff] %v258
    %277 = vst [vmem:[#allocation2 + $0x60] sm:$0xff] %v232
    %278 = vst [vmem:[#allocation2 + $0x68] sm:$0xff] %v261
    %279 = vst [vmem:[#allocation2 + $0x70] sm:$0xff] %v234
    %280 = vst [vmem:[#allocation2 + $0x78] sm:$0xff] %v263
    %v281 = vld [vmem:[%s2] sm:$0xff]
    %v282 = vld [vmem:[%s2 + $0x8] sm:$0xff]
    %v283 = vld [vmem:[%s2 + $0x10] sm:$0xff]
    %v284 = vld [vmem:[%s2 + $0x18] sm:$0xff]
    %v289 = vunpack.c.l.b16 %v281
    %v290 = vunpack.c.h.b16 %v281
    %v291 = vunpack.c.l.b16 %v282
    %v292 = vunpack.c.h.b16 %v282
    %v293 = vunpack.c.l.b16 %v283
    %v294 = vunpack.c.h.b16 %v283
    %v295 = vunpack.c.l.b16 %v284
    %v296 = vunpack.c.h.b16 %v284
    %v297 = vpack.c.b16 %v291, %v289
    %v298 = vpack.c.b16 %v292, %v290
    %v299 = vpack.c.b16 %v295, %v293
    %v300 = vpack.c.b16 %v296, %v294
    %vm305 = vcmask 261120
    %v307 = vsel %vm305, 0, 0
    %309 = vmatpush.bf16.msra.mxu0 0
    %310 = vmatpush.bf16.msra.mxu0 0
    %311 = vmatpush.bf16.msra.mxu0 0
    %312 = vmatpush.bf16.msra.mxu0 0
    %313 = vmatpush.bf16.msra.mxu0 0
    %314 = vmatpush.bf16.msra.mxu0 0
    %315 = vmatpush.bf16.msra.mxu0 %v299
    %316 = vmatpush.bf16.msra.mxu0 %v297
    %317 = vmatmul.bf16.gmra.mxu0 %v307
    %v318 = vpop.f32.mrf.mxu0
    %v319 = vadd.f32 0.0, %v318
    %v320 = vpop.f32.mrf.mxu0
    %v321 = vadd.f32 0.0, %v320
    %322 = vdwg.mxu0
    %323 = vmatpush.bf16.msra.mxu0 0
    %324 = vmatpush.bf16.msra.mxu0 0
    %325 = vmatpush.bf16.msra.mxu0 0
    %326 = vmatpush.bf16.msra.mxu0 0
    %327 = vmatpush.bf16.msra.mxu0 0
    %328 = vmatpush.bf16.msra.mxu0 0
    %329 = vmatpush.bf16.msra.mxu0 %v300
    %330 = vmatpush.bf16.msra.mxu0 %v298
    %331 = vmatmul.bf16.gmra.mxu0 %v307
    %v332 = vpop.f32.mrf.mxu0
    %v333 = vadd.f32 0.0, %v332
    %v334 = vpop.f32.mrf.mxu0
    %v335 = vadd.f32 0.0, %v334
    %336 = vdwg.mxu0
    %s337 = smul.u32 0, 2
    %s338 = smul.addr %s337, 8
    %s339 = scalar_lea.vmem [#allocation2], %s338
    %v340 = vld [vmem:[%s339] sm:$0xff]
    %s341 = smul.u32 7, 2
    %s342 = smul.addr %s341, 8
    %s343 = scalar_lea.vmem [#allocation2], %s342
    %v344 = vld [vmem:[%s343 + $0x8] sm:$0xff]
    %v345 = vsel %vm146, %v319, %v333
    %v346 = vsel %vm147, %v321, %v335
    %v347 = vadd.f32 %v340, %v345
    %v348 = vadd.f32 %v344, %v346
    %v349 = vxor.u32 %v347, 2147483648
    %v350 = vxor.u32 %v348, 2147483648
    %v351 = vmul.f32 %v349, 1.442695
    %v352 = vpow.pop %v351
    %v353 = vmul.f32 %v350, 1.442695
    %v354 = vpow.pop %v353
    %v355 = vadd.f32 %v352, 1.0
    %v356 = vadd.f32 %v354, 1.0
    %v357 = vrcp.pop %v355
    %v358 = vmul.f32 %v355, %v357
    %v359 = vsub.f32 1.0, %v358
    %v360 = vmul.f32 %v357, %v359
    %v361 = vadd.f32 %v357, %v360
    %vm362 = vweird.f32 %v355
    %vm363 = vweird.f32 %v357
    %vm364 = vmor %vm362, %vm363
    %v365 = vsel %vm364, %v357, %v361
    %v366 = vand.u32 2147483647, %v355
    %vm367 = vcmp.eq.f32.partialorder %v366, 8.507059e+37
    %v368 = vand.u32 %v355, 2147483648
    %v369 = vor.u32 1.1754944e-38, %v368
    %v370 = vsel %vm367, %v369, %v365
    %v371 = vmul.f32 1.0, %v370
    %v372 = vrcp.pop %v356
    %v373 = vmul.f32 %v356, %v372
    %v374 = vsub.f32 1.0, %v373
    %v375 = vmul.f32 %v372, %v374
    %v376 = vadd.f32 %v372, %v375
    %vm377 = vweird.f32 %v356
    %vm378 = vweird.f32 %v372
    %vm379 = vmor %vm377, %vm378
    %v380 = vsel %vm379, %v372, %v376
    %v381 = vand.u32 2147483647, %v356
    %vm382 = vcmp.eq.f32.partialorder %v381, 8.507059e+37
    %v383 = vand.u32 %v356, 2147483648
    %v384 = vor.u32 1.1754944e-38, %v383
    %v385 = vsel %vm382, %v384, %v380
    %v386 = vmul.f32 1.0, %v385
    %v387 = vtanh.pop %v347
    %v388 = vtanh.pop %v348
    %v389 = vmul.f32 %v371, 0.0
    %v390 = vmul.f32 %v386, 0.0
    %393 = vrot.lane.b32.xlu0 %v387, 64
    %v394 = vpop.permute.xlu0 %393
    %395 = vrot.lane.b32.xlu0 %v388, 64
    %v396 = vpop.permute.xlu0 %395
    %v399 = vmul.f32 %v371, %v394
    %v400 = vmul.f32 %v386, %v396
    %403 = vrot.lane.b32.xlu0 %v399, 32
    %v404 = vpop.permute.xlu0 %403
    %405 = vrot.lane.b32.xlu0 %v400, 32
    %v406 = vpop.permute.xlu0 %405
    %v409 = vadd.f32 %v389, %v404
    %v410 = vadd.f32 %v390, %v406
    %v411 = vtanh.pop %v409
    %v412 = vtanh.pop %v410
    %415 = vrot.lane.b32.xlu0 %v411, 64
    %v416 = vpop.permute.xlu0 %415
    %417 = vrot.lane.b32.xlu0 %v412, 64
    %v418 = vpop.permute.xlu0 %417
    %v421 = vmul.f32 %v371, %v416
    %v422 = vmul.f32 %v386, %v418
    %v423 = vpack.c.bf16 %v422, %v421
    %425 = vrot.lane.b32.xlu0 %v421, 32
    %v426 = vpop.permute.xlu0 %425
    %428 = vst.msk [vmem:[#allocation3] sm:$0xff] %vm305, %v426
    %430 = vrot.lane.b32.xlu0 %v422, 32
    %v431 = vpop.permute.xlu0 %430
    %s433 = scalar_lea.vmem [#allocation4], 56
    %434 = vst.msk [vmem:[%s433] sm:$0xff] %vm305, %v431
    %436 = vrot.lane.b32.xlu0 %v423, 32
    %v437 = vpop.permute.xlu0 %436
    %v439 = vsel %vm305, %v437, 0
    %441 = vmatpush.bf16.msra.mxu0 0
    %442 = vmatpush.bf16.msra.mxu0 0
    %443 = vmatpush.bf16.msra.mxu0 0
    %444 = vmatpush.bf16.msra.mxu0 0
    %445 = vmatpush.bf16.msra.mxu0 0
    %446 = vmatpush.bf16.msra.mxu0 0
    %447 = vmatpush.bf16.msra.mxu0 %v299
    %448 = vmatpush.bf16.msra.mxu0 %v297
    %449 = vmatmul.bf16.gmra.mxu0 %v439
    %v450 = vpop.f32.mrf.mxu0
    %v451 = vadd.f32 0.0, %v450
    %v452 = vpop.f32.mrf.mxu0
    %v453 = vadd.f32 0.0, %v452
    %454 = vdwg.mxu0
    %455 = vmatpush.bf16.msra.mxu0 0
    %456 = vmatpush.bf16.msra.mxu0 0
    %457 = vmatpush.bf16.msra.mxu0 0
    %458 = vmatpush.bf16.msra.mxu0 0
    %459 = vmatpush.bf16.msra.mxu0 0
    %460 = vmatpush.bf16.msra.mxu0 0
    %461 = vmatpush.bf16.msra.mxu0 %v300
    %462 = vmatpush.bf16.msra.mxu0 %v298
    %463 = vmatmul.bf16.gmra.mxu0 %v439
    %v464 = vpop.f32.mrf.mxu0
    %v465 = vadd.f32 0.0, %v464
    %v466 = vpop.f32.mrf.mxu0
    %v467 = vadd.f32 0.0, %v466
    %468 = vdwg.mxu0
    %s469 = smul.u32 1, 2
    %s470 = smul.addr %s469, 8
    %s471 = scalar_lea.vmem [#allocation2], %s470
    %v472 = vld [vmem:[%s471] sm:$0xff]
    %s473 = smul.u32 6, 2
    %s474 = smul.addr %s473, 8
    %s475 = scalar_lea.vmem [#allocation2], %s474
    %v476 = vld [vmem:[%s475 + $0x8] sm:$0xff]
    %v477 = vsel %vm146, %v451, %v465
    %v478 = vsel %vm147, %v453, %v467
    %v479 = vadd.f32 %v472, %v477
    %v480 = vadd.f32 %v476, %v478
    %v481 = vxor.u32 %v479, 2147483648
    %v482 = vxor.u32 %v480, 2147483648
    %v483 = vmul.f32 %v481, 1.442695
    %v484 = vpow.pop %v483
    %v485 = vmul.f32 %v482, 1.442695
    %v486 = vpow.pop %v485
    %v487 = vadd.f32 %v484, 1.0
    %v488 = vadd.f32 %v486, 1.0
    %v489 = vrcp.pop %v487
    %v490 = vmul.f32 %v487, %v489
    %v491 = vsub.f32 1.0, %v490
    %v492 = vmul.f32 %v489, %v491
    %v493 = vadd.f32 %v489, %v492
    %vm494 = vweird.f32 %v487
    %vm495 = vweird.f32 %v489
    %vm496 = vmor %vm494, %vm495
    %v497 = vsel %vm496, %v489, %v493
    %v498 = vand.u32 2147483647, %v487
    %vm499 = vcmp.eq.f32.partialorder %v498, 8.507059e+37
    %v500 = vand.u32 %v487, 2147483648
    %v501 = vor.u32 1.1754944e-38, %v500
    %v502 = vsel %vm499, %v501, %v497
    %v503 = vmul.f32 1.0, %v502
    %v504 = vrcp.pop %v488
    %v505 = vmul.f32 %v488, %v504
    %v506 = vsub.f32 1.0, %v505
    %v507 = vmul.f32 %v504, %v506
    %v508 = vadd.f32 %v504, %v507
    %vm509 = vweird.f32 %v488
    %vm510 = vweird.f32 %v504
    %vm511 = vmor %vm509, %vm510
    %v512 = vsel %vm511, %v504, %v508
    %v513 = vand.u32 2147483647, %v488
    %vm514 = vcmp.eq.f32.partialorder %v513, 8.507059e+37
    %v515 = vand.u32 %v488, 2147483648
    %v516 = vor.u32 1.1754944e-38, %v515
    %v517 = vsel %vm514, %v516, %v512
    %v518 = vmul.f32 1.0, %v517
    %v519 = vtanh.pop %v479
    %v520 = vtanh.pop %v480
    %v521 = vmul.f32 %v503, %v409
    %v522 = vmul.f32 %v518, %v410
    %525 = vrot.lane.b32.xlu0 %v519, 64
    %v526 = vpop.permute.xlu0 %525
    %527 = vrot.lane.b32.xlu0 %v520, 64
    %v528 = vpop.permute.xlu0 %527
    %v531 = vmul.f32 %v503, %v526
    %v532 = vmul.f32 %v518, %v528
    %535 = vrot.lane.b32.xlu0 %v531, 32
    %v536 = vpop.permute.xlu0 %535
    %537 = vrot.lane.b32.xlu0 %v532, 32
    %v538 = vpop.permute.xlu0 %537
    %v541 = vadd.f32 %v521, %v536
    %v542 = vadd.f32 %v522, %v538
    %v543 = vtanh.pop %v541
    %v544 = vtanh.pop %v542
    %547 = vrot.lane.b32.xlu0 %v543, 64
    %v548 = vpop.permute.xlu0 %547
    %549 = vrot.lane.b32.xlu0 %v544, 64
    %v550 = vpop.permute.xlu0 %549
    %v553 = vmul.f32 %v503, %v548
    %v554 = vmul.f32 %v518, %v550
    %v555 = vpack.c.bf16 %v554, %v553
    %557 = vrot.lane.b32.xlu0 %v553, 32
    %v558 = vpop.permute.xlu0 %557
    %s560 = scalar_lea.vmem [#allocation3], 8
    %561 = vst.msk [vmem:[%s560] sm:$0xff] %vm305, %v558
    %563 = vrot.lane.b32.xlu0 %v554, 32
    %v564 = vpop.permute.xlu0 %563
    %s566 = scalar_lea.vmem [#allocation4], 48
    %567 = vst.msk [vmem:[%s566] sm:$0xff] %vm305, %v564
    %569 = vrot.lane.b32.xlu0 %v555, 32
    %v570 = vpop.permute.xlu0 %569
    %v572 = vsel %vm305, %v570, 0
    %574 = vmatpush.bf16.msra.mxu0 0
    %575 = vmatpush.bf16.msra.mxu0 0
    %576 = vmatpush.bf16.msra.mxu0 0
    %577 = vmatpush.bf16.msra.mxu0 0
    %578 = vmatpush.bf16.msra.mxu0 0
    %579 = vmatpush.bf16.msra.mxu0 0
    %580 = vmatpush.bf16.msra.mxu0 %v299
    %581 = vmatpush.bf16.msra.mxu0 %v297
    %582 = vmatmul.bf16.gmra.mxu0 %v572
    %v583 = vpop.f32.mrf.mxu0
    %v584 = vadd.f32 0.0, %v583
    %v585 = vpop.f32.mrf.mxu0
    %v586 = vadd.f32 0.0, %v585
    %587 = vdwg.mxu0
    %588 = vmatpush.bf16.msra.mxu0 0
    %589 = vmatpush.bf16.msra.mxu0 0
    %590 = vmatpush.bf16.msra.mxu0 0
    %591 = vmatpush.bf16.msra.mxu0 0
    %592 = vmatpush.bf16.msra.mxu0 0
    %593 = vmatpush.bf16.msra.mxu0 0
    %594 = vmatpush.bf16.msra.mxu0 %v300
    %595 = vmatpush.bf16.msra.mxu0 %v298
    %596 = vmatmul.bf16.gmra.mxu0 %v572
    %v597 = vpop.f32.mrf.mxu0
    %v598 = vadd.f32 0.0, %v597
    %v599 = vpop.f32.mrf.mxu0
    %v600 = vadd.f32 0.0, %v599
    %601 = vdwg.mxu0
    %s602 = smul.u32 2, 2
    %s603 = smul.addr %s602, 8
    %s604 = scalar_lea.vmem [#allocation2], %s603
    %v605 = vld [vmem:[%s604] sm:$0xff]
    %s606 = smul.u32 5, 2
    %s607 = smul.addr %s606, 8
    %s608 = scalar_lea.vmem [#allocation2], %s607
    %v609 = vld [vmem:[%s608 + $0x8] sm:$0xff]
    %v610 = vsel %vm146, %v584, %v598
    %v611 = vsel %vm147, %v586, %v600
    %v612 = vadd.f32 %v605, %v610
    %v613 = vadd.f32 %v609, %v611
    %v614 = vxor.u32 %v612, 2147483648
    %v615 = vxor.u32 %v613, 2147483648
    %v616 = vmul.f32 %v614, 1.442695
    %v617 = vpow.pop %v616
    %v618 = vmul.f32 %v615, 1.442695
    %v619 = vpow.pop %v618
    %v620 = vadd.f32 %v617, 1.0
    %v621 = vadd.f32 %v619, 1.0
    %v622 = vrcp.pop %v620
    %v623 = vmul.f32 %v620, %v622
    %v624 = vsub.f32 1.0, %v623
    %v625 = vmul.f32 %v622, %v624
    %v626 = vadd.f32 %v622, %v625
    %vm627 = vweird.f32 %v620
    %vm628 = vweird.f32 %v622
    %vm629 = vmor %vm627, %vm628
    %v630 = vsel %vm629, %v622, %v626
    %v631 = vand.u32 2147483647, %v620
    %vm632 = vcmp.eq.f32.partialorder %v631, 8.507059e+37
    %v633 = vand.u32 %v620, 2147483648
    %v634 = vor.u32 1.1754944e-38, %v633
    %v635 = vsel %vm632, %v634, %v630
    %v636 = vmul.f32 1.0, %v635
    %v637 = vrcp.pop %v621
    %v638 = vmul.f32 %v621, %v637
    %v639 = vsub.f32 1.0, %v638
    %v640 = vmul.f32 %v637, %v639
    %v641 = vadd.f32 %v637, %v640
    %vm642 = vweird.f32 %v621
    %vm643 = vweird.f32 %v637
    %vm644 = vmor %vm642, %vm643
    %v645 = vsel %vm644, %v637, %v641
    %v646 = vand.u32 2147483647, %v621
    %vm647 = vcmp.eq.f32.partialorder %v646, 8.507059e+37
    %v648 = vand.u32 %v621, 2147483648
    %v649 = vor.u32 1.1754944e-38, %v648
    %v650 = vsel %vm647, %v649, %v645
    %v651 = vmul.f32 1.0, %v650
    %v652 = vtanh.pop %v612
    %v653 = vtanh.pop %v613
    %v654 = vmul.f32 %v636, %v541
    %v655 = vmul.f32 %v651, %v542
    %658 = vrot.lane.b32.xlu0 %v652, 64
    %v659 = vpop.permute.xlu0 %658
    %660 = vrot.lane.b32.xlu0 %v653, 64
    %v661 = vpop.permute.xlu0 %660
    %v664 = vmul.f32 %v636, %v659
    %v665 = vmul.f32 %v651, %v661
    %668 = vrot.lane.b32.xlu0 %v664, 32
    %v669 = vpop.permute.xlu0 %668
    %670 = vrot.lane.b32.xlu0 %v665, 32
    %v671 = vpop.permute.xlu0 %670
    %v674 = vadd.f32 %v654, %v669
    %v675 = vadd.f32 %v655, %v671
    %v676 = vtanh.pop %v674
    %v677 = vtanh.pop %v675
    %680 = vrot.lane.b32.xlu0 %v676, 64
    %v681 = vpop.permute.xlu0 %680
    %682 = vrot.lane.b32.xlu0 %v677, 64
    %v683 = vpop.permute.xlu0 %682
    %v686 = vmul.f32 %v636, %v681
    %v687 = vmul.f32 %v651, %v683
    %v688 = vpack.c.bf16 %v687, %v686
    %690 = vrot.lane.b32.xlu0 %v686, 32
    %v691 = vpop.permute.xlu0 %690
    %s693 = scalar_lea.vmem [#allocation3], 16
    %694 = vst.msk [vmem:[%s693] sm:$0xff] %vm305, %v691
    %696 = vrot.lane.b32.xlu0 %v687, 32
    %v697 = vpop.permute.xlu0 %696
    %s699 = scalar_lea.vmem [#allocation4], 40
    %700 = vst.msk [vmem:[%s699] sm:$0xff] %vm305, %v697
    %702 = vrot.lane.b32.xlu0 %v688, 32
    %v703 = vpop.permute.xlu0 %702
    %v705 = vsel %vm305, %v703, 0
    %707 = vmatpush.bf16.msra.mxu0 0
    %708 = vmatpush.bf16.msra.mxu0 0
    %709 = vmatpush.bf16.msra.mxu0 0
    %710 = vmatpush.bf16.msra.mxu0 0
    %711 = vmatpush.bf16.msra.mxu0 0
    %712 = vmatpush.bf16.msra.mxu0 0
    %713 = vmatpush.bf16.msra.mxu0 %v299
    %714 = vmatpush.bf16.msra.mxu0 %v297
    %715 = vmatmul.bf16.gmra.mxu0 %v705
    %v716 = vpop.f32.mrf.mxu0
    %v717 = vadd.f32 0.0, %v716
    %v718 = vpop.f32.mrf.mxu0
    %v719 = vadd.f32 0.0, %v718
    %720 = vdwg.mxu0
    %721 = vmatpush.bf16.msra.mxu0 0
    %722 = vmatpush.bf16.msra.mxu0 0
    %723 = vmatpush.bf16.msra.mxu0 0
    %724 = vmatpush.bf16.msra.mxu0 0
    %725 = vmatpush.bf16.msra.mxu0 0
    %726 = vmatpush.bf16.msra.mxu0 0
    %727 = vmatpush.bf16.msra.mxu0 %v300
    %728 = vmatpush.bf16.msra.mxu0 %v298
    %729 = vmatmul.bf16.gmra.mxu0 %v705
    %v730 = vpop.f32.mrf.mxu0
    %v731 = vadd.f32 0.0, %v730
    %v732 = vpop.f32.mrf.mxu0
    %v733 = vadd.f32 0.0, %v732
    %734 = vdwg.mxu0
    %s735 = smul.u32 3, 2
    %s736 = smul.addr %s735, 8
    %s737 = scalar_lea.vmem [#allocation2], %s736
    %v738 = vld [vmem:[%s737] sm:$0xff]
    %s739 = smul.u32 4, 2
    %s740 = smul.addr %s739, 8
    %s741 = scalar_lea.vmem [#allocation2], %s740
    %v742 = vld [vmem:[%s741 + $0x8] sm:$0xff]
    %v743 = vsel %vm146, %v717, %v731
    %v744 = vsel %vm147, %v719, %v733
    %v745 = vadd.f32 %v738, %v743
    %v746 = vadd.f32 %v742, %v744
    %v747 = vxor.u32 %v745, 2147483648
    %v748 = vxor.u32 %v746, 2147483648
    %v749 = vmul.f32 %v747, 1.442695
    %v750 = vpow.pop %v749
    %v751 = vmul.f32 %v748, 1.442695
    %v752 = vpow.pop %v751
    %v753 = vadd.f32 %v750, 1.0
    %v754 = vadd.f32 %v752, 1.0
    %v755 = vrcp.pop %v753
    %v756 = vmul.f32 %v753, %v755
    %v757 = vsub.f32 1.0, %v756
    %v758 = vmul.f32 %v755, %v757
    %v759 = vadd.f32 %v755, %v758
    %vm760 = vweird.f32 %v753
    %vm761 = vweird.f32 %v755
    %vm762 = vmor %vm760, %vm761
    %v763 = vsel %vm762, %v755, %v759
    %v764 = vand.u32 2147483647, %v753
    %vm765 = vcmp.eq.f32.partialorder %v764, 8.507059e+37
    %v766 = vand.u32 %v753, 2147483648
    %v767 = vor.u32 1.1754944e-38, %v766
    %v768 = vsel %vm765, %v767, %v763
    %v769 = vmul.f32 1.0, %v768
    %v770 = vrcp.pop %v754
    %v771 = vmul.f32 %v754, %v770
    %v772 = vsub.f32 1.0, %v771
    %v773 = vmul.f32 %v770, %v772
    %v774 = vadd.f32 %v770, %v773
    %vm775 = vweird.f32 %v754
    %vm776 = vweird.f32 %v770
    %vm777 = vmor %vm775, %vm776
    %v778 = vsel %vm777, %v770, %v774
    %v779 = vand.u32 2147483647, %v754
    %vm780 = vcmp.eq.f32.partialorder %v779, 8.507059e+37
    %v781 = vand.u32 %v754, 2147483648
    %v782 = vor.u32 1.1754944e-38, %v781
    %v783 = vsel %vm780, %v782, %v778
    %v784 = vmul.f32 1.0, %v783
    %v785 = vtanh.pop %v745
    %v786 = vtanh.pop %v746
    %v787 = vmul.f32 %v769, %v674
    %v788 = vmul.f32 %v784, %v675
    %791 = vrot.lane.b32.xlu0 %v785, 64
    %v792 = vpop.permute.xlu0 %791
    %793 = vrot.lane.b32.xlu0 %v786, 64
    %v794 = vpop.permute.xlu0 %793
    %v797 = vmul.f32 %v769, %v792
    %v798 = vmul.f32 %v784, %v794
    %801 = vrot.lane.b32.xlu0 %v797, 32
    %v802 = vpop.permute.xlu0 %801
    %803 = vrot.lane.b32.xlu0 %v798, 32
    %v804 = vpop.permute.xlu0 %803
    %v807 = vadd.f32 %v787, %v802
    %v808 = vadd.f32 %v788, %v804
    %v809 = vtanh.pop %v807
    %v810 = vtanh.pop %v808
    %813 = vrot.lane.b32.xlu0 %v809, 64
    %v814 = vpop.permute.xlu0 %813
    %815 = vrot.lane.b32.xlu0 %v810, 64
    %v816 = vpop.permute.xlu0 %815
    %v819 = vmul.f32 %v769, %v814
    %v820 = vmul.f32 %v784, %v816
    %v821 = vpack.c.bf16 %v820, %v819
    %823 = vrot.lane.b32.xlu0 %v819, 32
    %v824 = vpop.permute.xlu0 %823
    %s826 = scalar_lea.vmem [#allocation3], 24
    %827 = vst.msk [vmem:[%s826] sm:$0xff] %vm305, %v824
    %829 = vrot.lane.b32.xlu0 %v820, 32
    %v830 = vpop.permute.xlu0 %829
    %s832 = scalar_lea.vmem [#allocation4], 32
    %833 = vst.msk [vmem:[%s832] sm:$0xff] %vm305, %v830
    %835 = vrot.lane.b32.xlu0 %v821, 32
    %v836 = vpop.permute.xlu0 %835
    %v838 = vsel %vm305, %v836, 0
    %840 = vmatpush.bf16.msra.mxu0 0
    %841 = vmatpush.bf16.msra.mxu0 0
    %842 = vmatpush.bf16.msra.mxu0 0
    %843 = vmatpush.bf16.msra.mxu0 0
    %844 = vmatpush.bf16.msra.mxu0 0
    %845 = vmatpush.bf16.msra.mxu0 0
    %846 = vmatpush.bf16.msra.mxu0 %v299
    %847 = vmatpush.bf16.msra.mxu0 %v297
    %848 = vmatmul.bf16.gmra.mxu0 %v838
    %v849 = vpop.f32.mrf.mxu0
    %v850 = vadd.f32 0.0, %v849
    %v851 = vpop.f32.mrf.mxu0
    %v852 = vadd.f32 0.0, %v851
    %853 = vdwg.mxu0
    %854 = vmatpush.bf16.msra.mxu0 0
    %855 = vmatpush.bf16.msra.mxu0 0
    %856 = vmatpush.bf16.msra.mxu0 0
    %857 = vmatpush.bf16.msra.mxu0 0
    %858 = vmatpush.bf16.msra.mxu0 0
    %859 = vmatpush.bf16.msra.mxu0 0
    %860 = vmatpush.bf16.msra.mxu0 %v300
    %861 = vmatpush.bf16.msra.mxu0 %v298
    %862 = vmatmul.bf16.gmra.mxu0 %v838
    %v863 = vpop.f32.mrf.mxu0
    %v864 = vadd.f32 0.0, %v863
    %v865 = vpop.f32.mrf.mxu0
    %v866 = vadd.f32 0.0, %v865
    %867 = vdwg.mxu0
    %v868 = vld [vmem:[%s741] sm:$0xff]
    %v869 = vld [vmem:[%s737 + $0x8] sm:$0xff]
    %v870 = vsel %vm146, %v850, %v864
    %v871 = vsel %vm147, %v852, %v866
    %v872 = vadd.f32 %v868, %v870
    %v873 = vadd.f32 %v869, %v871
    %v874 = vxor.u32 %v872, 2147483648
    %v875 = vxor.u32 %v873, 2147483648
    %v876 = vmul.f32 %v874, 1.442695
    %v877 = vpow.pop %v876
    %v878 = vmul.f32 %v875, 1.442695
    %v879 = vpow.pop %v878
    %v880 = vadd.f32 %v877, 1.0
    %v881 = vadd.f32 %v879, 1.0
    %v882 = vrcp.pop %v880
    %v883 = vmul.f32 %v880, %v882
    %v884 = vsub.f32 1.0, %v883
    %v885 = vmul.f32 %v882, %v884
    %v886 = vadd.f32 %v882, %v885
    %vm887 = vweird.f32 %v880
    %vm888 = vweird.f32 %v882
    %vm889 = vmor %vm887, %vm888
    %v890 = vsel %vm889, %v882, %v886
    %v891 = vand.u32 2147483647, %v880
    %vm892 = vcmp.eq.f32.partialorder %v891, 8.507059e+37
    %v893 = vand.u32 %v880, 2147483648
    %v894 = vor.u32 1.1754944e-38, %v893
    %v895 = vsel %vm892, %v894, %v890
    %v896 = vmul.f32 1.0, %v895
    %v897 = vrcp.pop %v881
    %v898 = vmul.f32 %v881, %v897
    %v899 = vsub.f32 1.0, %v898
    %v900 = vmul.f32 %v897, %v899
    %v901 = vadd.f32 %v897, %v900
    %vm902 = vweird.f32 %v881
    %vm903 = vweird.f32 %v897
    %vm904 = vmor %vm902, %vm903
    %v905 = vsel %vm904, %v897, %v901
    %v906 = vand.u32 2147483647, %v881
    %vm907 = vcmp.eq.f32.partialorder %v906, 8.507059e+37
    %v908 = vand.u32 %v881, 2147483648
    %v909 = vor.u32 1.1754944e-38, %v908
    %v910 = vsel %vm907, %v909, %v905
    %v911 = vmul.f32 1.0, %v910
    %v912 = vtanh.pop %v872
    %v913 = vtanh.pop %v873
    %v914 = vmul.f32 %v896, %v807
    %v915 = vmul.f32 %v911, %v808
    %918 = vrot.lane.b32.xlu0 %v912, 64
    %v919 = vpop.permute.xlu0 %918
    %920 = vrot.lane.b32.xlu0 %v913, 64
    %v921 = vpop.permute.xlu0 %920
    %v924 = vmul.f32 %v896, %v919
    %v925 = vmul.f32 %v911, %v921
    %928 = vrot.lane.b32.xlu0 %v924, 32
    %v929 = vpop.permute.xlu0 %928
    %930 = vrot.lane.b32.xlu0 %v925, 32
    %v931 = vpop.permute.xlu0 %930
    %v934 = vadd.f32 %v914, %v929
    %v935 = vadd.f32 %v915, %v931
    %v936 = vtanh.pop %v934
    %v937 = vtanh.pop %v935
    %940 = vrot.lane.b32.xlu0 %v936, 64
    %v941 = vpop.permute.xlu0 %940
    %942 = vrot.lane.b32.xlu0 %v937, 64
    %v943 = vpop.permute.xlu0 %942
    %v946 = vmul.f32 %v896, %v941
    %v947 = vmul.f32 %v911, %v943
    %v948 = vpack.c.bf16 %v947, %v946
    %950 = vrot.lane.b32.xlu0 %v946, 32
    %v951 = vpop.permute.xlu0 %950
    %s953 = scalar_lea.vmem [#allocation3], 32
    %954 = vst.msk [vmem:[%s953] sm:$0xff] %vm305, %v951
    %956 = vrot.lane.b32.xlu0 %v947, 32
    %v957 = vpop.permute.xlu0 %956
    %s959 = scalar_lea.vmem [#allocation4], 24
    %960 = vst.msk [vmem:[%s959] sm:$0xff] %vm305, %v957
    %962 = vrot.lane.b32.xlu0 %v948, 32
    %v963 = vpop.permute.xlu0 %962
    %v965 = vsel %vm305, %v963, 0
    %967 = vmatpush.bf16.msra.mxu0 0
    %968 = vmatpush.bf16.msra.mxu0 0
    %969 = vmatpush.bf16.msra.mxu0 0
    %970 = vmatpush.bf16.msra.mxu0 0
    %971 = vmatpush.bf16.msra.mxu0 0
    %972 = vmatpush.bf16.msra.mxu0 0
    %973 = vmatpush.bf16.msra.mxu0 %v299
    %974 = vmatpush.bf16.msra.mxu0 %v297
    %975 = vmatmul.bf16.gmra.mxu0 %v965
    %v976 = vpop.f32.mrf.mxu0
    %v977 = vadd.f32 0.0, %v976
    %v978 = vpop.f32.mrf.mxu0
    %v979 = vadd.f32 0.0, %v978
    %980 = vdwg.mxu0
    %981 = vmatpush.bf16.msra.mxu0 0
    %982 = vmatpush.bf16.msra.mxu0 0
    %983 = vmatpush.bf16.msra.mxu0 0
    %984 = vmatpush.bf16.msra.mxu0 0
    %985 = vmatpush.bf16.msra.mxu0 0
    %986 = vmatpush.bf16.msra.mxu0 0
    %987 = vmatpush.bf16.msra.mxu0 %v300
    %988 = vmatpush.bf16.msra.mxu0 %v298
    %989 = vmatmul.bf16.gmra.mxu0 %v965
    %v990 = vpop.f32.mrf.mxu0
    %v991 = vadd.f32 0.0, %v990
    %v992 = vpop.f32.mrf.mxu0
    %v993 = vadd.f32 0.0, %v992
    %994 = vdwg.mxu0
    %v995 = vld [vmem:[%s608] sm:$0xff]
    %v996 = vld [vmem:[%s604 + $0x8] sm:$0xff]
    %v997 = vsel %vm146, %v977, %v991
    %v998 = vsel %vm147, %v979, %v993
    %v999 = vadd.f32 %v995, %v997
    %v1000 = vadd.f32 %v996, %v998
    %v1001 = vxor.u32 %v999, 2147483648
    %v1002 = vxor.u32 %v1000, 2147483648
    %v1003 = vmul.f32 %v1001, 1.442695
    %v1004 = vpow.pop %v1003
    %v1005 = vmul.f32 %v1002, 1.442695
    %v1006 = vpow.pop %v1005
    %v1007 = vadd.f32 %v1004, 1.0
    %v1008 = vadd.f32 %v1006, 1.0
    %v1009 = vrcp.pop %v1007
    %v1010 = vmul.f32 %v1007, %v1009
    %v1011 = vsub.f32 1.0, %v1010
    %v1012 = vmul.f32 %v1009, %v1011
    %v1013 = vadd.f32 %v1009, %v1012
    %vm1014 = vweird.f32 %v1007
    %vm1015 = vweird.f32 %v1009
    %vm1016 = vmor %vm1014, %vm1015
    %v1017 = vsel %vm1016, %v1009, %v1013
    %v1018 = vand.u32 2147483647, %v1007
    %vm1019 = vcmp.eq.f32.partialorder %v1018, 8.507059e+37
    %v1020 = vand.u32 %v1007, 2147483648
    %v1021 = vor.u32 1.1754944e-38, %v1020
    %v1022 = vsel %vm1019, %v1021, %v1017
    %v1023 = vmul.f32 1.0, %v1022
    %v1024 = vrcp.pop %v1008
    %v1025 = vmul.f32 %v1008, %v1024
    %v1026 = vsub.f32 1.0, %v1025
    %v1027 = vmul.f32 %v1024, %v1026
    %v1028 = vadd.f32 %v1024, %v1027
    %vm1029 = vweird.f32 %v1008
    %vm1030 = vweird.f32 %v1024
    %vm1031 = vmor %vm1029, %vm1030
    %v1032 = vsel %vm1031, %v1024, %v1028
    %v1033 = vand.u32 2147483647, %v1008
    %vm1034 = vcmp.eq.f32.partialorder %v1033, 8.507059e+37
    %v1035 = vand.u32 %v1008, 2147483648
    %v1036 = vor.u32 1.1754944e-38, %v1035
    %v1037 = vsel %vm1034, %v1036, %v1032
    %v1038 = vmul.f32 1.0, %v1037
    %v1039 = vtanh.pop %v999
    %v1040 = vtanh.pop %v1000
    %v1041 = vmul.f32 %v1023, %v934
    %v1042 = vmul.f32 %v1038, %v935
    %1045 = vrot.lane.b32.xlu0 %v1039, 64
    %v1046 = vpop.permute.xlu0 %1045
    %1047 = vrot.lane.b32.xlu0 %v1040, 64
    %v1048 = vpop.permute.xlu0 %1047
    %v1051 = vmul.f32 %v1023, %v1046
    %v1052 = vmul.f32 %v1038, %v1048
    %1055 = vrot.lane.b32.xlu0 %v1051, 32
    %v1056 = vpop.permute.xlu0 %1055
    %1057 = vrot.lane.b32.xlu0 %v1052, 32
    %v1058 = vpop.permute.xlu0 %1057
    %v1061 = vadd.f32 %v1041, %v1056
    %v1062 = vadd.f32 %v1042, %v1058
    %v1063 = vtanh.pop %v1061
    %v1064 = vtanh.pop %v1062
    %1067 = vrot.lane.b32.xlu0 %v1063, 64
    %v1068 = vpop.permute.xlu0 %1067
    %1069 = vrot.lane.b32.xlu0 %v1064, 64
    %v1070 = vpop.permute.xlu0 %1069
    %v1073 = vmul.f32 %v1023, %v1068
    %v1074 = vmul.f32 %v1038, %v1070
    %v1075 = vpack.c.bf16 %v1074, %v1073
    %1077 = vrot.lane.b32.xlu0 %v1073, 32
    %v1078 = vpop.permute.xlu0 %1077
    %s1080 = scalar_lea.vmem [#allocation3], 40
    %1081 = vst.msk [vmem:[%s1080] sm:$0xff] %vm305, %v1078
    %1083 = vrot.lane.b32.xlu0 %v1074, 32
    %v1084 = vpop.permute.xlu0 %1083
    %s1086 = scalar_lea.vmem [#allocation4], 16
    %1087 = vst.msk [vmem:[%s1086] sm:$0xff] %vm305, %v1084
    %1089 = vrot.lane.b32.xlu0 %v1075, 32
    %v1090 = vpop.permute.xlu0 %1089
    %v1092 = vsel %vm305, %v1090, 0
    %1094 = vmatpush.bf16.msra.mxu0 0
    %1095 = vmatpush.bf16.msra.mxu0 0
    %1096 = vmatpush.bf16.msra.mxu0 0
    %1097 = vmatpush.bf16.msra.mxu0 0
    %1098 = vmatpush.bf16.msra.mxu0 0
    %1099 = vmatpush.bf16.msra.mxu0 0
    %1100 = vmatpush.bf16.msra.mxu0 %v299
    %1101 = vmatpush.bf16.msra.mxu0 %v297
    %1102 = vmatmul.bf16.gmra.mxu0 %v1092
    %v1103 = vpop.f32.mrf.mxu0
    %v1104 = vadd.f32 0.0, %v1103
    %v1105 = vpop.f32.mrf.mxu0
    %v1106 = vadd.f32 0.0, %v1105
    %1107 = vdwg.mxu0
    %1108 = vmatpush.bf16.msra.mxu0 0
    %1109 = vmatpush.bf16.msra.mxu0 0
    %1110 = vmatpush.bf16.msra.mxu0 0
    %1111 = vmatpush.bf16.msra.mxu0 0
    %1112 = vmatpush.bf16.msra.mxu0 0
    %1113 = vmatpush.bf16.msra.mxu0 0
    %1114 = vmatpush.bf16.msra.mxu0 %v300
    %1115 = vmatpush.bf16.msra.mxu0 %v298
    %1116 = vmatmul.bf16.gmra.mxu0 %v1092
    %v1117 = vpop.f32.mrf.mxu0
    %v1118 = vadd.f32 0.0, %v1117
    %v1119 = vpop.f32.mrf.mxu0
    %v1120 = vadd.f32 0.0, %v1119
    %1121 = vdwg.mxu0
    %v1122 = vld [vmem:[%s475] sm:$0xff]
    %v1123 = vld [vmem:[%s471 + $0x8] sm:$0xff]
    %v1124 = vsel %vm146, %v1104, %v1118
    %v1125 = vsel %vm147, %v1106, %v1120
    %v1126 = vadd.f32 %v1122, %v1124
    %v1127 = vadd.f32 %v1123, %v1125
    %v1128 = vxor.u32 %v1126, 2147483648
    %v1129 = vxor.u32 %v1127, 2147483648
    %v1130 = vmul.f32 %v1128, 1.442695
    %v1131 = vpow.pop %v1130
    %v1132 = vmul.f32 %v1129, 1.442695
    %v1133 = vpow.pop %v1132
    %v1134 = vadd.f32 %v1131, 1.0
    %v1135 = vadd.f32 %v1133, 1.0
    %v1136 = vrcp.pop %v1134
    %v1137 = vmul.f32 %v1134, %v1136
    %v1138 = vsub.f32 1.0, %v1137
    %v1139 = vmul.f32 %v1136, %v1138
    %v1140 = vadd.f32 %v1136, %v1139
    %vm1141 = vweird.f32 %v1134
    %vm1142 = vweird.f32 %v1136
    %vm1143 = vmor %vm1141, %vm1142
    %v1144 = vsel %vm1143, %v1136, %v1140
    %v1145 = vand.u32 2147483647, %v1134
    %vm1146 = vcmp.eq.f32.partialorder %v1145, 8.507059e+37
    %v1147 = vand.u32 %v1134, 2147483648
    %v1148 = vor.u32 1.1754944e-38, %v1147
    %v1149 = vsel %vm1146, %v1148, %v1144
    %v1150 = vmul.f32 1.0, %v1149
    %v1151 = vrcp.pop %v1135
    %v1152 = vmul.f32 %v1135, %v1151
    %v1153 = vsub.f32 1.0, %v1152
    %v1154 = vmul.f32 %v1151, %v1153
    %v1155 = vadd.f32 %v1151, %v1154
    %vm1156 = vweird.f32 %v1135
    %vm1157 = vweird.f32 %v1151
    %vm1158 = vmor %vm1156, %vm1157
    %v1159 = vsel %vm1158, %v1151, %v1155
    %v1160 = vand.u32 2147483647, %v1135
    %vm1161 = vcmp.eq.f32.partialorder %v1160, 8.507059e+37
    %v1162 = vand.u32 %v1135, 2147483648
    %v1163 = vor.u32 1.1754944e-38, %v1162
    %v1164 = vsel %vm1161, %v1163, %v1159
    %v1165 = vmul.f32 1.0, %v1164
    %v1166 = vtanh.pop %v1126
    %v1167 = vtanh.pop %v1127
    %v1168 = vmul.f32 %v1150, %v1061
    %v1169 = vmul.f32 %v1165, %v1062
    %1172 = vrot.lane.b32.xlu0 %v1166, 64
    %v1173 = vpop.permute.xlu0 %1172
    %1174 = vrot.lane.b32.xlu0 %v1167, 64
    %v1175 = vpop.permute.xlu0 %1174
    %v1178 = vmul.f32 %v1150, %v1173
    %v1179 = vmul.f32 %v1165, %v1175
    %1182 = vrot.lane.b32.xlu0 %v1178, 32
    %v1183 = vpop.permute.xlu0 %1182
    %1184 = vrot.lane.b32.xlu0 %v1179, 32
    %v1185 = vpop.permute.xlu0 %1184
    %v1188 = vadd.f32 %v1168, %v1183
    %v1189 = vadd.f32 %v1169, %v1185
    %v1190 = vtanh.pop %v1188
    %v1191 = vtanh.pop %v1189
    %1194 = vrot.lane.b32.xlu0 %v1190, 64
    %v1195 = vpop.permute.xlu0 %1194
    %1196 = vrot.lane.b32.xlu0 %v1191, 64
    %v1197 = vpop.permute.xlu0 %1196
    %v1200 = vmul.f32 %v1150, %v1195
    %v1201 = vmul.f32 %v1165, %v1197
    %v1202 = vpack.c.bf16 %v1201, %v1200
    %1204 = vrot.lane.b32.xlu0 %v1200, 32
    %v1205 = vpop.permute.xlu0 %1204
    %s1207 = scalar_lea.vmem [#allocation3], 48
    %1208 = vst.msk [vmem:[%s1207] sm:$0xff] %vm305, %v1205
    %1210 = vrot.lane.b32.xlu0 %v1201, 32
    %v1211 = vpop.permute.xlu0 %1210
    %s1213 = scalar_lea.vmem [#allocation4], 8
    %1214 = vst.msk [vmem:[%s1213] sm:$0xff] %vm305, %v1211
    %1216 = vrot.lane.b32.xlu0 %v1202, 32
    %v1217 = vpop.permute.xlu0 %1216
    %v1219 = vsel %vm305, %v1217, 0
    %1221 = vmatpush.bf16.msra.mxu0 0
    %1222 = vmatpush.bf16.msra.mxu0 0
    %1223 = vmatpush.bf16.msra.mxu0 0
    %1224 = vmatpush.bf16.msra.mxu0 0
    %1225 = vmatpush.bf16.msra.mxu0 0
    %1226 = vmatpush.bf16.msra.mxu0 0
    %1227 = vmatpush.bf16.msra.mxu0 %v299
    %1228 = vmatpush.bf16.msra.mxu0 %v297
    %1229 = vmatmul.bf16.gmra.mxu0 %v1219
    %v1230 = vpop.f32.mrf.mxu0
    %v1231 = vadd.f32 0.0, %v1230
    %v1232 = vpop.f32.mrf.mxu0
    %v1233 = vadd.f32 0.0, %v1232
    %1234 = vdwg.mxu0
    %1235 = vmatpush.bf16.msra.mxu0 0
    %1236 = vmatpush.bf16.msra.mxu0 0
    %1237 = vmatpush.bf16.msra.mxu0 0
    %1238 = vmatpush.bf16.msra.mxu0 0
    %1239 = vmatpush.bf16.msra.mxu0 0
    %1240 = vmatpush.bf16.msra.mxu0 0
    %1241 = vmatpush.bf16.msra.mxu0 %v300
    %1242 = vmatpush.bf16.msra.mxu0 %v298
    %1243 = vmatmul.bf16.gmra.mxu0 %v1219
    %v1244 = vpop.f32.mrf.mxu0
    %v1245 = vadd.f32 0.0, %v1244
    %v1246 = vpop.f32.mrf.mxu0
    %v1247 = vadd.f32 0.0, %v1246
    %1248 = vdwg.mxu0
    %v1249 = vld [vmem:[%s343] sm:$0xff]
    %v1250 = vld [vmem:[%s339 + $0x8] sm:$0xff]
    %v1251 = vsel %vm146, %v1231, %v1245
    %v1252 = vsel %vm147, %v1233, %v1247
    %v1253 = vadd.f32 %v1249, %v1251
    %v1254 = vadd.f32 %v1250, %v1252
    %v1255 = vxor.u32 %v1253, 2147483648
    %v1256 = vxor.u32 %v1254, 2147483648
    %v1257 = vmul.f32 %v1255, 1.442695
    %v1258 = vpow.pop %v1257
    %v1259 = vmul.f32 %v1256, 1.442695
    %v1260 = vpow.pop %v1259
    %v1261 = vadd.f32 %v1258, 1.0
    %v1262 = vadd.f32 %v1260, 1.0
    %v1263 = vrcp.pop %v1261
    %v1264 = vmul.f32 %v1261, %v1263
    %v1265 = vsub.f32 1.0, %v1264
    %v1266 = vmul.f32 %v1263, %v1265
    %v1267 = vadd.f32 %v1263, %v1266
    %vm1268 = vweird.f32 %v1261
    %vm1269 = vweird.f32 %v1263
    %vm1270 = vmor %vm1268, %vm1269
    %v1271 = vsel %vm1270, %v1263, %v1267
    %v1272 = vand.u32 2147483647, %v1261
    %vm1273 = vcmp.eq.f32.partialorder %v1272, 8.507059e+37
    %v1274 = vand.u32 %v1261, 2147483648
    %v1275 = vor.u32 1.1754944e-38, %v1274
    %v1276 = vsel %vm1273, %v1275, %v1271
    %v1277 = vmul.f32 1.0, %v1276
    %v1278 = vrcp.pop %v1262
    %v1279 = vmul.f32 %v1262, %v1278
    %v1280 = vsub.f32 1.0, %v1279
    %v1281 = vmul.f32 %v1278, %v1280
    %v1282 = vadd.f32 %v1278, %v1281
    %vm1283 = vweird.f32 %v1262
    %vm1284 = vweird.f32 %v1278
    %vm1285 = vmor %vm1283, %vm1284
    %v1286 = vsel %vm1285, %v1278, %v1282
    %v1287 = vand.u32 2147483647, %v1262
    %vm1288 = vcmp.eq.f32.partialorder %v1287, 8.507059e+37
    %v1289 = vand.u32 %v1262, 2147483648
    %v1290 = vor.u32 1.1754944e-38, %v1289
    %v1291 = vsel %vm1288, %v1290, %v1286
    %v1292 = vmul.f32 1.0, %v1291
    %v1293 = vtanh.pop %v1253
    %v1294 = vtanh.pop %v1254
    %v1295 = vmul.f32 %v1277, %v1188
    %v1296 = vmul.f32 %v1292, %v1189
    %1299 = vrot.lane.b32.xlu0 %v1293, 64
    %v1300 = vpop.permute.xlu0 %1299
    %1301 = vrot.lane.b32.xlu0 %v1294, 64
    %v1302 = vpop.permute.xlu0 %1301
    %v1305 = vmul.f32 %v1277, %v1300
    %v1306 = vmul.f32 %v1292, %v1302
    %1309 = vrot.lane.b32.xlu0 %v1305, 32
    %v1310 = vpop.permute.xlu0 %1309
    %1311 = vrot.lane.b32.xlu0 %v1306, 32
    %v1312 = vpop.permute.xlu0 %1311
    %v1315 = vadd.f32 %v1295, %v1310
    %v1316 = vadd.f32 %v1296, %v1312
    %v1317 = vtanh.pop %v1315
    %v1318 = vtanh.pop %v1316
    %1321 = vrot.lane.b32.xlu0 %v1317, 64
    %v1322 = vpop.permute.xlu0 %1321
    %1323 = vrot.lane.b32.xlu0 %v1318, 64
    %v1324 = vpop.permute.xlu0 %1323
    %v1327 = vmul.f32 %v1277, %v1322
    %v1328 = vmul.f32 %v1292, %v1324
    %1330 = vrot.lane.b32.xlu0 %v1327, 32
    %v1331 = vpop.permute.xlu0 %1330
    %s1333 = scalar_lea.vmem [#allocation3], 56
    %1334 = vst.msk [vmem:[%s1333] sm:$0xff] %vm305, %v1331
    %1336 = vrot.lane.b32.xlu0 %v1328, 32
    %v1337 = vpop.permute.xlu0 %1336
    %1339 = vst.msk [vmem:[#allocation4] sm:$0xff] %vm305, %v1337
    %v1340 = vld [vmem:[#allocation3] sm:$0xff]
    %v1341 = vld [vmem:[#allocation3 + $0x8] sm:$0xff]
    %v1342 = vld [vmem:[#allocation3 + $0x10] sm:$0xff]
    %v1343 = vld [vmem:[#allocation3 + $0x18] sm:$0xff]
    %v1344 = vld [vmem:[#allocation3 + $0x20] sm:$0xff]
    %v1345 = vld [vmem:[#allocation3 + $0x28] sm:$0xff]
    %v1346 = vld [vmem:[#allocation3 + $0x30] sm:$0xff]
    %v1347 = vld [vmem:[#allocation3 + $0x38] sm:$0xff]
    %v1348 = vpack.c.bf16 %v1341, %v1340
    %v1349 = vpack.c.bf16 %v1343, %v1342
    %v1350 = vpack.c.bf16 %v1345, %v1344
    %v1351 = vpack.c.bf16 %v1347, %v1346
    %v1352 = vld [vmem:[#allocation4] sm:$0xff]
    %v1353 = vld [vmem:[#allocation4 + $0x8] sm:$0xff]
    %v1354 = vld [vmem:[#allocation4 + $0x10] sm:$0xff]
    %v1355 = vld [vmem:[#allocation4 + $0x18] sm:$0xff]
    %v1356 = vld [vmem:[#allocation4 + $0x20] sm:$0xff]
    %v1357 = vld [vmem:[#allocation4 + $0x28] sm:$0xff]
    %v1358 = vld [vmem:[#allocation4 + $0x30] sm:$0xff]
    %v1359 = vld [vmem:[#allocation4 + $0x38] sm:$0xff]
    %v1360 = vpack.c.bf16 %v1353, %v1352
    %v1361 = vpack.c.bf16 %v1355, %v1354
    %v1362 = vpack.c.bf16 %v1357, %v1356
    %v1363 = vpack.c.bf16 %v1359, %v1358
    %v1364 = vld [vmem:[%s4] sm:$0xff]
    %v1365 = vld [vmem:[%s4 + $0x8] sm:$0xff]
    %v1366 = vld [vmem:[%s4 + $0x10] sm:$0xff]
    %v1367 = vld [vmem:[%s4 + $0x18] sm:$0xff]
    %v1368 = vld [vmem:[%s5] sm:$0xff]
    %v1369 = vld [vmem:[%s5 + $0x8] sm:$0xff]
    %v1370 = vld [vmem:[%s5 + $0x10] sm:$0xff]
    %v1371 = vld [vmem:[%s5 + $0x18] sm:$0xff]
    %v1376 = vunpack.c.l.b16 %v1368
    %v1377 = vunpack.c.h.b16 %v1368
    %v1378 = vunpack.c.l.b16 %v1369
    %v1379 = vunpack.c.h.b16 %v1369
    %v1380 = vunpack.c.l.b16 %v1370
    %v1381 = vunpack.c.h.b16 %v1370
    %v1382 = vunpack.c.l.b16 %v1371
    %v1383 = vunpack.c.h.b16 %v1371
    %v1384 = vpack.c.b16 %v1378, %v1376
    %v1385 = vpack.c.b16 %v1379, %v1377
    %v1386 = vpack.c.b16 %v1382, %v1380
    %v1387 = vpack.c.b16 %v1383, %v1381
    %v1393 = vsel %vm305, %v1360, 0
    %v1396 = vsel %vm305, %v1361, 0
    %v1399 = vsel %vm305, %v1362, 0
    %v1402 = vsel %vm305, %v1363, 0
    %1404 = vmatpush.bf16.msra.mxu0 0
    %1405 = vmatpush.bf16.msra.mxu0 0
    %1406 = vmatpush.bf16.msra.mxu0 0
    %1407 = vmatpush.bf16.msra.mxu0 0
    %1408 = vmatpush.bf16.msra.mxu0 0
    %1409 = vmatpush.bf16.msra.mxu0 0
    %1410 = vmatpush.bf16.msra.mxu0 %v1386
    %1411 = vmatpush.bf16.msra.mxu0 %v1384
    %1412 = vmatmul.bf16.gmra.mxu0 %v1393
    %v1413 = vpop.f32.mrf.mxu0
    %v1414 = vadd.f32 0.0, %v1413
    %v1415 = vpop.f32.mrf.mxu0
    %v1416 = vadd.f32 0.0, %v1415
    %1417 = vmatmul.bf16.gmra.mxu0 %v1396
    %v1418 = vpop.f32.mrf.mxu0
    %v1419 = vadd.f32 0.0, %v1418
    %v1420 = vpop.f32.mrf.mxu0
    %v1421 = vadd.f32 0.0, %v1420
    %1422 = vmatmul.bf16.gmra.mxu0 %v1399
    %v1423 = vpop.f32.mrf.mxu0
    %v1424 = vadd.f32 0.0, %v1423
    %v1425 = vpop.f32.mrf.mxu0
    %v1426 = vadd.f32 0.0, %v1425
    %1427 = vmatmul.bf16.gmra.mxu0 %v1402
    %v1428 = vpop.f32.mrf.mxu0
    %v1429 = vadd.f32 0.0, %v1428
    %v1430 = vpop.f32.mrf.mxu0
    %v1431 = vadd.f32 0.0, %v1430
    %1432 = vdwg.mxu0
    %1433 = vmatpush.bf16.msra.mxu0 0
    %1434 = vmatpush.bf16.msra.mxu0 0
    %1435 = vmatpush.bf16.msra.mxu0 0
    %1436 = vmatpush.bf16.msra.mxu0 0
    %1437 = vmatpush.bf16.msra.mxu0 0
    %1438 = vmatpush.bf16.msra.mxu0 0
    %1439 = vmatpush.bf16.msra.mxu0 %v1387
    %1440 = vmatpush.bf16.msra.mxu0 %v1385
    %1441 = vmatmul.bf16.gmra.mxu0 %v1393
    %v1442 = vpop.f32.mrf.mxu0
    %v1443 = vadd.f32 0.0, %v1442
    %v1444 = vpop.f32.mrf.mxu0
    %v1445 = vadd.f32 0.0, %v1444
    %1446 = vmatmul.bf16.gmra.mxu0 %v1396
    %v1447 = vpop.f32.mrf.mxu0
    %v1448 = vadd.f32 0.0, %v1447
    %v1449 = vpop.f32.mrf.mxu0
    %v1450 = vadd.f32 0.0, %v1449
    %1451 = vmatmul.bf16.gmra.mxu0 %v1399
    %v1452 = vpop.f32.mrf.mxu0
    %v1453 = vadd.f32 0.0, %v1452
    %v1454 = vpop.f32.mrf.mxu0
    %v1455 = vadd.f32 0.0, %v1454
    %1456 = vmatmul.bf16.gmra.mxu0 %v1402
    %v1457 = vpop.f32.mrf.mxu0
    %v1458 = vadd.f32 0.0, %v1457
    %v1459 = vpop.f32.mrf.mxu0
    %v1460 = vadd.f32 0.0, %v1459
    %1461 = vdwg.mxu0
    %v1466 = vunpack.c.l.b16 %v1364
    %v1467 = vunpack.c.h.b16 %v1364
    %v1468 = vunpack.c.l.b16 %v1365
    %v1469 = vunpack.c.h.b16 %v1365
    %v1470 = vunpack.c.l.b16 %v1366
    %v1471 = vunpack.c.h.b16 %v1366
    %v1472 = vunpack.c.l.b16 %v1367
    %v1473 = vunpack.c.h.b16 %v1367
    %v1474 = vpack.c.b16 %v1468, %v1466
    %v1475 = vpack.c.b16 %v1469, %v1467
    %v1476 = vpack.c.b16 %v1472, %v1470
    %v1477 = vpack.c.b16 %v1473, %v1471
    %v1483 = vsel %vm305, %v1348, 0
    %v1486 = vsel %vm305, %v1349, 0
    %v1489 = vsel %vm305, %v1350, 0
    %v1492 = vsel %vm305, %v1351, 0
    %1494 = vmatpush.bf16.msra.mxu0 0
    %1495 = vmatpush.bf16.msra.mxu0 0
    %1496 = vmatpush.bf16.msra.mxu0 0
    %1497 = vmatpush.bf16.msra.mxu0 0
    %1498 = vmatpush.bf16.msra.mxu0 0
    %1499 = vmatpush.bf16.msra.mxu0 0
    %1500 = vmatpush.bf16.msra.mxu0 %v1476
    %1501 = vmatpush.bf16.msra.mxu0 %v1474
    %1502 = vmatmul.bf16.gmra.mxu0 %v1483
    %v1503 = vpop.f32.mrf.mxu0
    %v1504 = vadd.f32 %v1414, %v1503
    %v1505 = vpop.f32.mrf.mxu0
    %v1506 = vadd.f32 %v1416, %v1505
    %1507 = vmatmul.bf16.gmra.mxu0 %v1486
    %v1508 = vpop.f32.mrf.mxu0
    %v1509 = vadd.f32 %v1419, %v1508
    %v1510 = vpop.f32.mrf.mxu0
    %v1511 = vadd.f32 %v1421, %v1510
    %1512 = vmatmul.bf16.gmra.mxu0 %v1489
    %v1513 = vpop.f32.mrf.mxu0
    %v1514 = vadd.f32 %v1424, %v1513
    %v1515 = vpop.f32.mrf.mxu0
    %v1516 = vadd.f32 %v1426, %v1515
    %1517 = vmatmul.bf16.gmra.mxu0 %v1492
    %v1518 = vpop.f32.mrf.mxu0
    %v1519 = vadd.f32 %v1429, %v1518
    %v1520 = vpop.f32.mrf.mxu0
    %v1521 = vadd.f32 %v1431, %v1520
    %1522 = vdwg.mxu0
    %1523 = vmatpush.bf16.msra.mxu0 0
    %1524 = vmatpush.bf16.msra.mxu0 0
    %1525 = vmatpush.bf16.msra.mxu0 0
    %1526 = vmatpush.bf16.msra.mxu0 0
    %1527 = vmatpush.bf16.msra.mxu0 0
    %1528 = vmatpush.bf16.msra.mxu0 0
    %1529 = vmatpush.bf16.msra.mxu0 %v1477
    %1530 = vmatpush.bf16.msra.mxu0 %v1475
    %1531 = vmatmul.bf16.gmra.mxu0 %v1483
    %v1532 = vpop.f32.mrf.mxu0
    %v1533 = vadd.f32 %v1443, %v1532
    %v1534 = vpop.f32.mrf.mxu0
    %v1535 = vadd.f32 %v1445, %v1534
    %1536 = vmatmul.bf16.gmra.mxu0 %v1486
    %v1537 = vpop.f32.mrf.mxu0
    %v1538 = vadd.f32 %v1448, %v1537
    %v1539 = vpop.f32.mrf.mxu0
    %v1540 = vadd.f32 %v1450, %v1539
    %1541 = vmatmul.bf16.gmra.mxu0 %v1489
    %v1542 = vpop.f32.mrf.mxu0
    %v1543 = vadd.f32 %v1453, %v1542
    %v1544 = vpop.f32.mrf.mxu0
    %v1545 = vadd.f32 %v1455, %v1544
    %1546 = vmatmul.bf16.gmra.mxu0 %v1492
    %v1547 = vpop.f32.mrf.mxu0
    %v1548 = vadd.f32 %v1458, %v1547
    %v1549 = vpop.f32.mrf.mxu0
    %v1550 = vadd.f32 %v1460, %v1549
    %1551 = vdwg.mxu0
    %v1552 = vld [vmem:[%s7] sm:$0x3]
    %v1554 = vperm.slane %v1552, 0
    %v1555 = vperm.slane %v1552, 1
    %v1558 = vadd.f32 %v1504, %v1554
    %v1559 = vadd.f32 %v1533, %v1555
    %v1560 = vadd.f32 %v1506, %v1554
    %v1561 = vadd.f32 %v1535, %v1555
    %v1562 = vadd.f32 %v1509, %v1554
    %v1563 = vadd.f32 %v1538, %v1555
    %v1564 = vadd.f32 %v1511, %v1554
    %v1565 = vadd.f32 %v1540, %v1555
    %v1566 = vadd.f32 %v1514, %v1554
    %v1567 = vadd.f32 %v1543, %v1555
    %v1568 = vadd.f32 %v1516, %v1554
    %v1569 = vadd.f32 %v1545, %v1555
    %v1570 = vadd.f32 %v1519, %v1554
    %v1571 = vadd.f32 %v1548, %v1555
    %v1572 = vadd.f32 %v1521, %v1554
    %v1573 = vadd.f32 %v1550, %v1555
    %1574 = vst [vmem:[#allocation2] sm:$0xff] %v1558
    %1575 = vst [vmem:[#allocation2 + $0x8] sm:$0xff] %v1559
    %1576 = vst [vmem:[#allocation2 + $0x10] sm:$0xff] %v1560
    %1577 = vst [vmem:[#allocation2 + $0x18] sm:$0xff] %v1561
    %1578 = vst [vmem:[#allocation2 + $0x20] sm:$0xff] %v1562
    %1579 = vst [vmem:[#allocation2 + $0x28] sm:$0xff] %v1563
    %1580 = vst [vmem:[#allocation2 + $0x30] sm:$0xff] %v1564
    %1581 = vst [vmem:[#allocation2 + $0x38] sm:$0xff] %v1565
    %1582 = vst [vmem:[#allocation2 + $0x40] sm:$0xff] %v1566
    %1583 = vst [vmem:[#allocation2 + $0x48] sm:$0xff] %v1567
    %1584 = vst [vmem:[#allocation2 + $0x50] sm:$0xff] %v1568
    %1585 = vst [vmem:[#allocation2 + $0x58] sm:$0xff] %v1569
    %1586 = vst [vmem:[#allocation2 + $0x60] sm:$0xff] %v1570
    %1587 = vst [vmem:[#allocation2 + $0x68] sm:$0xff] %v1571
    %1588 = vst [vmem:[#allocation2 + $0x70] sm:$0xff] %v1572
    %1589 = vst [vmem:[#allocation2 + $0x78] sm:$0xff] %v1573
    %v1590 = vld [vmem:[%s6] sm:$0xff]
    %v1591 = vld [vmem:[%s6 + $0x8] sm:$0xff]
    %v1592 = vld [vmem:[%s6 + $0x10] sm:$0xff]
    %v1593 = vld [vmem:[%s6 + $0x18] sm:$0xff]
    %v1598 = vunpack.c.l.b16 %v1590
    %v1599 = vunpack.c.h.b16 %v1590
    %v1600 = vunpack.c.l.b16 %v1591
    %v1601 = vunpack.c.h.b16 %v1591
    %v1602 = vunpack.c.l.b16 %v1592
    %v1603 = vunpack.c.h.b16 %v1592
    %v1604 = vunpack.c.l.b16 %v1593
    %v1605 = vunpack.c.h.b16 %v1593
    %v1606 = vpack.c.b16 %v1600, %v1598
    %v1607 = vpack.c.b16 %v1601, %v1599
    %v1608 = vpack.c.b16 %v1604, %v1602
    %v1609 = vpack.c.b16 %v1605, %v1603
    %1614 = vmatpush.bf16.msra.mxu0 0
    %1615 = vmatpush.bf16.msra.mxu0 0
    %1616 = vmatpush.bf16.msra.mxu0 0
    %1617 = vmatpush.bf16.msra.mxu0 0
    %1618 = vmatpush.bf16.msra.mxu0 0
    %1619 = vmatpush.bf16.msra.mxu0 0
    %1620 = vmatpush.bf16.msra.mxu0 %v1608
    %1621 = vmatpush.bf16.msra.mxu0 %v1606
    %1622 = vmatmul.bf16.gmra.mxu0 %v307
    %v1623 = vpop.f32.mrf.mxu0
    %v1624 = vadd.f32 0.0, %v1623
    %v1625 = vpop.f32.mrf.mxu0
    %v1626 = vadd.f32 0.0, %v1625
    %1627 = vdwg.mxu0
    %1628 = vmatpush.bf16.msra.mxu0 0
    %1629 = vmatpush.bf16.msra.mxu0 0
    %1630 = vmatpush.bf16.msra.mxu0 0
    %1631 = vmatpush.bf16.msra.mxu0 0
    %1632 = vmatpush.bf16.msra.mxu0 0
    %1633 = vmatpush.bf16.msra.mxu0 0
    %1634 = vmatpush.bf16.msra.mxu0 %v1609
    %1635 = vmatpush.bf16.msra.mxu0 %v1607
    %1636 = vmatmul.bf16.gmra.mxu0 %v307
    %v1637 = vpop.f32.mrf.mxu0
    %v1638 = vadd.f32 0.0, %v1637
    %v1639 = vpop.f32.mrf.mxu0
    %v1640 = vadd.f32 0.0, %v1639
    %1641 = vdwg.mxu0
    %v1642 = vld [vmem:[%s339] sm:$0xff]
    %v1643 = vld [vmem:[%s343 + $0x8] sm:$0xff]
    %v1644 = vsel %vm146, %v1624, %v1638
    %v1645 = vsel %vm147, %v1626, %v1640
    %v1646 = vadd.f32 %v1642, %v1644
    %v1647 = vadd.f32 %v1643, %v1645
    %v1648 = vxor.u32 %v1646, 2147483648
    %v1649 = vxor.u32 %v1647, 2147483648
    %v1650 = vmul.f32 %v1648, 1.442695
    %v1651 = vpow.pop %v1650
    %v1652 = vmul.f32 %v1649, 1.442695
    %v1653 = vpow.pop %v1652
    %v1654 = vadd.f32 %v1651, 1.0
    %v1655 = vadd.f32 %v1653, 1.0
    %v1656 = vrcp.pop %v1654
    %v1657 = vmul.f32 %v1654, %v1656
    %v1658 = vsub.f32 1.0, %v1657
    %v1659 = vmul.f32 %v1656, %v1658
    %v1660 = vadd.f32 %v1656, %v1659
    %vm1661 = vweird.f32 %v1654
    %vm1662 = vweird.f32 %v1656
    %vm1663 = vmor %vm1661, %vm1662
    %v1664 = vsel %vm1663, %v1656, %v1660
    %v1665 = vand.u32 2147483647, %v1654
    %vm1666 = vcmp.eq.f32.partialorder %v1665, 8.507059e+37
    %v1667 = vand.u32 %v1654, 2147483648
    %v1668 = vor.u32 1.1754944e-38, %v1667
    %v1669 = vsel %vm1666, %v1668, %v1664
    %v1670 = vmul.f32 1.0, %v1669
    %v1671 = vrcp.pop %v1655
    %v1672 = vmul.f32 %v1655, %v1671
    %v1673 = vsub.f32 1.0, %v1672
    %v1674 = vmul.f32 %v1671, %v1673
    %v1675 = vadd.f32 %v1671, %v1674
    %vm1676 = vweird.f32 %v1655
    %vm1677 = vweird.f32 %v1671
    %vm1678 = vmor %vm1676, %vm1677
    %v1679 = vsel %vm1678, %v1671, %v1675
    %v1680 = vand.u32 2147483647, %v1655
    %vm1681 = vcmp.eq.f32.partialorder %v1680, 8.507059e+37
    %v1682 = vand.u32 %v1655, 2147483648
    %v1683 = vor.u32 1.1754944e-38, %v1682
    %v1684 = vsel %vm1681, %v1683, %v1679
    %v1685 = vmul.f32 1.0, %v1684
    %v1686 = vtanh.pop %v1646
    %v1687 = vtanh.pop %v1647
    %v1688 = vmul.f32 %v1670, 0.0
    %v1689 = vmul.f32 %v1685, 0.0
    %1692 = vrot.lane.b32.xlu0 %v1686, 64
    %v1693 = vpop.permute.xlu0 %1692
    %1694 = vrot.lane.b32.xlu0 %v1687, 64
    %v1695 = vpop.permute.xlu0 %1694
    %v1698 = vmul.f32 %v1670, %v1693
    %v1699 = vmul.f32 %v1685, %v1695
    %1702 = vrot.lane.b32.xlu0 %v1698, 32
    %v1703 = vpop.permute.xlu0 %1702
    %1704 = vrot.lane.b32.xlu0 %v1699, 32
    %v1705 = vpop.permute.xlu0 %1704
    %v1708 = vadd.f32 %v1688, %v1703
    %v1709 = vadd.f32 %v1689, %v1705
    %v1710 = vtanh.pop %v1708
    %v1711 = vtanh.pop %v1709
    %1714 = vrot.lane.b32.xlu0 %v1710, 64
    %v1715 = vpop.permute.xlu0 %1714
    %1716 = vrot.lane.b32.xlu0 %v1711, 64
    %v1717 = vpop.permute.xlu0 %1716
    %v1720 = vmul.f32 %v1670, %v1715
    %v1721 = vmul.f32 %v1685, %v1717
    %v1722 = vpack.c.bf16 %v1721, %v1720
    %1724 = vrot.lane.b32.xlu0 %v1722, 32
    %v1725 = vpop.permute.xlu0 %1724
    %v1727 = vsel %vm305, %v1725, 0
    %1729 = vmatpush.bf16.msra.mxu0 0
    %1730 = vmatpush.bf16.msra.mxu0 0
    %1731 = vmatpush.bf16.msra.mxu0 0
    %1732 = vmatpush.bf16.msra.mxu0 0
    %1733 = vmatpush.bf16.msra.mxu0 0
    %1734 = vmatpush.bf16.msra.mxu0 0
    %1735 = vmatpush.bf16.msra.mxu0 %v1608
    %1736 = vmatpush.bf16.msra.mxu0 %v1606
    %1737 = vmatmul.bf16.gmra.mxu0 %v1727
    %v1738 = vpop.f32.mrf.mxu0
    %v1739 = vadd.f32 0.0, %v1738
    %v1740 = vpop.f32.mrf.mxu0
    %v1741 = vadd.f32 0.0, %v1740
    %1742 = vdwg.mxu0
    %1743 = vmatpush.bf16.msra.mxu0 0
    %1744 = vmatpush.bf16.msra.mxu0 0
    %1745 = vmatpush.bf16.msra.mxu0 0
    %1746 = vmatpush.bf16.msra.mxu0 0
    %1747 = vmatpush.bf16.msra.mxu0 0
    %1748 = vmatpush.bf16.msra.mxu0 0
    %1749 = vmatpush.bf16.msra.mxu0 %v1609
    %1750 = vmatpush.bf16.msra.mxu0 %v1607
    %1751 = vmatmul.bf16.gmra.mxu0 %v1727
    %v1752 = vpop.f32.mrf.mxu0
    %v1753 = vadd.f32 0.0, %v1752
    %v1754 = vpop.f32.mrf.mxu0
    %v1755 = vadd.f32 0.0, %v1754
    %1756 = vdwg.mxu0
    %v1757 = vld [vmem:[%s471] sm:$0xff]
    %v1758 = vld [vmem:[%s475 + $0x8] sm:$0xff]
    %v1759 = vsel %vm146, %v1739, %v1753
    %v1760 = vsel %vm147, %v1741, %v1755
    %v1761 = vadd.f32 %v1757, %v1759
    %v1762 = vadd.f32 %v1758, %v1760
    %v1763 = vxor.u32 %v1761, 2147483648
    %v1764 = vxor.u32 %v1762, 2147483648
    %v1765 = vmul.f32 %v1763, 1.442695
    %v1766 = vpow.pop %v1765
    %v1767 = vmul.f32 %v1764, 1.442695
    %v1768 = vpow.pop %v1767
    %v1769 = vadd.f32 %v1766, 1.0
    %v1770 = vadd.f32 %v1768, 1.0
    %v1771 = vrcp.pop %v1769
    %v1772 = vmul.f32 %v1769, %v1771
    %v1773 = vsub.f32 1.0, %v1772
    %v1774 = vmul.f32 %v1771, %v1773
    %v1775 = vadd.f32 %v1771, %v1774
    %vm1776 = vweird.f32 %v1769
    %vm1777 = vweird.f32 %v1771
    %vm1778 = vmor %vm1776, %vm1777
    %v1779 = vsel %vm1778, %v1771, %v1775
    %v1780 = vand.u32 2147483647, %v1769
    %vm1781 = vcmp.eq.f32.partialorder %v1780, 8.507059e+37
    %v1782 = vand.u32 %v1769, 2147483648
    %v1783 = vor.u32 1.1754944e-38, %v1782
    %v1784 = vsel %vm1781, %v1783, %v1779
    %v1785 = vmul.f32 1.0, %v1784
    %v1786 = vrcp.pop %v1770
    %v1787 = vmul.f32 %v1770, %v1786
    %v1788 = vsub.f32 1.0, %v1787
    %v1789 = vmul.f32 %v1786, %v1788
    %v1790 = vadd.f32 %v1786, %v1789
    %vm1791 = vweird.f32 %v1770
    %vm1792 = vweird.f32 %v1786
    %vm1793 = vmor %vm1791, %vm1792
    %v1794 = vsel %vm1793, %v1786, %v1790
    %v1795 = vand.u32 2147483647, %v1770
    %vm1796 = vcmp.eq.f32.partialorder %v1795, 8.507059e+37
    %v1797 = vand.u32 %v1770, 2147483648
    %v1798 = vor.u32 1.1754944e-38, %v1797
    %v1799 = vsel %vm1796, %v1798, %v1794
    %v1800 = vmul.f32 1.0, %v1799
    %v1801 = vtanh.pop %v1761
    %v1802 = vtanh.pop %v1762
    %v1803 = vmul.f32 %v1785, %v1708
    %v1804 = vmul.f32 %v1800, %v1709
    %1807 = vrot.lane.b32.xlu0 %v1801, 64
    %v1808 = vpop.permute.xlu0 %1807
    %1809 = vrot.lane.b32.xlu0 %v1802, 64
    %v1810 = vpop.permute.xlu0 %1809
    %v1813 = vmul.f32 %v1785, %v1808
    %v1814 = vmul.f32 %v1800, %v1810
    %1817 = vrot.lane.b32.xlu0 %v1813, 32
    %v1818 = vpop.permute.xlu0 %1817
    %1819 = vrot.lane.b32.xlu0 %v1814, 32
    %v1820 = vpop.permute.xlu0 %1819
    %v1823 = vadd.f32 %v1803, %v1818
    %v1824 = vadd.f32 %v1804, %v1820
    %v1825 = vtanh.pop %v1823
    %v1826 = vtanh.pop %v1824
    %1829 = vrot.lane.b32.xlu0 %v1825, 64
    %v1830 = vpop.permute.xlu0 %1829
    %1831 = vrot.lane.b32.xlu0 %v1826, 64
    %v1832 = vpop.permute.xlu0 %1831
    %v1835 = vmul.f32 %v1785, %v1830
    %v1836 = vmul.f32 %v1800, %v1832
    %v1837 = vpack.c.bf16 %v1836, %v1835
    %v1838 = vmax.f32 %v1720, %v1835
    %v1839 = vmax.f32 %v1721, %v1836
    %1841 = vrot.lane.b32.xlu0 %v1837, 32
    %v1842 = vpop.permute.xlu0 %1841
    %v1844 = vsel %vm305, %v1842, 0
    %1846 = vmatpush.bf16.msra.mxu0 0
    %1847 = vmatpush.bf16.msra.mxu0 0
    %1848 = vmatpush.bf16.msra.mxu0 0
    %1849 = vmatpush.bf16.msra.mxu0 0
    %1850 = vmatpush.bf16.msra.mxu0 0
    %1851 = vmatpush.bf16.msra.mxu0 0
    %1852 = vmatpush.bf16.msra.mxu0 %v1608
    %1853 = vmatpush.bf16.msra.mxu0 %v1606
    %1854 = vmatmul.bf16.gmra.mxu0 %v1844
    %v1855 = vpop.f32.mrf.mxu0
    %v1856 = vadd.f32 0.0, %v1855
    %v1857 = vpop.f32.mrf.mxu0
    %v1858 = vadd.f32 0.0, %v1857
    %1859 = vdwg.mxu0
    %1860 = vmatpush.bf16.msra.mxu0 0
    %1861 = vmatpush.bf16.msra.mxu0 0
    %1862 = vmatpush.bf16.msra.mxu0 0
    %1863 = vmatpush.bf16.msra.mxu0 0
    %1864 = vmatpush.bf16.msra.mxu0 0
    %1865 = vmatpush.bf16.msra.mxu0 0
    %1866 = vmatpush.bf16.msra.mxu0 %v1609
    %1867 = vmatpush.bf16.msra.mxu0 %v1607
    %1868 = vmatmul.bf16.gmra.mxu0 %v1844
    %v1869 = vpop.f32.mrf.mxu0
    %v1870 = vadd.f32 0.0, %v1869
    %v1871 = vpop.f32.mrf.mxu0
    %v1872 = vadd.f32 0.0, %v1871
    %1873 = vdwg.mxu0
    %v1874 = vld [vmem:[%s604] sm:$0xff]
    %v1875 = vld [vmem:[%s608 + $0x8] sm:$0xff]
    %v1876 = vsel %vm146, %v1856, %v1870
    %v1877 = vsel %vm147, %v1858, %v1872
    %v1878 = vadd.f32 %v1874, %v1876
    %v1879 = vadd.f32 %v1875, %v1877
    %v1880 = vxor.u32 %v1878, 2147483648
    %v1881 = vxor.u32 %v1879, 2147483648
    %v1882 = vmul.f32 %v1880, 1.442695
    %v1883 = vpow.pop %v1882
    %v1884 = vmul.f32 %v1881, 1.442695
    %v1885 = vpow.pop %v1884
    %v1886 = vadd.f32 %v1883, 1.0
    %v1887 = vadd.f32 %v1885, 1.0
    %v1888 = vrcp.pop %v1886
    %v1889 = vmul.f32 %v1886, %v1888
    %v1890 = vsub.f32 1.0, %v1889
    %v1891 = vmul.f32 %v1888, %v1890
    %v1892 = vadd.f32 %v1888, %v1891
    %vm1893 = vweird.f32 %v1886
    %vm1894 = vweird.f32 %v1888
    %vm1895 = vmor %vm1893, %vm1894
    %v1896 = vsel %vm1895, %v1888, %v1892
    %v1897 = vand.u32 2147483647, %v1886
    %vm1898 = vcmp.eq.f32.partialorder %v1897, 8.507059e+37
    %v1899 = vand.u32 %v1886, 2147483648
    %v1900 = vor.u32 1.1754944e-38, %v1899
    %v1901 = vsel %vm1898, %v1900, %v1896
    %v1902 = vmul.f32 1.0, %v1901
    %v1903 = vrcp.pop %v1887
    %v1904 = vmul.f32 %v1887, %v1903
    %v1905 = vsub.f32 1.0, %v1904
    %v1906 = vmul.f32 %v1903, %v1905
    %v1907 = vadd.f32 %v1903, %v1906
    %vm1908 = vweird.f32 %v1887
    %vm1909 = vweird.f32 %v1903
    %vm1910 = vmor %vm1908, %vm1909
    %v1911 = vsel %vm1910, %v1903, %v1907
    %v1912 = vand.u32 2147483647, %v1887
    %vm1913 = vcmp.eq.f32.partialorder %v1912, 8.507059e+37
    %v1914 = vand.u32 %v1887, 2147483648
    %v1915 = vor.u32 1.1754944e-38, %v1914
    %v1916 = vsel %vm1913, %v1915, %v1911
    %v1917 = vmul.f32 1.0, %v1916
    %v1918 = vtanh.pop %v1878
    %v1919 = vtanh.pop %v1879
    %v1920 = vmul.f32 %v1902, %v1823
    %v1921 = vmul.f32 %v1917, %v1824
    %1924 = vrot.lane.b32.xlu0 %v1918, 64
    %v1925 = vpop.permute.xlu0 %1924
    %1926 = vrot.lane.b32.xlu0 %v1919, 64
    %v1927 = vpop.permute.xlu0 %1926
    %v1930 = vmul.f32 %v1902, %v1925
    %v1931 = vmul.f32 %v1917, %v1927
    %1934 = vrot.lane.b32.xlu0 %v1930, 32
    %v1935 = vpop.permute.xlu0 %1934
    %1936 = vrot.lane.b32.xlu0 %v1931, 32
    %v1937 = vpop.permute.xlu0 %1936
    %v1940 = vadd.f32 %v1920, %v1935
    %v1941 = vadd.f32 %v1921, %v1937
    %v1942 = vtanh.pop %v1940
    %v1943 = vtanh.pop %v1941
    %1946 = vrot.lane.b32.xlu0 %v1942, 64
    %v1947 = vpop.permute.xlu0 %1946
    %1948 = vrot.lane.b32.xlu0 %v1943, 64
    %v1949 = vpop.permute.xlu0 %1948
    %v1952 = vmul.f32 %v1902, %v1947
    %v1953 = vmul.f32 %v1917, %v1949
    %v1954 = vpack.c.bf16 %v1953, %v1952
    %v1955 = vmax.f32 %v1838, %v1952
    %v1956 = vmax.f32 %v1839, %v1953
    %1958 = vrot.lane.b32.xlu0 %v1954, 32
    %v1959 = vpop.permute.xlu0 %1958
    %v1961 = vsel %vm305, %v1959, 0
    %1963 = vmatpush.bf16.msra.mxu0 0
    %1964 = vmatpush.bf16.msra.mxu0 0
    %1965 = vmatpush.bf16.msra.mxu0 0
    %1966 = vmatpush.bf16.msra.mxu0 0
    %1967 = vmatpush.bf16.msra.mxu0 0
    %1968 = vmatpush.bf16.msra.mxu0 0
    %1969 = vmatpush.bf16.msra.mxu0 %v1608
    %1970 = vmatpush.bf16.msra.mxu0 %v1606
    %1971 = vmatmul.bf16.gmra.mxu0 %v1961
    %v1972 = vpop.f32.mrf.mxu0
    %v1973 = vadd.f32 0.0, %v1972
    %v1974 = vpop.f32.mrf.mxu0
    %v1975 = vadd.f32 0.0, %v1974
    %1976 = vdwg.mxu0
    %1977 = vmatpush.bf16.msra.mxu0 0
    %1978 = vmatpush.bf16.msra.mxu0 0
    %1979 = vmatpush.bf16.msra.mxu0 0
    %1980 = vmatpush.bf16.msra.mxu0 0
    %1981 = vmatpush.bf16.msra.mxu0 0
    %1982 = vmatpush.bf16.msra.mxu0 0
    %1983 = vmatpush.bf16.msra.mxu0 %v1609
    %1984 = vmatpush.bf16.msra.mxu0 %v1607
    %1985 = vmatmul.bf16.gmra.mxu0 %v1961
    %v1986 = vpop.f32.mrf.mxu0
    %v1987 = vadd.f32 0.0, %v1986
    %v1988 = vpop.f32.mrf.mxu0
    %v1989 = vadd.f32 0.0, %v1988
    %1990 = vdwg.mxu0
    %v1991 = vld [vmem:[%s737] sm:$0xff]
    %v1992 = vld [vmem:[%s741 + $0x8] sm:$0xff]
    %v1993 = vsel %vm146, %v1973, %v1987
    %v1994 = vsel %vm147, %v1975, %v1989
    %v1995 = vadd.f32 %v1991, %v1993
    %v1996 = vadd.f32 %v1992, %v1994
    %v1997 = vxor.u32 %v1995, 2147483648
    %v1998 = vxor.u32 %v1996, 2147483648
    %v1999 = vmul.f32 %v1997, 1.442695
    %v2000 = vpow.pop %v1999
    %v2001 = vmul.f32 %v1998, 1.442695
    %v2002 = vpow.pop %v2001
    %v2003 = vadd.f32 %v2000, 1.0
    %v2004 = vadd.f32 %v2002, 1.0
    %v2005 = vrcp.pop %v2003
    %v2006 = vmul.f32 %v2003, %v2005
    %v2007 = vsub.f32 1.0, %v2006
    %v2008 = vmul.f32 %v2005, %v2007
    %v2009 = vadd.f32 %v2005, %v2008
    %vm2010 = vweird.f32 %v2003
    %vm2011 = vweird.f32 %v2005
    %vm2012 = vmor %vm2010, %vm2011
    %v2013 = vsel %vm2012, %v2005, %v2009
    %v2014 = vand.u32 2147483647, %v2003
    %vm2015 = vcmp.eq.f32.partialorder %v2014, 8.507059e+37
    %v2016 = vand.u32 %v2003, 2147483648
    %v2017 = vor.u32 1.1754944e-38, %v2016
    %v2018 = vsel %vm2015, %v2017, %v2013
    %v2019 = vmul.f32 1.0, %v2018
    %v2020 = vrcp.pop %v2004
    %v2021 = vmul.f32 %v2004, %v2020
    %v2022 = vsub.f32 1.0, %v2021
    %v2023 = vmul.f32 %v2020, %v2022
    %v2024 = vadd.f32 %v2020, %v2023
    %vm2025 = vweird.f32 %v2004
    %vm2026 = vweird.f32 %v2020
    %vm2027 = vmor %vm2025, %vm2026
    %v2028 = vsel %vm2027, %v2020, %v2024
    %v2029 = vand.u32 2147483647, %v2004
    %vm2030 = vcmp.eq.f32.partialorder %v2029, 8.507059e+37
    %v2031 = vand.u32 %v2004, 2147483648
    %v2032 = vor.u32 1.1754944e-38, %v2031
    %v2033 = vsel %vm2030, %v2032, %v2028
    %v2034 = vmul.f32 1.0, %v2033
    %v2035 = vtanh.pop %v1995
    %v2036 = vtanh.pop %v1996
    %v2037 = vmul.f32 %v2019, %v1940
    %v2038 = vmul.f32 %v2034, %v1941
    %2041 = vrot.lane.b32.xlu0 %v2035, 64
    %v2042 = vpop.permute.xlu0 %2041
    %2043 = vrot.lane.b32.xlu0 %v2036, 64
    %v2044 = vpop.permute.xlu0 %2043
    %v2047 = vmul.f32 %v2019, %v2042
    %v2048 = vmul.f32 %v2034, %v2044
    %2051 = vrot.lane.b32.xlu0 %v2047, 32
    %v2052 = vpop.permute.xlu0 %2051
    %2053 = vrot.lane.b32.xlu0 %v2048, 32
    %v2054 = vpop.permute.xlu0 %2053
    %v2057 = vadd.f32 %v2037, %v2052
    %v2058 = vadd.f32 %v2038, %v2054
    %v2059 = vtanh.pop %v2057
    %v2060 = vtanh.pop %v2058
    %2063 = vrot.lane.b32.xlu0 %v2059, 64
    %v2064 = vpop.permute.xlu0 %2063
    %2065 = vrot.lane.b32.xlu0 %v2060, 64
    %v2066 = vpop.permute.xlu0 %2065
    %v2069 = vmul.f32 %v2019, %v2064
    %v2070 = vmul.f32 %v2034, %v2066
    %v2071 = vpack.c.bf16 %v2070, %v2069
    %v2072 = vmax.f32 %v1955, %v2069
    %v2073 = vmax.f32 %v1956, %v2070
    %2075 = vrot.lane.b32.xlu0 %v2071, 32
    %v2076 = vpop.permute.xlu0 %2075
    %v2078 = vsel %vm305, %v2076, 0
    %2080 = vmatpush.bf16.msra.mxu0 0
    %2081 = vmatpush.bf16.msra.mxu0 0
    %2082 = vmatpush.bf16.msra.mxu0 0
    %2083 = vmatpush.bf16.msra.mxu0 0
    %2084 = vmatpush.bf16.msra.mxu0 0
    %2085 = vmatpush.bf16.msra.mxu0 0
    %2086 = vmatpush.bf16.msra.mxu0 %v1608
    %2087 = vmatpush.bf16.msra.mxu0 %v1606
    %2088 = vmatmul.bf16.gmra.mxu0 %v2078
    %v2089 = vpop.f32.mrf.mxu0
    %v2090 = vadd.f32 0.0, %v2089
    %v2091 = vpop.f32.mrf.mxu0
    %v2092 = vadd.f32 0.0, %v2091
    %2093 = vdwg.mxu0
    %2094 = vmatpush.bf16.msra.mxu0 0
    %2095 = vmatpush.bf16.msra.mxu0 0
    %2096 = vmatpush.bf16.msra.mxu0 0
    %2097 = vmatpush.bf16.msra.mxu0 0
    %2098 = vmatpush.bf16.msra.mxu0 0
    %2099 = vmatpush.bf16.msra.mxu0 0
    %2100 = vmatpush.bf16.msra.mxu0 %v1609
    %2101 = vmatpush.bf16.msra.mxu0 %v1607
    %2102 = vmatmul.bf16.gmra.mxu0 %v2078
    %v2103 = vpop.f32.mrf.mxu0
    %v2104 = vadd.f32 0.0, %v2103
    %v2105 = vpop.f32.mrf.mxu0
    %v2106 = vadd.f32 0.0, %v2105
    %2107 = vdwg.mxu0
    %v2108 = vld [vmem:[%s741] sm:$0xff]
    %v2109 = vld [vmem:[%s737 + $0x8] sm:$0xff]
    %v2110 = vsel %vm146, %v2090, %v2104
    %v2111 = vsel %vm147, %v2092, %v2106
    %v2112 = vadd.f32 %v2108, %v2110
    %v2113 = vadd.f32 %v2109, %v2111
    %v2114 = vxor.u32 %v2112, 2147483648
    %v2115 = vxor.u32 %v2113, 2147483648
    %v2116 = vmul.f32 %v2114, 1.442695
    %v2117 = vpow.pop %v2116
    %v2118 = vmul.f32 %v2115, 1.442695
    %v2119 = vpow.pop %v2118
    %v2120 = vadd.f32 %v2117, 1.0
    %v2121 = vadd.f32 %v2119, 1.0
    %v2122 = vrcp.pop %v2120
    %v2123 = vmul.f32 %v2120, %v2122
    %v2124 = vsub.f32 1.0, %v2123
    %v2125 = vmul.f32 %v2122, %v2124
    %v2126 = vadd.f32 %v2122, %v2125
    %vm2127 = vweird.f32 %v2120
    %vm2128 = vweird.f32 %v2122
    %vm2129 = vmor %vm2127, %vm2128
    %v2130 = vsel %vm2129, %v2122, %v2126
    %v2131 = vand.u32 2147483647, %v2120
    %vm2132 = vcmp.eq.f32.partialorder %v2131, 8.507059e+37
    %v2133 = vand.u32 %v2120, 2147483648
    %v2134 = vor.u32 1.1754944e-38, %v2133
    %v2135 = vsel %vm2132, %v2134, %v2130
    %v2136 = vmul.f32 1.0, %v2135
    %v2137 = vrcp.pop %v2121
    %v2138 = vmul.f32 %v2121, %v2137
    %v2139 = vsub.f32 1.0, %v2138
    %v2140 = vmul.f32 %v2137, %v2139
    %v2141 = vadd.f32 %v2137, %v2140
    %vm2142 = vweird.f32 %v2121
    %vm2143 = vweird.f32 %v2137
    %vm2144 = vmor %vm2142, %vm2143
    %v2145 = vsel %vm2144, %v2137, %v2141
    %v2146 = vand.u32 2147483647, %v2121
    %vm2147 = vcmp.eq.f32.partialorder %v2146, 8.507059e+37
    %v2148 = vand.u32 %v2121, 2147483648
    %v2149 = vor.u32 1.1754944e-38, %v2148
    %v2150 = vsel %vm2147, %v2149, %v2145
    %v2151 = vmul.f32 1.0, %v2150
    %v2152 = vtanh.pop %v2112
    %v2153 = vtanh.pop %v2113
    %v2154 = vmul.f32 %v2136, %v2057
    %v2155 = vmul.f32 %v2151, %v2058
    %2158 = vrot.lane.b32.xlu0 %v2152, 64
    %v2159 = vpop.permute.xlu0 %2158
    %2160 = vrot.lane.b32.xlu0 %v2153, 64
    %v2161 = vpop.permute.xlu0 %2160
    %v2164 = vmul.f32 %v2136, %v2159
    %v2165 = vmul.f32 %v2151, %v2161
    %2168 = vrot.lane.b32.xlu0 %v2164, 32
    %v2169 = vpop.permute.xlu0 %2168
    %2170 = vrot.lane.b32.xlu0 %v2165, 32
    %v2171 = vpop.permute.xlu0 %2170
    %v2174 = vadd.f32 %v2154, %v2169
    %v2175 = vadd.f32 %v2155, %v2171
    %v2176 = vtanh.pop %v2174
    %v2177 = vtanh.pop %v2175
    %2180 = vrot.lane.b32.xlu0 %v2176, 64
    %v2181 = vpop.permute.xlu0 %2180
    %2182 = vrot.lane.b32.xlu0 %v2177, 64
    %v2183 = vpop.permute.xlu0 %2182
    %v2186 = vmul.f32 %v2136, %v2181
    %v2187 = vmul.f32 %v2151, %v2183
    %v2188 = vpack.c.bf16 %v2187, %v2186
    %v2189 = vmax.f32 %v2072, %v2186
    %v2190 = vmax.f32 %v2073, %v2187
    %2192 = vrot.lane.b32.xlu0 %v2188, 32
    %v2193 = vpop.permute.xlu0 %2192
    %v2195 = vsel %vm305, %v2193, 0
    %2197 = vmatpush.bf16.msra.mxu0 0
    %2198 = vmatpush.bf16.msra.mxu0 0
    %2199 = vmatpush.bf16.msra.mxu0 0
    %2200 = vmatpush.bf16.msra.mxu0 0
    %2201 = vmatpush.bf16.msra.mxu0 0
    %2202 = vmatpush.bf16.msra.mxu0 0
    %2203 = vmatpush.bf16.msra.mxu0 %v1608
    %2204 = vmatpush.bf16.msra.mxu0 %v1606
    %2205 = vmatmul.bf16.gmra.mxu0 %v2195
    %v2206 = vpop.f32.mrf.mxu0
    %v2207 = vadd.f32 0.0, %v2206
    %v2208 = vpop.f32.mrf.mxu0
    %v2209 = vadd.f32 0.0, %v2208
    %2210 = vdwg.mxu0
    %2211 = vmatpush.bf16.msra.mxu0 0
    %2212 = vmatpush.bf16.msra.mxu0 0
    %2213 = vmatpush.bf16.msra.mxu0 0
    %2214 = vmatpush.bf16.msra.mxu0 0
    %2215 = vmatpush.bf16.msra.mxu0 0
    %2216 = vmatpush.bf16.msra.mxu0 0
    %2217 = vmatpush.bf16.msra.mxu0 %v1609
    %2218 = vmatpush.bf16.msra.mxu0 %v1607
    %2219 = vmatmul.bf16.gmra.mxu0 %v2195
    %v2220 = vpop.f32.mrf.mxu0
    %v2221 = vadd.f32 0.0, %v2220
    %v2222 = vpop.f32.mrf.mxu0
    %v2223 = vadd.f32 0.0, %v2222
    %2224 = vdwg.mxu0
    %v2225 = vld [vmem:[%s608] sm:$0xff]
    %v2226 = vld [vmem:[%s604 + $0x8] sm:$0xff]
    %v2227 = vsel %vm146, %v2207, %v2221
    %v2228 = vsel %vm147, %v2209, %v2223
    %v2229 = vadd.f32 %v2225, %v2227
    %v2230 = vadd.f32 %v2226, %v2228
    %v2231 = vxor.u32 %v2229, 2147483648
    %v2232 = vxor.u32 %v2230, 2147483648
    %v2233 = vmul.f32 %v2231, 1.442695
    %v2234 = vpow.pop %v2233
    %v2235 = vmul.f32 %v2232, 1.442695
    %v2236 = vpow.pop %v2235
    %v2237 = vadd.f32 %v2234, 1.0
    %v2238 = vadd.f32 %v2236, 1.0
    %v2239 = vrcp.pop %v2237
    %v2240 = vmul.f32 %v2237, %v2239
    %v2241 = vsub.f32 1.0, %v2240
    %v2242 = vmul.f32 %v2239, %v2241
    %v2243 = vadd.f32 %v2239, %v2242
    %vm2244 = vweird.f32 %v2237
    %vm2245 = vweird.f32 %v2239
    %vm2246 = vmor %vm2244, %vm2245
    %v2247 = vsel %vm2246, %v2239, %v2243
    %v2248 = vand.u32 2147483647, %v2237
    %vm2249 = vcmp.eq.f32.partialorder %v2248, 8.507059e+37
    %v2250 = vand.u32 %v2237, 2147483648
    %v2251 = vor.u32 1.1754944e-38, %v2250
    %v2252 = vsel %vm2249, %v2251, %v2247
    %v2253 = vmul.f32 1.0, %v2252
    %v2254 = vrcp.pop %v2238
    %v2255 = vmul.f32 %v2238, %v2254
    %v2256 = vsub.f32 1.0, %v2255
    %v2257 = vmul.f32 %v2254, %v2256
    %v2258 = vadd.f32 %v2254, %v2257
    %vm2259 = vweird.f32 %v2238
    %vm2260 = vweird.f32 %v2254
    %vm2261 = vmor %vm2259, %vm2260
    %v2262 = vsel %vm2261, %v2254, %v2258
    %v2263 = vand.u32 2147483647, %v2238
    %vm2264 = vcmp.eq.f32.partialorder %v2263, 8.507059e+37
    %v2265 = vand.u32 %v2238, 2147483648
    %v2266 = vor.u32 1.1754944e-38, %v2265
    %v2267 = vsel %vm2264, %v2266, %v2262
    %v2268 = vmul.f32 1.0, %v2267
    %v2269 = vtanh.pop %v2229
    %v2270 = vtanh.pop %v2230
    %v2271 = vmul.f32 %v2253, %v2174
    %v2272 = vmul.f32 %v2268, %v2175
    %2275 = vrot.lane.b32.xlu0 %v2269, 64
    %v2276 = vpop.permute.xlu0 %2275
    %2277 = vrot.lane.b32.xlu0 %v2270, 64
    %v2278 = vpop.permute.xlu0 %2277
    %v2281 = vmul.f32 %v2253, %v2276
    %v2282 = vmul.f32 %v2268, %v2278
    %2285 = vrot.lane.b32.xlu0 %v2281, 32
    %v2286 = vpop.permute.xlu0 %2285
    %2287 = vrot.lane.b32.xlu0 %v2282, 32
    %v2288 = vpop.permute.xlu0 %2287
    %v2291 = vadd.f32 %v2271, %v2286
    %v2292 = vadd.f32 %v2272, %v2288
    %v2293 = vtanh.pop %v2291
    %v2294 = vtanh.pop %v2292
    %2297 = vrot.lane.b32.xlu0 %v2293, 64
    %v2298 = vpop.permute.xlu0 %2297
    %2299 = vrot.lane.b32.xlu0 %v2294, 64
    %v2300 = vpop.permute.xlu0 %2299
    %v2303 = vmul.f32 %v2253, %v2298
    %v2304 = vmul.f32 %v2268, %v2300
    %v2305 = vpack.c.bf16 %v2304, %v2303
    %v2306 = vmax.f32 %v2189, %v2303
    %v2307 = vmax.f32 %v2190, %v2304
    %2309 = vrot.lane.b32.xlu0 %v2305, 32
    %v2310 = vpop.permute.xlu0 %2309
    %v2312 = vsel %vm305, %v2310, 0
    %2314 = vmatpush.bf16.msra.mxu0 0
    %2315 = vmatpush.bf16.msra.mxu0 0
    %2316 = vmatpush.bf16.msra.mxu0 0
    %2317 = vmatpush.bf16.msra.mxu0 0
    %2318 = vmatpush.bf16.msra.mxu0 0
    %2319 = vmatpush.bf16.msra.mxu0 0
    %2320 = vmatpush.bf16.msra.mxu0 %v1608
    %2321 = vmatpush.bf16.msra.mxu0 %v1606
    %2322 = vmatmul.bf16.gmra.mxu0 %v2312
    %v2323 = vpop.f32.mrf.mxu0
    %v2324 = vadd.f32 0.0, %v2323
    %v2325 = vpop.f32.mrf.mxu0
    %v2326 = vadd.f32 0.0, %v2325
    %2327 = vdwg.mxu0
    %2328 = vmatpush.bf16.msra.mxu0 0
    %2329 = vmatpush.bf16.msra.mxu0 0
    %2330 = vmatpush.bf16.msra.mxu0 0
    %2331 = vmatpush.bf16.msra.mxu0 0
    %2332 = vmatpush.bf16.msra.mxu0 0
    %2333 = vmatpush.bf16.msra.mxu0 0
    %2334 = vmatpush.bf16.msra.mxu0 %v1609
    %2335 = vmatpush.bf16.msra.mxu0 %v1607
    %2336 = vmatmul.bf16.gmra.mxu0 %v2312
    %v2337 = vpop.f32.mrf.mxu0
    %v2338 = vadd.f32 0.0, %v2337
    %v2339 = vpop.f32.mrf.mxu0
    %v2340 = vadd.f32 0.0, %v2339
    %2341 = vdwg.mxu0
    %v2342 = vld [vmem:[%s475] sm:$0xff]
    %v2343 = vld [vmem:[%s471 + $0x8] sm:$0xff]
    %v2344 = vsel %vm146, %v2324, %v2338
    %v2345 = vsel %vm147, %v2326, %v2340
    %v2346 = vadd.f32 %v2342, %v2344
    %v2347 = vadd.f32 %v2343, %v2345
    %v2348 = vxor.u32 %v2346, 2147483648
    %v2349 = vxor.u32 %v2347, 2147483648
    %v2350 = vmul.f32 %v2348, 1.442695
    %v2351 = vpow.pop %v2350
    %v2352 = vmul.f32 %v2349, 1.442695
    %v2353 = vpow.pop %v2352
    %v2354 = vadd.f32 %v2351, 1.0
    %v2355 = vadd.f32 %v2353, 1.0
    %v2356 = vrcp.pop %v2354
    %v2357 = vmul.f32 %v2354, %v2356
    %v2358 = vsub.f32 1.0, %v2357
    %v2359 = vmul.f32 %v2356, %v2358
    %v2360 = vadd.f32 %v2356, %v2359
    %vm2361 = vweird.f32 %v2354
    %vm2362 = vweird.f32 %v2356
    %vm2363 = vmor %vm2361, %vm2362
    %v2364 = vsel %vm2363, %v2356, %v2360
    %v2365 = vand.u32 2147483647, %v2354
    %vm2366 = vcmp.eq.f32.partialorder %v2365, 8.507059e+37
    %v2367 = vand.u32 %v2354, 2147483648
    %v2368 = vor.u32 1.1754944e-38, %v2367
    %v2369 = vsel %vm2366, %v2368, %v2364
    %v2370 = vmul.f32 1.0, %v2369
    %v2371 = vrcp.pop %v2355
    %v2372 = vmul.f32 %v2355, %v2371
    %v2373 = vsub.f32 1.0, %v2372
    %v2374 = vmul.f32 %v2371, %v2373
    %v2375 = vadd.f32 %v2371, %v2374
    %vm2376 = vweird.f32 %v2355
    %vm2377 = vweird.f32 %v2371
    %vm2378 = vmor %vm2376, %vm2377
    %v2379 = vsel %vm2378, %v2371, %v2375
    %v2380 = vand.u32 2147483647, %v2355
    %vm2381 = vcmp.eq.f32.partialorder %v2380, 8.507059e+37
    %v2382 = vand.u32 %v2355, 2147483648
    %v2383 = vor.u32 1.1754944e-38, %v2382
    %v2384 = vsel %vm2381, %v2383, %v2379
    %v2385 = vmul.f32 1.0, %v2384
    %v2386 = vtanh.pop %v2346
    %v2387 = vtanh.pop %v2347
    %v2388 = vmul.f32 %v2370, %v2291
    %v2389 = vmul.f32 %v2385, %v2292
    %2392 = vrot.lane.b32.xlu0 %v2386, 64
    %v2393 = vpop.permute.xlu0 %2392
    %2394 = vrot.lane.b32.xlu0 %v2387, 64
    %v2395 = vpop.permute.xlu0 %2394
    %v2398 = vmul.f32 %v2370, %v2393
    %v2399 = vmul.f32 %v2385, %v2395
    %2402 = vrot.lane.b32.xlu0 %v2398, 32
    %v2403 = vpop.permute.xlu0 %2402
    %2404 = vrot.lane.b32.xlu0 %v2399, 32
    %v2405 = vpop.permute.xlu0 %2404
    %v2408 = vadd.f32 %v2388, %v2403
    %v2409 = vadd.f32 %v2389, %v2405
    %v2410 = vtanh.pop %v2408
    %v2411 = vtanh.pop %v2409
    %2414 = vrot.lane.b32.xlu0 %v2410, 64
    %v2415 = vpop.permute.xlu0 %2414
    %2416 = vrot.lane.b32.xlu0 %v2411, 64
    %v2417 = vpop.permute.xlu0 %2416
    %v2420 = vmul.f32 %v2370, %v2415
    %v2421 = vmul.f32 %v2385, %v2417
    %v2422 = vpack.c.bf16 %v2421, %v2420
    %v2423 = vmax.f32 %v2306, %v2420
    %v2424 = vmax.f32 %v2307, %v2421
    %2426 = vrot.lane.b32.xlu0 %v2422, 32
    %v2427 = vpop.permute.xlu0 %2426
    %v2429 = vsel %vm305, %v2427, 0
    %2431 = vmatpush.bf16.msra.mxu0 0
    %2432 = vmatpush.bf16.msra.mxu0 0
    %2433 = vmatpush.bf16.msra.mxu0 0
    %2434 = vmatpush.bf16.msra.mxu0 0
    %2435 = vmatpush.bf16.msra.mxu0 0
    %2436 = vmatpush.bf16.msra.mxu0 0
    %2437 = vmatpush.bf16.msra.mxu0 %v1608
    %2438 = vmatpush.bf16.msra.mxu0 %v1606
    %2439 = vmatmul.bf16.gmra.mxu0 %v2429
    %v2440 = vpop.f32.mrf.mxu0
    %v2441 = vadd.f32 0.0, %v2440
    %v2442 = vpop.f32.mrf.mxu0
    %v2443 = vadd.f32 0.0, %v2442
    %2444 = vdwg.mxu0
    %2445 = vmatpush.bf16.msra.mxu0 0
    %2446 = vmatpush.bf16.msra.mxu0 0
    %2447 = vmatpush.bf16.msra.mxu0 0
    %2448 = vmatpush.bf16.msra.mxu0 0
    %2449 = vmatpush.bf16.msra.mxu0 0
    %2450 = vmatpush.bf16.msra.mxu0 0
    %2451 = vmatpush.bf16.msra.mxu0 %v1609
    %2452 = vmatpush.bf16.msra.mxu0 %v1607
    %2453 = vmatmul.bf16.gmra.mxu0 %v2429
    %v2454 = vpop.f32.mrf.mxu0
    %v2455 = vadd.f32 0.0, %v2454
    %v2456 = vpop.f32.mrf.mxu0
    %v2457 = vadd.f32 0.0, %v2456
    %2458 = vdwg.mxu0
    %v2459 = vld [vmem:[%s343] sm:$0xff]
    %v2460 = vld [vmem:[%s339 + $0x8] sm:$0xff]
    %v2461 = vsel %vm146, %v2441, %v2455
    %v2462 = vsel %vm147, %v2443, %v2457
    %v2463 = vadd.f32 %v2459, %v2461
    %v2464 = vadd.f32 %v2460, %v2462
    %v2465 = vxor.u32 %v2463, 2147483648
    %v2466 = vxor.u32 %v2464, 2147483648
    %v2467 = vmul.f32 %v2465, 1.442695
    %v2468 = vpow.pop %v2467
    %v2469 = vmul.f32 %v2466, 1.442695
    %v2470 = vpow.pop %v2469
    %v2471 = vadd.f32 %v2468, 1.0
    %v2472 = vadd.f32 %v2470, 1.0
    %v2473 = vrcp.pop %v2471
    %v2474 = vmul.f32 %v2471, %v2473
    %v2475 = vsub.f32 1.0, %v2474
    %v2476 = vmul.f32 %v2473, %v2475
    %v2477 = vadd.f32 %v2473, %v2476
    %vm2478 = vweird.f32 %v2471
    %vm2479 = vweird.f32 %v2473
    %vm2480 = vmor %vm2478, %vm2479
    %v2481 = vsel %vm2480, %v2473, %v2477
    %v2482 = vand.u32 2147483647, %v2471
    %vm2483 = vcmp.eq.f32.partialorder %v2482, 8.507059e+37
    %v2484 = vand.u32 %v2471, 2147483648
    %v2485 = vor.u32 1.1754944e-38, %v2484
    %v2486 = vsel %vm2483, %v2485, %v2481
    %v2487 = vmul.f32 1.0, %v2486
    %v2488 = vrcp.pop %v2472
    %v2489 = vmul.f32 %v2472, %v2488
    %v2490 = vsub.f32 1.0, %v2489
    %v2491 = vmul.f32 %v2488, %v2490
    %v2492 = vadd.f32 %v2488, %v2491
    %vm2493 = vweird.f32 %v2472
    %vm2494 = vweird.f32 %v2488
    %vm2495 = vmor %vm2493, %vm2494
    %v2496 = vsel %vm2495, %v2488, %v2492
    %v2497 = vand.u32 2147483647, %v2472
    %vm2498 = vcmp.eq.f32.partialorder %v2497, 8.507059e+37
    %v2499 = vand.u32 %v2472, 2147483648
    %v2500 = vor.u32 1.1754944e-38, %v2499
    %v2501 = vsel %vm2498, %v2500, %v2496
    %v2502 = vmul.f32 1.0, %v2501
    %v2503 = vtanh.pop %v2463
    %v2504 = vtanh.pop %v2464
    %v2505 = vmul.f32 %v2487, %v2408
    %v2506 = vmul.f32 %v2502, %v2409
    %2509 = vrot.lane.b32.xlu0 %v2503, 64
    %v2510 = vpop.permute.xlu0 %2509
    %2511 = vrot.lane.b32.xlu0 %v2504, 64
    %v2512 = vpop.permute.xlu0 %2511
    %v2515 = vmul.f32 %v2487, %v2510
    %v2516 = vmul.f32 %v2502, %v2512
    %2519 = vrot.lane.b32.xlu0 %v2515, 32
    %v2520 = vpop.permute.xlu0 %2519
    %2521 = vrot.lane.b32.xlu0 %v2516, 32
    %v2522 = vpop.permute.xlu0 %2521
    %v2525 = vadd.f32 %v2505, %v2520
    %v2526 = vadd.f32 %v2506, %v2522
    %v2527 = vtanh.pop %v2525
    %v2528 = vtanh.pop %v2526
    %2531 = vrot.lane.b32.xlu0 %v2527, 64
    %v2532 = vpop.permute.xlu0 %2531
    %2533 = vrot.lane.b32.xlu0 %v2528, 64
    %v2534 = vpop.permute.xlu0 %2533
    %v2537 = vmul.f32 %v2487, %v2532
    %v2538 = vmul.f32 %v2502, %v2534
    %v2539 = vmax.f32 %v2423, %v2537
    %v2540 = vmax.f32 %v2424, %v2538
    %v2541 = vpack.c.bf16 %v2539, %v2539
    %v2542 = vpack.c.bf16 %v2540, %v2540
    %v2543 = vld [vmem:[#allocation5] sm:$0xf]
    %v2544 = vld [vmem:[#allocation5 + $0x4] sm:$0xf]
    %v2545 = vld [vmem:[#allocation5 + $0x8] sm:$0xf]
    %v2546 = vld [vmem:[#allocation5 + $0xc] sm:$0xf]
    %v2547 = vld [vmem:[#allocation7] sm:$0xf]
    %v2548 = vld [vmem:[#allocation7 + $0x4] sm:$0xf]
    %v2549 = vld [vmem:[#allocation7 + $0x8] sm:$0xf]
    %v2550 = vld [vmem:[#allocation7 + $0xc] sm:$0xf]
    %2552 = vrot.lane.b32.xlu0 %v2542, 32
    %v2553 = vpop.permute.xlu0 %2552
    %v2558 = vunpack.c.l.b16 %v2547
    %v2559 = vunpack.c.l.b16 %v2548
    %v2560 = vunpack.c.l.b16 %v2549
    %v2561 = vunpack.c.l.b16 %v2550
    %v2562 = vpack.c.b16 %v2559, %v2558
    %v2563 = vpack.c.b16 %v2561, %v2560
    %v2567 = vsel %vm305, %v2553, 0
    %2569 = vmatpush.bf16.msra.mxu0 0
    %2570 = vmatpush.bf16.msra.mxu0 0
    %2571 = vmatpush.bf16.msra.mxu0 0
    %2572 = vmatpush.bf16.msra.mxu0 0
    %2573 = vmatpush.bf16.msra.mxu0 0
    %2574 = vmatpush.bf16.msra.mxu0 0
    %2575 = vmatpush.bf16.msra.mxu0 %v2563
    %2576 = vmatpush.bf16.msra.mxu0 %v2562
    %2577 = vmatmul.bf16.gmra.mxu0 %v2567
    %v2578 = vpop.f32.mrf.mxu0
    %v2579 = vadd.f32 0.0, %v2578
    %v2580 = vpop.f32.mrf.mxu0
    %2581 = vdwg.mxu0
    %2583 = vrot.lane.b32.xlu0 %v2541, 32
    %v2584 = vpop.permute.xlu0 %2583
    %v2589 = vunpack.c.l.b16 %v2543
    %v2590 = vunpack.c.l.b16 %v2544
    %v2591 = vunpack.c.l.b16 %v2545
    %v2592 = vunpack.c.l.b16 %v2546
    %v2593 = vpack.c.b16 %v2590, %v2589
    %v2594 = vpack.c.b16 %v2592, %v2591
    %v2598 = vsel %vm305, %v2584, 0
    %2600 = vmatpush.bf16.msra.mxu0 0
    %2601 = vmatpush.bf16.msra.mxu0 0
    %2602 = vmatpush.bf16.msra.mxu0 0
    %2603 = vmatpush.bf16.msra.mxu0 0
    %2604 = vmatpush.bf16.msra.mxu0 0
    %2605 = vmatpush.bf16.msra.mxu0 0
    %2606 = vmatpush.bf16.msra.mxu0 %v2594
    %2607 = vmatpush.bf16.msra.mxu0 %v2593
    %2608 = vmatmul.bf16.gmra.mxu0 %v2598
    %v2609 = vpop.f32.mrf.mxu0
    %v2610 = vadd.f32 %v2579, %v2609
    %v2611 = vpop.f32.mrf.mxu0
    %2612 = vdwg.mxu0
    %v2613 = vld [vmem:[%s10] sm:$0x1]
    %v2615 = vperm.slane %v2613, 0
    %v2617 = vadd.f32 %v2610, %v2615
    %v2618 = vld [vmem:[#allocation12] sm:$0x1]
    %v2620 = vperm.slane %v2618, 0
    %v2622 = vsub.f32 %v2617, %v2620
    %v2623 = vld [vmem:[#allocation13] sm:$0x1]
    %v2624 = vadd.f32 %v2623, 1e-05
    %v2625 = vrsqrt.pop %v2624
    %v2626 = vmul.f32 %v2625, %v2624
    %v2627 = vmul.f32 %v2626, %v2625
    %v2628 = vmul.f32 0.5, %v2627
    %v2629 = vsub.f32 1.5, %v2628
    %v2630 = vmul.f32 %v2625, %v2629
    %vm2631 = vweird.f32 %v2624
    %vm2632 = vweird.f32 %v2625
    %vm2633 = vmor %vm2631, %vm2632
    %v2634 = vsel %vm2633, %v2625, %v2630
    %v2636 = vperm.slane %v2634, 0
    %v2638 = vmul.f32 %v2622, %v2636
    %v2639 = vld [vmem:[#allocation9] sm:$0x1]
    %v2641 = vperm.slane %v2639, 0
    %v2643 = vmul.f32 %v2638, %v2641
    %v2644 = vld [vmem:[#allocation10] sm:$0x1]
    %v2646 = vperm.slane %v2644, 0
    %v2648 = vadd.f32 %v2643, %v2646
    %v2649 = vmax.f32 %v2648, 0.0
    %v2650 = vpack.c.bf16 %v2649, %v2649
    %v2651 = vld [vmem:[%s15] sm:$0xf]
    %v2652 = vld [vmem:[%s15 + $0x4] sm:$0xf]
    %v2653 = vld [vmem:[%s15 + $0x8] sm:$0xf]
    %v2654 = vld [vmem:[%s15 + $0xc] sm:$0xf]
    %v2655 = vld [vmem:[%s16] sm:$0x1]
    %v2657 = vperm.slane %v2655, 0
    %v2663 = vunpack.c.l.b16 %v2651
    %v2664 = vunpack.c.l.b16 %v2652
    %v2665 = vunpack.c.l.b16 %v2653
    %v2666 = vunpack.c.l.b16 %v2654
    %v2667 = vpack.c.b16 %v2664, %v2663
    %v2668 = vpack.c.b16 %v2666, %v2665
    %v2672 = vsel %vm305, %v2650, 0
    %2674 = vmatpush.bf16.msra.mxu0 0
    %2675 = vmatpush.bf16.msra.mxu0 0
    %2676 = vmatpush.bf16.msra.mxu0 0
    %2677 = vmatpush.bf16.msra.mxu0 0
    %2678 = vmatpush.bf16.msra.mxu0 0
    %2679 = vmatpush.bf16.msra.mxu0 0
    %2680 = vmatpush.bf16.msra.mxu0 %v2668
    %2681 = vmatpush.bf16.msra.mxu0 %v2667
    %2682 = vmatmul.bf16.gmra.mxu0 %v2672
    %v2683 = vpop.f32.mrf.mxu0
    %v2684 = vadd.f32 %v2657, %v2683
    %v2685 = vpop.f32.mrf.mxu0
    %2686 = vdwg.mxu0
    %vm2687 = vcmask 64512
    %v2688 = vsel %vm2687, %v2684, -inf
    %2689 = vmax.xlane.f32.xlu0 %v2688
    %v2690 = vpop.xlane.xlu0 %2689
    %v2691 = vsub.f32 %v2684, %v2690
    %v2692 = vmul.f32 %v2691, 1.442695
    %v2693 = vpow.pop %v2692
    %v2694 = vsel %vm2687, %v2693, 0.0
    %2695 = vadd.xlane.f32.xlu0 %v2694
    %v2696 = vpop.xlane.xlu0 %2695
    %v2697 = vlog2.pop %v2696
    %v2698 = vmul.f32 %v2697, 0.6931472
    %v2699 = vsub.f32 %v2691, %v2698
    %2700 = vst.msk [vmem:[%s17] sm:$0xff] %vm2687, %v2699
    // Predicated region
    $region94: #{birnn_max_forward.1} parent=1 // pred_check
      _
    $region95: #{birnn_max_forward.1} parent=1 // pred_check_branch
      %2702 = sbr.rel (0) target = $region97
    $region96: #{birnn_max_forward.1} parent=1 // pred_region
      _
    $region97: #{birnn_max_forward.1} parent=1 // pred_fallthru
      _
    // Predicated region
    $region98: #{birnn_max_forward.1} parent=1 // pred_check
      _
    $region99: #{birnn_max_forward.1} parent=1 // pred_check_branch
      %2704 = sbr.rel (0) target = $region101
    $region100: #{birnn_max_forward.1} parent=1 // pred_region
      _
    $region101: #{birnn_max_forward.1} parent=1 // pred_fallthru
      _
    %2705 = vsyncpa [#allocation6], 1
    %2706 = vsyncpa [#allocation8], 1
    %2707 = vsyncpa [#allocation11], 1
    %2708 = vsyncpa [#allocation14], 1

</llo_original>
